<compile_context>
chip_gen: v7x
topology: tpu7x:2x2x1
jax: 0.10.0
libtpu: 0.0.40
codegen_flags: <defaults>
</compile_context>

<pallas_src>
import math

import jax
import jax.numpy as jnp
from jax.experimental import pallas as pl
from jax.experimental.pallas import tpu as pltpu


# ----------------------------------------------------------------------------
# Fused LSTM-stack kernel (wavefronted over layers, fully unrolled over time).
# ----------------------------------------------------------------------------
def _make_encoder_kernel(num_layers, seq_len, batch_chunk, hidden):
    T, Nc, Hd = seq_len, batch_chunk, hidden

    def kernel(seq_ref, *refs):
        # refs = w0, u0, b0, (wcat_l, b_l) for l=1..L-1, out_ref
        w0 = refs[0][...]                       # (C, 4H)  bf16
        u0 = refs[1][...]                       # (H, 4H)  bf16
        b0 = refs[2][...]                       # (1, 4H)  f32
        layer_refs = refs[3:3 + 2 * (num_layers - 1)]
        out_ref = refs[3 + 2 * (num_layers - 1)]  # (Nc, H) f32

        wcats = [layer_refs[2 * i][...] for i in range(num_layers - 1)]      # (2H,4H) bf16
        bls = [layer_refs[2 * i + 1][...] for i in range(num_layers - 1)]    # (1,4H)  f32

        # Time-major input rows: row t*Nc + n  <->  x[n, :, t] of this chunk.
        seq = seq_ref[...]                      # (T*Nc, C) bf16

        # Hoisted layer-0 input projection: one MXU call over all T*Nc rows,
        # bias folded.  Per-step rows are contiguous static slices below.
        gx0 = jnp.dot(seq, w0, preferred_element_type=jnp.float32) + b0     # (T*Nc, 4H)

        def cell(gates, c_prev):
            i = jax.nn.sigmoid(gates[:, 0:Hd])
            f = jax.nn.sigmoid(gates[:, Hd:2 * Hd])
            g = jnp.tanh(gates[:, 2 * Hd:3 * Hd])
            o = jax.nn.sigmoid(gates[:, 3 * Hd:4 * Hd])
            c_new = f * c_prev + i * g
            h_new = o * jnp.tanh(c_new)
            return h_new, c_new

        zeros = jnp.zeros((Nc, Hd), jnp.float32)
        h = [zeros] * num_layers                # h_l(t-1) recurrent state
        c = [zeros] * num_layers                # c_l(t-1) recurrent state
        prev_out = [None] * num_layers          # h_l produced in previous wavefront step

        # Wavefront over layers: at step s, layer l processes timestep s - l.
        # Fully unrolled: T and L are small & static.  For larger / dynamic T,
        # switch to lax.fori_loop(..., unroll=True) and pl.ds indexing.
        for s in range(T + num_layers - 1):
            new_out = list(prev_out)
            for l in range(num_layers):
                t = s - l
                if not (0 <= t < T):
                    continue
                if l == 0:
                    gates = gx0[t * Nc:(t + 1) * Nc, :] + jnp.dot(
                        h[0].astype(jnp.bfloat16), u0,
                        preferred_element_type=jnp.float32)
                else:
                    # Fused input+hidden projection: [h_{l-1}(t); h_l(t-1)]
                    # against a pre-stacked (2H, 4H) weight -> one matmul.
                    cat = jnp.concatenate([prev_out[l - 1], h[l]],
                                          axis=1).astype(jnp.bfloat16)       # (Nc, 2H)
                    gates = jnp.dot(cat, wcats[l - 1],
                                    preferred_element_type=jnp.float32) + bls[l - 1]
                h[l], c[l] = cell(gates, c[l])
                new_out[l] = h[l]
            prev_out = new_out

        out_ref[...] = h[num_layers - 1]        # h[-1] of the last layer

    return kernel


def _default_batch_chunks(n):
    """Split the batch across TensorCores only on multi-core chips (v7x)."""
    try:
        kind = jax.devices()[0].device_kind.lower()
    except Exception:
        return 1
    if ("v7" in kind or "7x" in kind) and n >= 2 and n % 2 == 0:
        return 2
    return 1


# ----------------------------------------------------------------------------
# Wrapper: cheap layout plumbing in XLA + single fused pallas_call.
# ----------------------------------------------------------------------------
def encoder_forward(x, packed_params, batch_chunks=None):
    N, C, H, W = x.shape
    T = W
    num_layers = 1 + (len(packed_params) - 3) // 2
    Hd = packed_params[1].shape[0]              # u0: (H, 4H)

    if batch_chunks is None:
        batch_chunks = _default_batch_chunks(N)
    if N % batch_chunks != 0:
        batch_chunks = 1
    Nc = N // batch_chunks

    # --- prologue in the wrapper: MaxPool2d((H,1)) + squeeze + permute, then
    #     pack time-major per batch chunk and cast matmul operand to bf16. ---
    pooled = jnp.max(x, axis=2)                              # (N, C, W)
    seq = jnp.transpose(pooled, (2, 0, 1))                   # (T, N, C) time-major
    seq = seq.reshape(T, batch_chunks, Nc, C)
    seq = jnp.transpose(seq, (1, 0, 2, 3)).reshape(batch_chunks, T * Nc, C)
    seq = seq.astype(jnp.bfloat16)                           # (G, T*Nc, C)

    kernel = _make_encoder_kernel(num_layers, T, Nc, Hd)

    weight_specs = [pl.BlockSpec(p.shape, lambda b: (0, 0)) for p in packed_params]

    out = pl.pallas_call(
        kernel,
        out_shape=jax.ShapeDtypeStruct((batch_chunks, Nc, Hd), jnp.float32),
        grid=(batch_chunks,),
        in_specs=[pl.BlockSpec((None, T * Nc, C), lambda b: (b, 0, 0))] + weight_specs,
        out_specs=pl.BlockSpec((None, Nc, Hd), lambda b: (b, 0, 0)),
        compiler_params=pltpu.CompilerParams(
            dimension_semantics=("parallel",)),
    )(seq, *packed_params)

    return out.reshape(N, Hd)


# ----------------------------------------------------------------------------
# Parameters.
# ----------------------------------------------------------------------------
def init_lstm_params(key, input_size, hidden_units, layers):
    """PyTorch-default LSTM init: U(-1/sqrt(H), 1/sqrt(H)), layout (4H, Din)."""
    params = []
    bound = 1.0 / math.sqrt(hidden_units)
    din = input_size
    for _ in range(layers):
        key, k1, k2, k3, k4 = jax.random.split(key, 5)
        w_ih = jax.random.uniform(k1, (4 * hidden_units, din), jnp.float32, -bound, bound)
        w_hh = jax.random.uniform(k2, (4 * hidden_units, hidden_units), jnp.float32, -bound, bound)
        b_ih = jax.random.uniform(k3, (4 * hidden_units,), jnp.float32, -bound, bound)
        b_hh = jax.random.uniform(k4, (4 * hidden_units,), jnp.float32, -bound, bound)
        params.append((w_ih, w_hh, b_ih, b_hh))
        din = hidden_units
    return params


def pack_lstm_params(params):
    """Kernel layout: pre-transposed bf16 matmul weights, folded f32 biases.
    Layers >= 1 get [W_ih^T; W_hh^T] stacked to (2H, 4H) for the fused
    per-step matmul."""
    w_ih0, w_hh0, b_ih0, b_hh0 = params[0]
    packed = [
        jnp.transpose(w_ih0).astype(jnp.bfloat16),                 # (C, 4H)
        jnp.transpose(w_hh0).astype(jnp.bfloat16),                 # (H, 4H)
        (b_ih0 + b_hh0).reshape(1, -1).astype(jnp.float32),        # (1, 4H)
    ]
    for (w_ih, w_hh, b_ih, b_hh) in params[1:]:
        packed.append(jnp.concatenate(
            [jnp.transpose(w_ih), jnp.transpose(w_hh)], axis=0).astype(jnp.bfloat16))
        packed.append((b_ih + b_hh).reshape(1, -1).astype(jnp.float32))
    return packed


# ----------------------------------------------------------------------------
# Pure-JAX reference (same bf16/f32 numerics, sequential layers).
# ----------------------------------------------------------------------------
def encoder_reference(x, packed_params):
    N, C, H, W = x.shape
    T = W
    num_layers = 1 + (len(packed_params) - 3) // 2
    Hd = packed_params[1].shape[0]

    pooled = jnp.max(x, axis=2)                      # (N, C, W)
    seq = jnp.transpose(pooled, (0, 2, 1))           # (N, T, C) batch-first

    def run_layer(xs, w_t, u_t, b):
        h = jnp.zeros((N, Hd), jnp.float32)
        c = jnp.zeros((N, Hd), jnp.float32)
        hs = []
        for t in range(T):
            xt = xs[:, t, :].astype(jnp.bfloat16)
            gates = (jnp.dot(xt, w_t, preferred_element_type=jnp.float32) + b
                     + jnp.dot(h.astype(jnp.bfloat16), u_t,
                               preferred_element_type=jnp.float32))
            i = jax.nn.sigmoid(gates[:, 0:Hd])
            f = jax.nn.sigmoid(gates[:, Hd:2 * Hd])
            g = jnp.tanh(gates[:, 2 * Hd:3 * Hd])
            o = jax.nn.sigmoid(gates[:, 3 * Hd:4 * Hd])
            c = f * c + i * g
            h = o * jnp.tanh(c)
            hs.append(h)
        return jnp.stack(hs, axis=1), h

    hs, h = run_layer(seq, packed_params[0], packed_params[1], packed_params[2])
    for l in range(1, num_layers):
        wcat = packed_params[3 + 2 * (l - 1)]
        b = packed_params[3 + 2 * (l - 1) + 1]
        hs, h = run_layer(hs, wcat[:Hd, :], wcat[Hd:, :], b)
    return h


if __name__ == "__main__":
    # Small shapes consistent with the module: x is NCHW.
    N, C, H, W = 2, 4, 16, 16
    hidden_units, layers = 32, 2

    key = jax.random.PRNGKey(0)
    kx, kp = jax.random.split(key)
    x = jax.random.normal(kx, (N, C, H, W), dtype=jnp.float32)
    params = init_lstm_params(kp, C, hidden_units, layers)
    packed = pack_lstm_params(params)

    out = jax.jit(encoder_forward)(x, packed)
    out = jax.block_until_ready(out)
    assert out.shape == (N, hidden_units), out.shape
    assert bool(jnp.all(jnp.isfinite(out)))

    ref = encoder_reference(x, packed)
    max_err = float(jnp.max(jnp.abs(out - ref)))
    assert max_err < 5e-2, f"max abs error vs reference: {max_err}"

    print("KERNEL_OK")
</pallas_src>

<mosaic_0001>
module attributes {stable_mosaic.version = 11 : i64} {
  func.func @kernel(%arg0: i32, %arg1: memref<1x32x4xbf16, #tpu.memory_space<vmem>>, %arg2: memref<4x128xbf16, #tpu.memory_space<vmem>>, %arg3: memref<32x128xbf16, #tpu.memory_space<vmem>>, %arg4: memref<1x128xf32, #tpu.memory_space<vmem>>, %arg5: memref<64x128xbf16, #tpu.memory_space<vmem>>, %arg6: memref<1x128xf32, #tpu.memory_space<vmem>>, %arg7: memref<1x2x32xf32, #tpu.memory_space<vmem>>) attributes {dimension_semantics = [#tpu.dimension_semantics<parallel>], iteration_bounds = array<i64: 1>, scalar_prefetch = 0 : i64, scratch_operands = 0 : i64, tpu.core_type = #tpu.core_type<tc>, window_params = [{transform_indices = @transform_0, window_bounds = array<i64: 1, 32, 4>}, {pipeline_mode = #tpu.pipeline_mode<synchronous>, transform_indices = @transform_1, window_bounds = array<i64: 4, 128>}, {pipeline_mode = #tpu.pipeline_mode<synchronous>, transform_indices = @transform_2, window_bounds = array<i64: 32, 128>}, {pipeline_mode = #tpu.pipeline_mode<synchronous>, transform_indices = @transform_3, window_bounds = array<i64: 1, 128>}, {pipeline_mode = #tpu.pipeline_mode<synchronous>, transform_indices = @transform_4, window_bounds = array<i64: 64, 128>}, {pipeline_mode = #tpu.pipeline_mode<synchronous>, transform_indices = @transform_5, window_bounds = array<i64: 1, 128>}, {transform_indices = @transform_6, window_bounds = array<i64: 1, 2, 32>}]} {
    %c0 = arith.constant 0 : index
    %c0_0 = arith.constant 0 : index
    %0 = vector.load %arg2[%c0, %c0_0] : memref<4x128xbf16, #tpu.memory_space<vmem>>, vector<4x128xbf16>
    %c0_1 = arith.constant 0 : index
    %c0_2 = arith.constant 0 : index
    %1 = vector.load %arg3[%c0_1, %c0_2] : memref<32x128xbf16, #tpu.memory_space<vmem>>, vector<32x128xbf16>
    %c0_3 = arith.constant 0 : index
    %c0_4 = arith.constant 0 : index
    %2 = vector.load %arg4[%c0_3, %c0_4] : memref<1x128xf32, #tpu.memory_space<vmem>>, vector<1x128xf32>
    %c0_5 = arith.constant 0 : index
    %c0_6 = arith.constant 0 : index
    %3 = vector.load %arg5[%c0_5, %c0_6] : memref<64x128xbf16, #tpu.memory_space<vmem>>, vector<64x128xbf16>
    %c0_7 = arith.constant 0 : index
    %c0_8 = arith.constant 0 : index
    %4 = vector.load %arg6[%c0_7, %c0_8] : memref<1x128xf32, #tpu.memory_space<vmem>>, vector<1x128xf32>
    %c0_9 = arith.constant 0 : index
    %c0_10 = arith.constant 0 : index
    %c0_11 = arith.constant 0 : index
    %5 = vector.load %arg1[%c0_9, %c0_10, %c0_11] : memref<1x32x4xbf16, #tpu.memory_space<vmem>>, vector<1x32x4xbf16>
    %6 = vector.shape_cast %5 : vector<1x32x4xbf16> to vector<32x4xbf16>
    %cst = arith.constant dense<0.000000e+00> : vector<32x128xf32>
    %7 = tpu.matmul %6, %0, %cst {dimension_numbers = #tpu.dot_dimension_numbers<[1], [0], [0], [1], [0, 0, 1, 1], [], []>} : vector<32x4xbf16>, vector<4x128xbf16>, vector<32x128xf32> -> vector<32x128xf32>
    %8 = vector.broadcast %2 : vector<1x128xf32> to vector<32x128xf32>
    %9 = arith.addf %7, %8 : vector<32x128xf32>
    %cst_12 = arith.constant 0.000000e+00 : f32
    %10 = vector.broadcast %cst_12 : f32 to vector<2x32xf32>
    %11 = vector.extract_strided_slice %9 {offsets = [0, 0], sizes = [2, 128], strides = [1, 1]} : vector<32x128xf32> to vector<2x128xf32>
    %12 = arith.truncf %10 : vector<2x32xf32> to vector<2x32xbf16>
    %cst_13 = arith.constant dense<0.000000e+00> : vector<2x128xf32>
    %13 = tpu.matmul %12, %1, %cst_13 {dimension_numbers = #tpu.dot_dimension_numbers<[1], [0], [0], [1], [0, 0, 1, 1], [], []>} : vector<2x32xbf16>, vector<32x128xbf16>, vector<2x128xf32> -> vector<2x128xf32>
    %14 = arith.addf %11, %13 : vector<2x128xf32>
    %15 = vector.extract_strided_slice %14 {offsets = [0, 0], sizes = [2, 32], strides = [1, 1]} : vector<2x128xf32> to vector<2x32xf32>
    %16 = arith.negf %15 : vector<2x32xf32>
    %17 = math.exp %16 : vector<2x32xf32>
    %cst_14 = arith.constant 1.000000e+00 : f32
    %18 = vector.broadcast %cst_14 : f32 to vector<2x32xf32>
    %19 = arith.addf %18, %17 : vector<2x32xf32>
    %20 = arith.divf %18, %19 : vector<2x32xf32>
    %21 = vector.extract_strided_slice %14 {offsets = [0, 32], sizes = [2, 32], strides = [1, 1]} : vector<2x128xf32> to vector<2x32xf32>
    %22 = arith.negf %21 : vector<2x32xf32>
    %23 = math.exp %22 : vector<2x32xf32>
    %cst_15 = arith.constant 1.000000e+00 : f32
    %24 = vector.broadcast %cst_15 : f32 to vector<2x32xf32>
    %25 = arith.addf %24, %23 : vector<2x32xf32>
    %26 = arith.divf %24, %25 : vector<2x32xf32>
    %27 = vector.extract_strided_slice %14 {offsets = [0, 64], sizes = [2, 32], strides = [1, 1]} : vector<2x128xf32> to vector<2x32xf32>
    %28 = math.tanh %27 : vector<2x32xf32>
    %29 = vector.extract_strided_slice %14 {offsets = [0, 96], sizes = [2, 32], strides = [1, 1]} : vector<2x128xf32> to vector<2x32xf32>
    %30 = arith.negf %29 : vector<2x32xf32>
    %31 = math.exp %30 : vector<2x32xf32>
    %cst_16 = arith.constant 1.000000e+00 : f32
    %32 = vector.broadcast %cst_16 : f32 to vector<2x32xf32>
    %33 = arith.addf %32, %31 : vector<2x32xf32>
    %34 = arith.divf %32, %33 : vector<2x32xf32>
    %35 = arith.mulf %26, %10 : vector<2x32xf32>
    %36 = arith.mulf %20, %28 : vector<2x32xf32>
    %37 = arith.addf %35, %36 : vector<2x32xf32>
    %38 = math.tanh %37 : vector<2x32xf32>
    %39 = arith.mulf %34, %38 : vector<2x32xf32>
    %40 = vector.extract_strided_slice %9 {offsets = [2, 0], sizes = [2, 128], strides = [1, 1]} : vector<32x128xf32> to vector<2x128xf32>
    %41 = arith.truncf %39 : vector<2x32xf32> to vector<2x32xbf16>
    %cst_17 = arith.constant dense<0.000000e+00> : vector<2x128xf32>
    %42 = tpu.matmul %41, %1, %cst_17 {dimension_numbers = #tpu.dot_dimension_numbers<[1], [0], [0], [1], [0, 0, 1, 1], [], []>} : vector<2x32xbf16>, vector<32x128xbf16>, vector<2x128xf32> -> vector<2x128xf32>
    %43 = arith.addf %40, %42 : vector<2x128xf32>
    %44 = vector.extract_strided_slice %43 {offsets = [0, 0], sizes = [2, 32], strides = [1, 1]} : vector<2x128xf32> to vector<2x32xf32>
    %45 = arith.negf %44 : vector<2x32xf32>
    %46 = math.exp %45 : vector<2x32xf32>
    %cst_18 = arith.constant 1.000000e+00 : f32
    %47 = vector.broadcast %cst_18 : f32 to vector<2x32xf32>
    %48 = arith.addf %47, %46 : vector<2x32xf32>
    %49 = arith.divf %47, %48 : vector<2x32xf32>
    %50 = vector.extract_strided_slice %43 {offsets = [0, 32], sizes = [2, 32], strides = [1, 1]} : vector<2x128xf32> to vector<2x32xf32>
    %51 = arith.negf %50 : vector<2x32xf32>
    %52 = math.exp %51 : vector<2x32xf32>
    %cst_19 = arith.constant 1.000000e+00 : f32
    %53 = vector.broadcast %cst_19 : f32 to vector<2x32xf32>
    %54 = arith.addf %53, %52 : vector<2x32xf32>
    %55 = arith.divf %53, %54 : vector<2x32xf32>
    %56 = vector.extract_strided_slice %43 {offsets = [0, 64], sizes = [2, 32], strides = [1, 1]} : vector<2x128xf32> to vector<2x32xf32>
    %57 = math.tanh %56 : vector<2x32xf32>
    %58 = vector.extract_strided_slice %43 {offsets = [0, 96], sizes = [2, 32], strides = [1, 1]} : vector<2x128xf32> to vector<2x32xf32>
    %59 = arith.negf %58 : vector<2x32xf32>
    %60 = math.exp %59 : vector<2x32xf32>
    %cst_20 = arith.constant 1.000000e+00 : f32
    %61 = vector.broadcast %cst_20 : f32 to vector<2x32xf32>
    %62 = arith.addf %61, %60 : vector<2x32xf32>
    %63 = arith.divf %61, %62 : vector<2x32xf32>
    %64 = arith.mulf %55, %37 : vector<2x32xf32>
    %65 = arith.mulf %49, %57 : vector<2x32xf32>
    %66 = arith.addf %64, %65 : vector<2x32xf32>
    %67 = math.tanh %66 : vector<2x32xf32>
    %68 = arith.mulf %63, %67 : vector<2x32xf32>
    %69 = tpu.concatenate %39, %10 in 1 : vector<2x32xf32>, vector<2x32xf32> -> vector<2x64xf32>
    %70 = arith.truncf %69 : vector<2x64xf32> to vector<2x64xbf16>
    %cst_21 = arith.constant dense<0.000000e+00> : vector<2x128xf32>
    %71 = tpu.matmul %70, %3, %cst_21 {dimension_numbers = #tpu.dot_dimension_numbers<[1], [0], [0], [1], [0, 0, 1, 1], [], []>} : vector<2x64xbf16>, vector<64x128xbf16>, vector<2x128xf32> -> vector<2x128xf32>
    %72 = vector.broadcast %4 : vector<1x128xf32> to vector<2x128xf32>
    %73 = arith.addf %71, %72 : vector<2x128xf32>
    %74 = vector.extract_strided_slice %73 {offsets = [0, 0], sizes = [2, 32], strides = [1, 1]} : vector<2x128xf32> to vector<2x32xf32>
    %75 = arith.negf %74 : vector<2x32xf32>
    %76 = math.exp %75 : vector<2x32xf32>
    %cst_22 = arith.constant 1.000000e+00 : f32
    %77 = vector.broadcast %cst_22 : f32 to vector<2x32xf32>
    %78 = arith.addf %77, %76 : vector<2x32xf32>
    %79 = arith.divf %77, %78 : vector<2x32xf32>
    %80 = vector.extract_strided_slice %73 {offsets = [0, 32], sizes = [2, 32], strides = [1, 1]} : vector<2x128xf32> to vector<2x32xf32>
    %81 = arith.negf %80 : vector<2x32xf32>
    %82 = math.exp %81 : vector<2x32xf32>
    %cst_23 = arith.constant 1.000000e+00 : f32
    %83 = vector.broadcast %cst_23 : f32 to vector<2x32xf32>
    %84 = arith.addf %83, %82 : vector<2x32xf32>
    %85 = arith.divf %83, %84 : vector<2x32xf32>
    %86 = vector.extract_strided_slice %73 {offsets = [0, 64], sizes = [2, 32], strides = [1, 1]} : vector<2x128xf32> to vector<2x32xf32>
    %87 = math.tanh %86 : vector<2x32xf32>
    %88 = vector.extract_strided_slice %73 {offsets = [0, 96], sizes = [2, 32], strides = [1, 1]} : vector<2x128xf32> to vector<2x32xf32>
    %89 = arith.negf %88 : vector<2x32xf32>
    %90 = math.exp %89 : vector<2x32xf32>
    %cst_24 = arith.constant 1.000000e+00 : f32
    %91 = vector.broadcast %cst_24 : f32 to vector<2x32xf32>
    %92 = arith.addf %91, %90 : vector<2x32xf32>
    %93 = arith.divf %91, %92 : vector<2x32xf32>
    %94 = arith.mulf %85, %10 : vector<2x32xf32>
    %95 = arith.mulf %79, %87 : vector<2x32xf32>
    %96 = arith.addf %94, %95 : vector<2x32xf32>
    %97 = math.tanh %96 : vector<2x32xf32>
    %98 = arith.mulf %93, %97 : vector<2x32xf32>
    %99 = vector.extract_strided_slice %9 {offsets = [4, 0], sizes = [2, 128], strides = [1, 1]} : vector<32x128xf32> to vector<2x128xf32>
    %100 = arith.truncf %68 : vector<2x32xf32> to vector<2x32xbf16>
    %cst_25 = arith.constant dense<0.000000e+00> : vector<2x128xf32>
    %101 = tpu.matmul %100, %1, %cst_25 {dimension_numbers = #tpu.dot_dimension_numbers<[1], [0], [0], [1], [0, 0, 1, 1], [], []>} : vector<2x32xbf16>, vector<32x128xbf16>, vector<2x128xf32> -> vector<2x128xf32>
    %102 = arith.addf %99, %101 : vector<2x128xf32>
    %103 = vector.extract_strided_slice %102 {offsets = [0, 0], sizes = [2, 32], strides = [1, 1]} : vector<2x128xf32> to vector<2x32xf32>
    %104 = arith.negf %103 : vector<2x32xf32>
    %105 = math.exp %104 : vector<2x32xf32>
    %cst_26 = arith.constant 1.000000e+00 : f32
    %106 = vector.broadcast %cst_26 : f32 to vector<2x32xf32>
    %107 = arith.addf %106, %105 : vector<2x32xf32>
    %108 = arith.divf %106, %107 : vector<2x32xf32>
    %109 = vector.extract_strided_slice %102 {offsets = [0, 32], sizes = [2, 32], strides = [1, 1]} : vector<2x128xf32> to vector<2x32xf32>
    %110 = arith.negf %109 : vector<2x32xf32>
    %111 = math.exp %110 : vector<2x32xf32>
    %cst_27 = arith.constant 1.000000e+00 : f32
    %112 = vector.broadcast %cst_27 : f32 to vector<2x32xf32>
    %113 = arith.addf %112, %111 : vector<2x32xf32>
    %114 = arith.divf %112, %113 : vector<2x32xf32>
    %115 = vector.extract_strided_slice %102 {offsets = [0, 64], sizes = [2, 32], strides = [1, 1]} : vector<2x128xf32> to vector<2x32xf32>
    %116 = math.tanh %115 : vector<2x32xf32>
    %117 = vector.extract_strided_slice %102 {offsets = [0, 96], sizes = [2, 32], strides = [1, 1]} : vector<2x128xf32> to vector<2x32xf32>
    %118 = arith.negf %117 : vector<2x32xf32>
    %119 = math.exp %118 : vector<2x32xf32>
    %cst_28 = arith.constant 1.000000e+00 : f32
    %120 = vector.broadcast %cst_28 : f32 to vector<2x32xf32>
    %121 = arith.addf %120, %119 : vector<2x32xf32>
    %122 = arith.divf %120, %121 : vector<2x32xf32>
    %123 = arith.mulf %114, %66 : vector<2x32xf32>
    %124 = arith.mulf %108, %116 : vector<2x32xf32>
    %125 = arith.addf %123, %124 : vector<2x32xf32>
    %126 = math.tanh %125 : vector<2x32xf32>
    %127 = arith.mulf %122, %126 : vector<2x32xf32>
    %128 = tpu.concatenate %68, %98 in 1 : vector<2x32xf32>, vector<2x32xf32> -> vector<2x64xf32>
    %129 = arith.truncf %128 : vector<2x64xf32> to vector<2x64xbf16>
    %cst_29 = arith.constant dense<0.000000e+00> : vector<2x128xf32>
    %130 = tpu.matmul %129, %3, %cst_29 {dimension_numbers = #tpu.dot_dimension_numbers<[1], [0], [0], [1], [0, 0, 1, 1], [], []>} : vector<2x64xbf16>, vector<64x128xbf16>, vector<2x128xf32> -> vector<2x128xf32>
    %131 = vector.broadcast %4 : vector<1x128xf32> to vector<2x128xf32>
    %132 = arith.addf %130, %131 : vector<2x128xf32>
    %133 = vector.extract_strided_slice %132 {offsets = [0, 0], sizes = [2, 32], strides = [1, 1]} : vector<2x128xf32> to vector<2x32xf32>
    %134 = arith.negf %133 : vector<2x32xf32>
    %135 = math.exp %134 : vector<2x32xf32>
    %cst_30 = arith.constant 1.000000e+00 : f32
    %136 = vector.broadcast %cst_30 : f32 to vector<2x32xf32>
    %137 = arith.addf %136, %135 : vector<2x32xf32>
    %138 = arith.divf %136, %137 : vector<2x32xf32>
    %139 = vector.extract_strided_slice %132 {offsets = [0, 32], sizes = [2, 32], strides = [1, 1]} : vector<2x128xf32> to vector<2x32xf32>
    %140 = arith.negf %139 : vector<2x32xf32>
    %141 = math.exp %140 : vector<2x32xf32>
    %cst_31 = arith.constant 1.000000e+00 : f32
    %142 = vector.broadcast %cst_31 : f32 to vector<2x32xf32>
    %143 = arith.addf %142, %141 : vector<2x32xf32>
    %144 = arith.divf %142, %143 : vector<2x32xf32>
    %145 = vector.extract_strided_slice %132 {offsets = [0, 64], sizes = [2, 32], strides = [1, 1]} : vector<2x128xf32> to vector<2x32xf32>
    %146 = math.tanh %145 : vector<2x32xf32>
    %147 = vector.extract_strided_slice %132 {offsets = [0, 96], sizes = [2, 32], strides = [1, 1]} : vector<2x128xf32> to vector<2x32xf32>
    %148 = arith.negf %147 : vector<2x32xf32>
    %149 = math.exp %148 : vector<2x32xf32>
    %cst_32 = arith.constant 1.000000e+00 : f32
    %150 = vector.broadcast %cst_32 : f32 to vector<2x32xf32>
    %151 = arith.addf %150, %149 : vector<2x32xf32>
    %152 = arith.divf %150, %151 : vector<2x32xf32>
    %153 = arith.mulf %144, %96 : vector<2x32xf32>
    %154 = arith.mulf %138, %146 : vector<2x32xf32>
    %155 = arith.addf %153, %154 : vector<2x32xf32>
    %156 = math.tanh %155 : vector<2x32xf32>
    %157 = arith.mulf %152, %156 : vector<2x32xf32>
    %158 = vector.extract_strided_slice %9 {offsets = [6, 0], sizes = [2, 128], strides = [1, 1]} : vector<32x128xf32> to vector<2x128xf32>
    %159 = arith.truncf %127 : vector<2x32xf32> to vector<2x32xbf16>
    %cst_33 = arith.constant dense<0.000000e+00> : vector<2x128xf32>
    %160 = tpu.matmul %159, %1, %cst_33 {dimension_numbers = #tpu.dot_dimension_numbers<[1], [0], [0], [1], [0, 0, 1, 1], [], []>} : vector<2x32xbf16>, vector<32x128xbf16>, vector<2x128xf32> -> vector<2x128xf32>
    %161 = arith.addf %158, %160 : vector<2x128xf32>
    %162 = vector.extract_strided_slice %161 {offsets = [0, 0], sizes = [2, 32], strides = [1, 1]} : vector<2x128xf32> to vector<2x32xf32>
    %163 = arith.negf %162 : vector<2x32xf32>
    %164 = math.exp %163 : vector<2x32xf32>
    %cst_34 = arith.constant 1.000000e+00 : f32
    %165 = vector.broadcast %cst_34 : f32 to vector<2x32xf32>
    %166 = arith.addf %165, %164 : vector<2x32xf32>
    %167 = arith.divf %165, %166 : vector<2x32xf32>
    %168 = vector.extract_strided_slice %161 {offsets = [0, 32], sizes = [2, 32], strides = [1, 1]} : vector<2x128xf32> to vector<2x32xf32>
    %169 = arith.negf %168 : vector<2x32xf32>
    %170 = math.exp %169 : vector<2x32xf32>
    %cst_35 = arith.constant 1.000000e+00 : f32
    %171 = vector.broadcast %cst_35 : f32 to vector<2x32xf32>
    %172 = arith.addf %171, %170 : vector<2x32xf32>
    %173 = arith.divf %171, %172 : vector<2x32xf32>
    %174 = vector.extract_strided_slice %161 {offsets = [0, 64], sizes = [2, 32], strides = [1, 1]} : vector<2x128xf32> to vector<2x32xf32>
    %175 = math.tanh %174 : vector<2x32xf32>
    %176 = vector.extract_strided_slice %161 {offsets = [0, 96], sizes = [2, 32], strides = [1, 1]} : vector<2x128xf32> to vector<2x32xf32>
    %177 = arith.negf %176 : vector<2x32xf32>
    %178 = math.exp %177 : vector<2x32xf32>
    %cst_36 = arith.constant 1.000000e+00 : f32
    %179 = vector.broadcast %cst_36 : f32 to vector<2x32xf32>
    %180 = arith.addf %179, %178 : vector<2x32xf32>
    %181 = arith.divf %179, %180 : vector<2x32xf32>
    %182 = arith.mulf %173, %125 : vector<2x32xf32>
    %183 = arith.mulf %167, %175 : vector<2x32xf32>
    %184 = arith.addf %182, %183 : vector<2x32xf32>
    %185 = math.tanh %184 : vector<2x32xf32>
    %186 = arith.mulf %181, %185 : vector<2x32xf32>
    %187 = tpu.concatenate %127, %157 in 1 : vector<2x32xf32>, vector<2x32xf32> -> vector<2x64xf32>
    %188 = arith.truncf %187 : vector<2x64xf32> to vector<2x64xbf16>
    %cst_37 = arith.constant dense<0.000000e+00> : vector<2x128xf32>
    %189 = tpu.matmul %188, %3, %cst_37 {dimension_numbers = #tpu.dot_dimension_numbers<[1], [0], [0], [1], [0, 0, 1, 1], [], []>} : vector<2x64xbf16>, vector<64x128xbf16>, vector<2x128xf32> -> vector<2x128xf32>
    %190 = vector.broadcast %4 : vector<1x128xf32> to vector<2x128xf32>
    %191 = arith.addf %189, %190 : vector<2x128xf32>
    %192 = vector.extract_strided_slice %191 {offsets = [0, 0], sizes = [2, 32], strides = [1, 1]} : vector<2x128xf32> to vector<2x32xf32>
    %193 = arith.negf %192 : vector<2x32xf32>
    %194 = math.exp %193 : vector<2x32xf32>
    %cst_38 = arith.constant 1.000000e+00 : f32
    %195 = vector.broadcast %cst_38 : f32 to vector<2x32xf32>
    %196 = arith.addf %195, %194 : vector<2x32xf32>
    %197 = arith.divf %195, %196 : vector<2x32xf32>
    %198 = vector.extract_strided_slice %191 {offsets = [0, 32], sizes = [2, 32], strides = [1, 1]} : vector<2x128xf32> to vector<2x32xf32>
    %199 = arith.negf %198 : vector<2x32xf32>
    %200 = math.exp %199 : vector<2x32xf32>
    %cst_39 = arith.constant 1.000000e+00 : f32
    %201 = vector.broadcast %cst_39 : f32 to vector<2x32xf32>
    %202 = arith.addf %201, %200 : vector<2x32xf32>
    %203 = arith.divf %201, %202 : vector<2x32xf32>
    %204 = vector.extract_strided_slice %191 {offsets = [0, 64], sizes = [2, 32], strides = [1, 1]} : vector<2x128xf32> to vector<2x32xf32>
    %205 = math.tanh %204 : vector<2x32xf32>
    %206 = vector.extract_strided_slice %191 {offsets = [0, 96], sizes = [2, 32], strides = [1, 1]} : vector<2x128xf32> to vector<2x32xf32>
    %207 = arith.negf %206 : vector<2x32xf32>
    %208 = math.exp %207 : vector<2x32xf32>
    %cst_40 = arith.constant 1.000000e+00 : f32
    %209 = vector.broadcast %cst_40 : f32 to vector<2x32xf32>
    %210 = arith.addf %209, %208 : vector<2x32xf32>
    %211 = arith.divf %209, %210 : vector<2x32xf32>
    %212 = arith.mulf %203, %155 : vector<2x32xf32>
    %213 = arith.mulf %197, %205 : vector<2x32xf32>
    %214 = arith.addf %212, %213 : vector<2x32xf32>
    %215 = math.tanh %214 : vector<2x32xf32>
    %216 = arith.mulf %211, %215 : vector<2x32xf32>
    %217 = vector.extract_strided_slice %9 {offsets = [8, 0], sizes = [2, 128], strides = [1, 1]} : vector<32x128xf32> to vector<2x128xf32>
    %218 = arith.truncf %186 : vector<2x32xf32> to vector<2x32xbf16>
    %cst_41 = arith.constant dense<0.000000e+00> : vector<2x128xf32>
    %219 = tpu.matmul %218, %1, %cst_41 {dimension_numbers = #tpu.dot_dimension_numbers<[1], [0], [0], [1], [0, 0, 1, 1], [], []>} : vector<2x32xbf16>, vector<32x128xbf16>, vector<2x128xf32> -> vector<2x128xf32>
    %220 = arith.addf %217, %219 : vector<2x128xf32>
    %221 = vector.extract_strided_slice %220 {offsets = [0, 0], sizes = [2, 32], strides = [1, 1]} : vector<2x128xf32> to vector<2x32xf32>
    %222 = arith.negf %221 : vector<2x32xf32>
    %223 = math.exp %222 : vector<2x32xf32>
    %cst_42 = arith.constant 1.000000e+00 : f32
    %224 = vector.broadcast %cst_42 : f32 to vector<2x32xf32>
    %225 = arith.addf %224, %223 : vector<2x32xf32>
    %226 = arith.divf %224, %225 : vector<2x32xf32>
    %227 = vector.extract_strided_slice %220 {offsets = [0, 32], sizes = [2, 32], strides = [1, 1]} : vector<2x128xf32> to vector<2x32xf32>
    %228 = arith.negf %227 : vector<2x32xf32>
    %229 = math.exp %228 : vector<2x32xf32>
    %cst_43 = arith.constant 1.000000e+00 : f32
    %230 = vector.broadcast %cst_43 : f32 to vector<2x32xf32>
    %231 = arith.addf %230, %229 : vector<2x32xf32>
    %232 = arith.divf %230, %231 : vector<2x32xf32>
    %233 = vector.extract_strided_slice %220 {offsets = [0, 64], sizes = [2, 32], strides = [1, 1]} : vector<2x128xf32> to vector<2x32xf32>
    %234 = math.tanh %233 : vector<2x32xf32>
    %235 = vector.extract_strided_slice %220 {offsets = [0, 96], sizes = [2, 32], strides = [1, 1]} : vector<2x128xf32> to vector<2x32xf32>
    %236 = arith.negf %235 : vector<2x32xf32>
    %237 = math.exp %236 : vector<2x32xf32>
    %cst_44 = arith.constant 1.000000e+00 : f32
    %238 = vector.broadcast %cst_44 : f32 to vector<2x32xf32>
    %239 = arith.addf %238, %237 : vector<2x32xf32>
    %240 = arith.divf %238, %239 : vector<2x32xf32>
    %241 = arith.mulf %232, %184 : vector<2x32xf32>
    %242 = arith.mulf %226, %234 : vector<2x32xf32>
    %243 = arith.addf %241, %242 : vector<2x32xf32>
    %244 = math.tanh %243 : vector<2x32xf32>
    %245 = arith.mulf %240, %244 : vector<2x32xf32>
    %246 = tpu.concatenate %186, %216 in 1 : vector<2x32xf32>, vector<2x32xf32> -> vector<2x64xf32>
    %247 = arith.truncf %246 : vector<2x64xf32> to vector<2x64xbf16>
    %cst_45 = arith.constant dense<0.000000e+00> : vector<2x128xf32>
    %248 = tpu.matmul %247, %3, %cst_45 {dimension_numbers = #tpu.dot_dimension_numbers<[1], [0], [0], [1], [0, 0, 1, 1], [], []>} : vector<2x64xbf16>, vector<64x128xbf16>, vector<2x128xf32> -> vector<2x128xf32>
    %249 = vector.broadcast %4 : vector<1x128xf32> to vector<2x128xf32>
    %250 = arith.addf %248, %249 : vector<2x128xf32>
    %251 = vector.extract_strided_slice %250 {offsets = [0, 0], sizes = [2, 32], strides = [1, 1]} : vector<2x128xf32> to vector<2x32xf32>
    %252 = arith.negf %251 : vector<2x32xf32>
    %253 = math.exp %252 : vector<2x32xf32>
    %cst_46 = arith.constant 1.000000e+00 : f32
    %254 = vector.broadcast %cst_46 : f32 to vector<2x32xf32>
    %255 = arith.addf %254, %253 : vector<2x32xf32>
    %256 = arith.divf %254, %255 : vector<2x32xf32>
    %257 = vector.extract_strided_slice %250 {offsets = [0, 32], sizes = [2, 32], strides = [1, 1]} : vector<2x128xf32> to vector<2x32xf32>
    %258 = arith.negf %257 : vector<2x32xf32>
    %259 = math.exp %258 : vector<2x32xf32>
    %cst_47 = arith.constant 1.000000e+00 : f32
    %260 = vector.broadcast %cst_47 : f32 to vector<2x32xf32>
    %261 = arith.addf %260, %259 : vector<2x32xf32>
    %262 = arith.divf %260, %261 : vector<2x32xf32>
    %263 = vector.extract_strided_slice %250 {offsets = [0, 64], sizes = [2, 32], strides = [1, 1]} : vector<2x128xf32> to vector<2x32xf32>
    %264 = math.tanh %263 : vector<2x32xf32>
    %265 = vector.extract_strided_slice %250 {offsets = [0, 96], sizes = [2, 32], strides = [1, 1]} : vector<2x128xf32> to vector<2x32xf32>
    %266 = arith.negf %265 : vector<2x32xf32>
    %267 = math.exp %266 : vector<2x32xf32>
    %cst_48 = arith.constant 1.000000e+00 : f32
    %268 = vector.broadcast %cst_48 : f32 to vector<2x32xf32>
    %269 = arith.addf %268, %267 : vector<2x32xf32>
    %270 = arith.divf %268, %269 : vector<2x32xf32>
    %271 = arith.mulf %262, %214 : vector<2x32xf32>
    %272 = arith.mulf %256, %264 : vector<2x32xf32>
    %273 = arith.addf %271, %272 : vector<2x32xf32>
    %274 = math.tanh %273 : vector<2x32xf32>
    %275 = arith.mulf %270, %274 : vector<2x32xf32>
    %276 = vector.extract_strided_slice %9 {offsets = [10, 0], sizes = [2, 128], strides = [1, 1]} : vector<32x128xf32> to vector<2x128xf32>
    %277 = arith.truncf %245 : vector<2x32xf32> to vector<2x32xbf16>
    %cst_49 = arith.constant dense<0.000000e+00> : vector<2x128xf32>
    %278 = tpu.matmul %277, %1, %cst_49 {dimension_numbers = #tpu.dot_dimension_numbers<[1], [0], [0], [1], [0, 0, 1, 1], [], []>} : vector<2x32xbf16>, vector<32x128xbf16>, vector<2x128xf32> -> vector<2x128xf32>
    %279 = arith.addf %276, %278 : vector<2x128xf32>
    %280 = vector.extract_strided_slice %279 {offsets = [0, 0], sizes = [2, 32], strides = [1, 1]} : vector<2x128xf32> to vector<2x32xf32>
    %281 = arith.negf %280 : vector<2x32xf32>
    %282 = math.exp %281 : vector<2x32xf32>
    %cst_50 = arith.constant 1.000000e+00 : f32
    %283 = vector.broadcast %cst_50 : f32 to vector<2x32xf32>
    %284 = arith.addf %283, %282 : vector<2x32xf32>
    %285 = arith.divf %283, %284 : vector<2x32xf32>
    %286 = vector.extract_strided_slice %279 {offsets = [0, 32], sizes = [2, 32], strides = [1, 1]} : vector<2x128xf32> to vector<2x32xf32>
    %287 = arith.negf %286 : vector<2x32xf32>
    %288 = math.exp %287 : vector<2x32xf32>
    %cst_51 = arith.constant 1.000000e+00 : f32
    %289 = vector.broadcast %cst_51 : f32 to vector<2x32xf32>
    %290 = arith.addf %289, %288 : vector<2x32xf32>
    %291 = arith.divf %289, %290 : vector<2x32xf32>
    %292 = vector.extract_strided_slice %279 {offsets = [0, 64], sizes = [2, 32], strides = [1, 1]} : vector<2x128xf32> to vector<2x32xf32>
    %293 = math.tanh %292 : vector<2x32xf32>
    %294 = vector.extract_strided_slice %279 {offsets = [0, 96], sizes = [2, 32], strides = [1, 1]} : vector<2x128xf32> to vector<2x32xf32>
    %295 = arith.negf %294 : vector<2x32xf32>
    %296 = math.exp %295 : vector<2x32xf32>
    %cst_52 = arith.constant 1.000000e+00 : f32
    %297 = vector.broadcast %cst_52 : f32 to vector<2x32xf32>
    %298 = arith.addf %297, %296 : vector<2x32xf32>
    %299 = arith.divf %297, %298 : vector<2x32xf32>
    %300 = arith.mulf %291, %243 : vector<2x32xf32>
    %301 = arith.mulf %285, %293 : vector<2x32xf32>
    %302 = arith.addf %300, %301 : vector<2x32xf32>
    %303 = math.tanh %302 : vector<2x32xf32>
    %304 = arith.mulf %299, %303 : vector<2x32xf32>
    %305 = tpu.concatenate %245, %275 in 1 : vector<2x32xf32>, vector<2x32xf32> -> vector<2x64xf32>
    %306 = arith.truncf %305 : vector<2x64xf32> to vector<2x64xbf16>
    %cst_53 = arith.constant dense<0.000000e+00> : vector<2x128xf32>
    %307 = tpu.matmul %306, %3, %cst_53 {dimension_numbers = #tpu.dot_dimension_numbers<[1], [0], [0], [1], [0, 0, 1, 1], [], []>} : vector<2x64xbf16>, vector<64x128xbf16>, vector<2x128xf32> -> vector<2x128xf32>
    %308 = vector.broadcast %4 : vector<1x128xf32> to vector<2x128xf32>
    %309 = arith.addf %307, %308 : vector<2x128xf32>
    %310 = vector.extract_strided_slice %309 {offsets = [0, 0], sizes = [2, 32], strides = [1, 1]} : vector<2x128xf32> to vector<2x32xf32>
    %311 = arith.negf %310 : vector<2x32xf32>
    %312 = math.exp %311 : vector<2x32xf32>
    %cst_54 = arith.constant 1.000000e+00 : f32
    %313 = vector.broadcast %cst_54 : f32 to vector<2x32xf32>
    %314 = arith.addf %313, %312 : vector<2x32xf32>
    %315 = arith.divf %313, %314 : vector<2x32xf32>
    %316 = vector.extract_strided_slice %309 {offsets = [0, 32], sizes = [2, 32], strides = [1, 1]} : vector<2x128xf32> to vector<2x32xf32>
    %317 = arith.negf %316 : vector<2x32xf32>
    %318 = math.exp %317 : vector<2x32xf32>
    %cst_55 = arith.constant 1.000000e+00 : f32
    %319 = vector.broadcast %cst_55 : f32 to vector<2x32xf32>
    %320 = arith.addf %319, %318 : vector<2x32xf32>
    %321 = arith.divf %319, %320 : vector<2x32xf32>
    %322 = vector.extract_strided_slice %309 {offsets = [0, 64], sizes = [2, 32], strides = [1, 1]} : vector<2x128xf32> to vector<2x32xf32>
    %323 = math.tanh %322 : vector<2x32xf32>
    %324 = vector.extract_strided_slice %309 {offsets = [0, 96], sizes = [2, 32], strides = [1, 1]} : vector<2x128xf32> to vector<2x32xf32>
    %325 = arith.negf %324 : vector<2x32xf32>
    %326 = math.exp %325 : vector<2x32xf32>
    %cst_56 = arith.constant 1.000000e+00 : f32
    %327 = vector.broadcast %cst_56 : f32 to vector<2x32xf32>
    %328 = arith.addf %327, %326 : vector<2x32xf32>
    %329 = arith.divf %327, %328 : vector<2x32xf32>
    %330 = arith.mulf %321, %273 : vector<2x32xf32>
    %331 = arith.mulf %315, %323 : vector<2x32xf32>
    %332 = arith.addf %330, %331 : vector<2x32xf32>
    %333 = math.tanh %332 : vector<2x32xf32>
    %334 = arith.mulf %329, %333 : vector<2x32xf32>
    %335 = vector.extract_strided_slice %9 {offsets = [12, 0], sizes = [2, 128], strides = [1, 1]} : vector<32x128xf32> to vector<2x128xf32>
    %336 = arith.truncf %304 : vector<2x32xf32> to vector<2x32xbf16>
    %cst_57 = arith.constant dense<0.000000e+00> : vector<2x128xf32>
    %337 = tpu.matmul %336, %1, %cst_57 {dimension_numbers = #tpu.dot_dimension_numbers<[1], [0], [0], [1], [0, 0, 1, 1], [], []>} : vector<2x32xbf16>, vector<32x128xbf16>, vector<2x128xf32> -> vector<2x128xf32>
    %338 = arith.addf %335, %337 : vector<2x128xf32>
    %339 = vector.extract_strided_slice %338 {offsets = [0, 0], sizes = [2, 32], strides = [1, 1]} : vector<2x128xf32> to vector<2x32xf32>
    %340 = arith.negf %339 : vector<2x32xf32>
    %341 = math.exp %340 : vector<2x32xf32>
    %cst_58 = arith.constant 1.000000e+00 : f32
    %342 = vector.broadcast %cst_58 : f32 to vector<2x32xf32>
    %343 = arith.addf %342, %341 : vector<2x32xf32>
    %344 = arith.divf %342, %343 : vector<2x32xf32>
    %345 = vector.extract_strided_slice %338 {offsets = [0, 32], sizes = [2, 32], strides = [1, 1]} : vector<2x128xf32> to vector<2x32xf32>
    %346 = arith.negf %345 : vector<2x32xf32>
    %347 = math.exp %346 : vector<2x32xf32>
    %cst_59 = arith.constant 1.000000e+00 : f32
    %348 = vector.broadcast %cst_59 : f32 to vector<2x32xf32>
    %349 = arith.addf %348, %347 : vector<2x32xf32>
    %350 = arith.divf %348, %349 : vector<2x32xf32>
    %351 = vector.extract_strided_slice %338 {offsets = [0, 64], sizes = [2, 32], strides = [1, 1]} : vector<2x128xf32> to vector<2x32xf32>
    %352 = math.tanh %351 : vector<2x32xf32>
    %353 = vector.extract_strided_slice %338 {offsets = [0, 96], sizes = [2, 32], strides = [1, 1]} : vector<2x128xf32> to vector<2x32xf32>
    %354 = arith.negf %353 : vector<2x32xf32>
    %355 = math.exp %354 : vector<2x32xf32>
    %cst_60 = arith.constant 1.000000e+00 : f32
    %356 = vector.broadcast %cst_60 : f32 to vector<2x32xf32>
    %357 = arith.addf %356, %355 : vector<2x32xf32>
    %358 = arith.divf %356, %357 : vector<2x32xf32>
    %359 = arith.mulf %350, %302 : vector<2x32xf32>
    %360 = arith.mulf %344, %352 : vector<2x32xf32>
    %361 = arith.addf %359, %360 : vector<2x32xf32>
    %362 = math.tanh %361 : vector<2x32xf32>
    %363 = arith.mulf %358, %362 : vector<2x32xf32>
    %364 = tpu.concatenate %304, %334 in 1 : vector<2x32xf32>, vector<2x32xf32> -> vector<2x64xf32>
    %365 = arith.truncf %364 : vector<2x64xf32> to vector<2x64xbf16>
    %cst_61 = arith.constant dense<0.000000e+00> : vector<2x128xf32>
    %366 = tpu.matmul %365, %3, %cst_61 {dimension_numbers = #tpu.dot_dimension_numbers<[1], [0], [0], [1], [0, 0, 1, 1], [], []>} : vector<2x64xbf16>, vector<64x128xbf16>, vector<2x128xf32> -> vector<2x128xf32>
    %367 = vector.broadcast %4 : vector<1x128xf32> to vector<2x128xf32>
    %368 = arith.addf %366, %367 : vector<2x128xf32>
    %369 = vector.extract_strided_slice %368 {offsets = [0, 0], sizes = [2, 32], strides = [1, 1]} : vector<2x128xf32> to vector<2x32xf32>
    %370 = arith.negf %369 : vector<2x32xf32>
    %371 = math.exp %370 : vector<2x32xf32>
    %cst_62 = arith.constant 1.000000e+00 : f32
    %372 = vector.broadcast %cst_62 : f32 to vector<2x32xf32>
    %373 = arith.addf %372, %371 : vector<2x32xf32>
    %374 = arith.divf %372, %373 : vector<2x32xf32>
    %375 = vector.extract_strided_slice %368 {offsets = [0, 32], sizes = [2, 32], strides = [1, 1]} : vector<2x128xf32> to vector<2x32xf32>
    %376 = arith.negf %375 : vector<2x32xf32>
    %377 = math.exp %376 : vector<2x32xf32>
    %cst_63 = arith.constant 1.000000e+00 : f32
    %378 = vector.broadcast %cst_63 : f32 to vector<2x32xf32>
    %379 = arith.addf %378, %377 : vector<2x32xf32>
    %380 = arith.divf %378, %379 : vector<2x32xf32>
    %381 = vector.extract_strided_slice %368 {offsets = [0, 64], sizes = [2, 32], strides = [1, 1]} : vector<2x128xf32> to vector<2x32xf32>
    %382 = math.tanh %381 : vector<2x32xf32>
    %383 = vector.extract_strided_slice %368 {offsets = [0, 96], sizes = [2, 32], strides = [1, 1]} : vector<2x128xf32> to vector<2x32xf32>
    %384 = arith.negf %383 : vector<2x32xf32>
    %385 = math.exp %384 : vector<2x32xf32>
    %cst_64 = arith.constant 1.000000e+00 : f32
    %386 = vector.broadcast %cst_64 : f32 to vector<2x32xf32>
    %387 = arith.addf %386, %385 : vector<2x32xf32>
    %388 = arith.divf %386, %387 : vector<2x32xf32>
    %389 = arith.mulf %380, %332 : vector<2x32xf32>
    %390 = arith.mulf %374, %382 : vector<2x32xf32>
    %391 = arith.addf %389, %390 : vector<2x32xf32>
    %392 = math.tanh %391 : vector<2x32xf32>
    %393 = arith.mulf %388, %392 : vector<2x32xf32>
    %394 = vector.extract_strided_slice %9 {offsets = [14, 0], sizes = [2, 128], strides = [1, 1]} : vector<32x128xf32> to vector<2x128xf32>
    %395 = arith.truncf %363 : vector<2x32xf32> to vector<2x32xbf16>
    %cst_65 = arith.constant dense<0.000000e+00> : vector<2x128xf32>
    %396 = tpu.matmul %395, %1, %cst_65 {dimension_numbers = #tpu.dot_dimension_numbers<[1], [0], [0], [1], [0, 0, 1, 1], [], []>} : vector<2x32xbf16>, vector<32x128xbf16>, vector<2x128xf32> -> vector<2x128xf32>
    %397 = arith.addf %394, %396 : vector<2x128xf32>
    %398 = vector.extract_strided_slice %397 {offsets = [0, 0], sizes = [2, 32], strides = [1, 1]} : vector<2x128xf32> to vector<2x32xf32>
    %399 = arith.negf %398 : vector<2x32xf32>
    %400 = math.exp %399 : vector<2x32xf32>
    %cst_66 = arith.constant 1.000000e+00 : f32
    %401 = vector.broadcast %cst_66 : f32 to vector<2x32xf32>
    %402 = arith.addf %401, %400 : vector<2x32xf32>
    %403 = arith.divf %401, %402 : vector<2x32xf32>
    %404 = vector.extract_strided_slice %397 {offsets = [0, 32], sizes = [2, 32], strides = [1, 1]} : vector<2x128xf32> to vector<2x32xf32>
    %405 = arith.negf %404 : vector<2x32xf32>
    %406 = math.exp %405 : vector<2x32xf32>
    %cst_67 = arith.constant 1.000000e+00 : f32
    %407 = vector.broadcast %cst_67 : f32 to vector<2x32xf32>
    %408 = arith.addf %407, %406 : vector<2x32xf32>
    %409 = arith.divf %407, %408 : vector<2x32xf32>
    %410 = vector.extract_strided_slice %397 {offsets = [0, 64], sizes = [2, 32], strides = [1, 1]} : vector<2x128xf32> to vector<2x32xf32>
    %411 = math.tanh %410 : vector<2x32xf32>
    %412 = vector.extract_strided_slice %397 {offsets = [0, 96], sizes = [2, 32], strides = [1, 1]} : vector<2x128xf32> to vector<2x32xf32>
    %413 = arith.negf %412 : vector<2x32xf32>
    %414 = math.exp %413 : vector<2x32xf32>
    %cst_68 = arith.constant 1.000000e+00 : f32
    %415 = vector.broadcast %cst_68 : f32 to vector<2x32xf32>
    %416 = arith.addf %415, %414 : vector<2x32xf32>
    %417 = arith.divf %415, %416 : vector<2x32xf32>
    %418 = arith.mulf %409, %361 : vector<2x32xf32>
    %419 = arith.mulf %403, %411 : vector<2x32xf32>
    %420 = arith.addf %418, %419 : vector<2x32xf32>
    %421 = math.tanh %420 : vector<2x32xf32>
    %422 = arith.mulf %417, %421 : vector<2x32xf32>
    %423 = tpu.concatenate %363, %393 in 1 : vector<2x32xf32>, vector<2x32xf32> -> vector<2x64xf32>
    %424 = arith.truncf %423 : vector<2x64xf32> to vector<2x64xbf16>
    %cst_69 = arith.constant dense<0.000000e+00> : vector<2x128xf32>
    %425 = tpu.matmul %424, %3, %cst_69 {dimension_numbers = #tpu.dot_dimension_numbers<[1], [0], [0], [1], [0, 0, 1, 1], [], []>} : vector<2x64xbf16>, vector<64x128xbf16>, vector<2x128xf32> -> vector<2x128xf32>
    %426 = vector.broadcast %4 : vector<1x128xf32> to vector<2x128xf32>
    %427 = arith.addf %425, %426 : vector<2x128xf32>
    %428 = vector.extract_strided_slice %427 {offsets = [0, 0], sizes = [2, 32], strides = [1, 1]} : vector<2x128xf32> to vector<2x32xf32>
    %429 = arith.negf %428 : vector<2x32xf32>
    %430 = math.exp %429 : vector<2x32xf32>
    %cst_70 = arith.constant 1.000000e+00 : f32
    %431 = vector.broadcast %cst_70 : f32 to vector<2x32xf32>
    %432 = arith.addf %431, %430 : vector<2x32xf32>
    %433 = arith.divf %431, %432 : vector<2x32xf32>
    %434 = vector.extract_strided_slice %427 {offsets = [0, 32], sizes = [2, 32], strides = [1, 1]} : vector<2x128xf32> to vector<2x32xf32>
    %435 = arith.negf %434 : vector<2x32xf32>
    %436 = math.exp %435 : vector<2x32xf32>
    %cst_71 = arith.constant 1.000000e+00 : f32
    %437 = vector.broadcast %cst_71 : f32 to vector<2x32xf32>
    %438 = arith.addf %437, %436 : vector<2x32xf32>
    %439 = arith.divf %437, %438 : vector<2x32xf32>
    %440 = vector.extract_strided_slice %427 {offsets = [0, 64], sizes = [2, 32], strides = [1, 1]} : vector<2x128xf32> to vector<2x32xf32>
    %441 = math.tanh %440 : vector<2x32xf32>
    %442 = vector.extract_strided_slice %427 {offsets = [0, 96], sizes = [2, 32], strides = [1, 1]} : vector<2x128xf32> to vector<2x32xf32>
    %443 = arith.negf %442 : vector<2x32xf32>
    %444 = math.exp %443 : vector<2x32xf32>
    %cst_72 = arith.constant 1.000000e+00 : f32
    %445 = vector.broadcast %cst_72 : f32 to vector<2x32xf32>
    %446 = arith.addf %445, %444 : vector<2x32xf32>
    %447 = arith.divf %445, %446 : vector<2x32xf32>
    %448 = arith.mulf %439, %391 : vector<2x32xf32>
    %449 = arith.mulf %433, %441 : vector<2x32xf32>
    %450 = arith.addf %448, %449 : vector<2x32xf32>
    %451 = math.tanh %450 : vector<2x32xf32>
    %452 = arith.mulf %447, %451 : vector<2x32xf32>
    %453 = vector.extract_strided_slice %9 {offsets = [16, 0], sizes = [2, 128], strides = [1, 1]} : vector<32x128xf32> to vector<2x128xf32>
    %454 = arith.truncf %422 : vector<2x32xf32> to vector<2x32xbf16>
    %cst_73 = arith.constant dense<0.000000e+00> : vector<2x128xf32>
    %455 = tpu.matmul %454, %1, %cst_73 {dimension_numbers = #tpu.dot_dimension_numbers<[1], [0], [0], [1], [0, 0, 1, 1], [], []>} : vector<2x32xbf16>, vector<32x128xbf16>, vector<2x128xf32> -> vector<2x128xf32>
    %456 = arith.addf %453, %455 : vector<2x128xf32>
    %457 = vector.extract_strided_slice %456 {offsets = [0, 0], sizes = [2, 32], strides = [1, 1]} : vector<2x128xf32> to vector<2x32xf32>
    %458 = arith.negf %457 : vector<2x32xf32>
    %459 = math.exp %458 : vector<2x32xf32>
    %cst_74 = arith.constant 1.000000e+00 : f32
    %460 = vector.broadcast %cst_74 : f32 to vector<2x32xf32>
    %461 = arith.addf %460, %459 : vector<2x32xf32>
    %462 = arith.divf %460, %461 : vector<2x32xf32>
    %463 = vector.extract_strided_slice %456 {offsets = [0, 32], sizes = [2, 32], strides = [1, 1]} : vector<2x128xf32> to vector<2x32xf32>
    %464 = arith.negf %463 : vector<2x32xf32>
    %465 = math.exp %464 : vector<2x32xf32>
    %cst_75 = arith.constant 1.000000e+00 : f32
    %466 = vector.broadcast %cst_75 : f32 to vector<2x32xf32>
    %467 = arith.addf %466, %465 : vector<2x32xf32>
    %468 = arith.divf %466, %467 : vector<2x32xf32>
    %469 = vector.extract_strided_slice %456 {offsets = [0, 64], sizes = [2, 32], strides = [1, 1]} : vector<2x128xf32> to vector<2x32xf32>
    %470 = math.tanh %469 : vector<2x32xf32>
    %471 = vector.extract_strided_slice %456 {offsets = [0, 96], sizes = [2, 32], strides = [1, 1]} : vector<2x128xf32> to vector<2x32xf32>
    %472 = arith.negf %471 : vector<2x32xf32>
    %473 = math.exp %472 : vector<2x32xf32>
    %cst_76 = arith.constant 1.000000e+00 : f32
    %474 = vector.broadcast %cst_76 : f32 to vector<2x32xf32>
    %475 = arith.addf %474, %473 : vector<2x32xf32>
    %476 = arith.divf %474, %475 : vector<2x32xf32>
    %477 = arith.mulf %468, %420 : vector<2x32xf32>
    %478 = arith.mulf %462, %470 : vector<2x32xf32>
    %479 = arith.addf %477, %478 : vector<2x32xf32>
    %480 = math.tanh %479 : vector<2x32xf32>
    %481 = arith.mulf %476, %480 : vector<2x32xf32>
    %482 = tpu.concatenate %422, %452 in 1 : vector<2x32xf32>, vector<2x32xf32> -> vector<2x64xf32>
    %483 = arith.truncf %482 : vector<2x64xf32> to vector<2x64xbf16>
    %cst_77 = arith.constant dense<0.000000e+00> : vector<2x128xf32>
    %484 = tpu.matmul %483, %3, %cst_77 {dimension_numbers = #tpu.dot_dimension_numbers<[1], [0], [0], [1], [0, 0, 1, 1], [], []>} : vector<2x64xbf16>, vector<64x128xbf16>, vector<2x128xf32> -> vector<2x128xf32>
    %485 = vector.broadcast %4 : vector<1x128xf32> to vector<2x128xf32>
    %486 = arith.addf %484, %485 : vector<2x128xf32>
    %487 = vector.extract_strided_slice %486 {offsets = [0, 0], sizes = [2, 32], strides = [1, 1]} : vector<2x128xf32> to vector<2x32xf32>
    %488 = arith.negf %487 : vector<2x32xf32>
    %489 = math.exp %488 : vector<2x32xf32>
    %cst_78 = arith.constant 1.000000e+00 : f32
    %490 = vector.broadcast %cst_78 : f32 to vector<2x32xf32>
    %491 = arith.addf %490, %489 : vector<2x32xf32>
    %492 = arith.divf %490, %491 : vector<2x32xf32>
    %493 = vector.extract_strided_slice %486 {offsets = [0, 32], sizes = [2, 32], strides = [1, 1]} : vector<2x128xf32> to vector<2x32xf32>
    %494 = arith.negf %493 : vector<2x32xf32>
    %495 = math.exp %494 : vector<2x32xf32>
    %cst_79 = arith.constant 1.000000e+00 : f32
    %496 = vector.broadcast %cst_79 : f32 to vector<2x32xf32>
    %497 = arith.addf %496, %495 : vector<2x32xf32>
    %498 = arith.divf %496, %497 : vector<2x32xf32>
    %499 = vector.extract_strided_slice %486 {offsets = [0, 64], sizes = [2, 32], strides = [1, 1]} : vector<2x128xf32> to vector<2x32xf32>
    %500 = math.tanh %499 : vector<2x32xf32>
    %501 = vector.extract_strided_slice %486 {offsets = [0, 96], sizes = [2, 32], strides = [1, 1]} : vector<2x128xf32> to vector<2x32xf32>
    %502 = arith.negf %501 : vector<2x32xf32>
    %503 = math.exp %502 : vector<2x32xf32>
    %cst_80 = arith.constant 1.000000e+00 : f32
    %504 = vector.broadcast %cst_80 : f32 to vector<2x32xf32>
    %505 = arith.addf %504, %503 : vector<2x32xf32>
    %506 = arith.divf %504, %505 : vector<2x32xf32>
    %507 = arith.mulf %498, %450 : vector<2x32xf32>
    %508 = arith.mulf %492, %500 : vector<2x32xf32>
    %509 = arith.addf %507, %508 : vector<2x32xf32>
    %510 = math.tanh %509 : vector<2x32xf32>
    %511 = arith.mulf %506, %510 : vector<2x32xf32>
    %512 = vector.extract_strided_slice %9 {offsets = [18, 0], sizes = [2, 128], strides = [1, 1]} : vector<32x128xf32> to vector<2x128xf32>
    %513 = arith.truncf %481 : vector<2x32xf32> to vector<2x32xbf16>
    %cst_81 = arith.constant dense<0.000000e+00> : vector<2x128xf32>
    %514 = tpu.matmul %513, %1, %cst_81 {dimension_numbers = #tpu.dot_dimension_numbers<[1], [0], [0], [1], [0, 0, 1, 1], [], []>} : vector<2x32xbf16>, vector<32x128xbf16>, vector<2x128xf32> -> vector<2x128xf32>
    %515 = arith.addf %512, %514 : vector<2x128xf32>
    %516 = vector.extract_strided_slice %515 {offsets = [0, 0], sizes = [2, 32], strides = [1, 1]} : vector<2x128xf32> to vector<2x32xf32>
    %517 = arith.negf %516 : vector<2x32xf32>
    %518 = math.exp %517 : vector<2x32xf32>
    %cst_82 = arith.constant 1.000000e+00 : f32
    %519 = vector.broadcast %cst_82 : f32 to vector<2x32xf32>
    %520 = arith.addf %519, %518 : vector<2x32xf32>
    %521 = arith.divf %519, %520 : vector<2x32xf32>
    %522 = vector.extract_strided_slice %515 {offsets = [0, 32], sizes = [2, 32], strides = [1, 1]} : vector<2x128xf32> to vector<2x32xf32>
    %523 = arith.negf %522 : vector<2x32xf32>
    %524 = math.exp %523 : vector<2x32xf32>
    %cst_83 = arith.constant 1.000000e+00 : f32
    %525 = vector.broadcast %cst_83 : f32 to vector<2x32xf32>
    %526 = arith.addf %525, %524 : vector<2x32xf32>
    %527 = arith.divf %525, %526 : vector<2x32xf32>
    %528 = vector.extract_strided_slice %515 {offsets = [0, 64], sizes = [2, 32], strides = [1, 1]} : vector<2x128xf32> to vector<2x32xf32>
    %529 = math.tanh %528 : vector<2x32xf32>
    %530 = vector.extract_strided_slice %515 {offsets = [0, 96], sizes = [2, 32], strides = [1, 1]} : vector<2x128xf32> to vector<2x32xf32>
    %531 = arith.negf %530 : vector<2x32xf32>
    %532 = math.exp %531 : vector<2x32xf32>
    %cst_84 = arith.constant 1.000000e+00 : f32
    %533 = vector.broadcast %cst_84 : f32 to vector<2x32xf32>
    %534 = arith.addf %533, %532 : vector<2x32xf32>
    %535 = arith.divf %533, %534 : vector<2x32xf32>
    %536 = arith.mulf %527, %479 : vector<2x32xf32>
    %537 = arith.mulf %521, %529 : vector<2x32xf32>
    %538 = arith.addf %536, %537 : vector<2x32xf32>
    %539 = math.tanh %538 : vector<2x32xf32>
    %540 = arith.mulf %535, %539 : vector<2x32xf32>
    %541 = tpu.concatenate %481, %511 in 1 : vector<2x32xf32>, vector<2x32xf32> -> vector<2x64xf32>
    %542 = arith.truncf %541 : vector<2x64xf32> to vector<2x64xbf16>
    %cst_85 = arith.constant dense<0.000000e+00> : vector<2x128xf32>
    %543 = tpu.matmul %542, %3, %cst_85 {dimension_numbers = #tpu.dot_dimension_numbers<[1], [0], [0], [1], [0, 0, 1, 1], [], []>} : vector<2x64xbf16>, vector<64x128xbf16>, vector<2x128xf32> -> vector<2x128xf32>
    %544 = vector.broadcast %4 : vector<1x128xf32> to vector<2x128xf32>
    %545 = arith.addf %543, %544 : vector<2x128xf32>
    %546 = vector.extract_strided_slice %545 {offsets = [0, 0], sizes = [2, 32], strides = [1, 1]} : vector<2x128xf32> to vector<2x32xf32>
    %547 = arith.negf %546 : vector<2x32xf32>
    %548 = math.exp %547 : vector<2x32xf32>
    %cst_86 = arith.constant 1.000000e+00 : f32
    %549 = vector.broadcast %cst_86 : f32 to vector<2x32xf32>
    %550 = arith.addf %549, %548 : vector<2x32xf32>
    %551 = arith.divf %549, %550 : vector<2x32xf32>
    %552 = vector.extract_strided_slice %545 {offsets = [0, 32], sizes = [2, 32], strides = [1, 1]} : vector<2x128xf32> to vector<2x32xf32>
    %553 = arith.negf %552 : vector<2x32xf32>
    %554 = math.exp %553 : vector<2x32xf32>
    %cst_87 = arith.constant 1.000000e+00 : f32
    %555 = vector.broadcast %cst_87 : f32 to vector<2x32xf32>
    %556 = arith.addf %555, %554 : vector<2x32xf32>
    %557 = arith.divf %555, %556 : vector<2x32xf32>
    %558 = vector.extract_strided_slice %545 {offsets = [0, 64], sizes = [2, 32], strides = [1, 1]} : vector<2x128xf32> to vector<2x32xf32>
    %559 = math.tanh %558 : vector<2x32xf32>
    %560 = vector.extract_strided_slice %545 {offsets = [0, 96], sizes = [2, 32], strides = [1, 1]} : vector<2x128xf32> to vector<2x32xf32>
    %561 = arith.negf %560 : vector<2x32xf32>
    %562 = math.exp %561 : vector<2x32xf32>
    %cst_88 = arith.constant 1.000000e+00 : f32
    %563 = vector.broadcast %cst_88 : f32 to vector<2x32xf32>
    %564 = arith.addf %563, %562 : vector<2x32xf32>
    %565 = arith.divf %563, %564 : vector<2x32xf32>
    %566 = arith.mulf %557, %509 : vector<2x32xf32>
    %567 = arith.mulf %551, %559 : vector<2x32xf32>
    %568 = arith.addf %566, %567 : vector<2x32xf32>
    %569 = math.tanh %568 : vector<2x32xf32>
    %570 = arith.mulf %565, %569 : vector<2x32xf32>
    %571 = vector.extract_strided_slice %9 {offsets = [20, 0], sizes = [2, 128], strides = [1, 1]} : vector<32x128xf32> to vector<2x128xf32>
    %572 = arith.truncf %540 : vector<2x32xf32> to vector<2x32xbf16>
    %cst_89 = arith.constant dense<0.000000e+00> : vector<2x128xf32>
    %573 = tpu.matmul %572, %1, %cst_89 {dimension_numbers = #tpu.dot_dimension_numbers<[1], [0], [0], [1], [0, 0, 1, 1], [], []>} : vector<2x32xbf16>, vector<32x128xbf16>, vector<2x128xf32> -> vector<2x128xf32>
    %574 = arith.addf %571, %573 : vector<2x128xf32>
    %575 = vector.extract_strided_slice %574 {offsets = [0, 0], sizes = [2, 32], strides = [1, 1]} : vector<2x128xf32> to vector<2x32xf32>
    %576 = arith.negf %575 : vector<2x32xf32>
    %577 = math.exp %576 : vector<2x32xf32>
    %cst_90 = arith.constant 1.000000e+00 : f32
    %578 = vector.broadcast %cst_90 : f32 to vector<2x32xf32>
    %579 = arith.addf %578, %577 : vector<2x32xf32>
    %580 = arith.divf %578, %579 : vector<2x32xf32>
    %581 = vector.extract_strided_slice %574 {offsets = [0, 32], sizes = [2, 32], strides = [1, 1]} : vector<2x128xf32> to vector<2x32xf32>
    %582 = arith.negf %581 : vector<2x32xf32>
    %583 = math.exp %582 : vector<2x32xf32>
    %cst_91 = arith.constant 1.000000e+00 : f32
    %584 = vector.broadcast %cst_91 : f32 to vector<2x32xf32>
    %585 = arith.addf %584, %583 : vector<2x32xf32>
    %586 = arith.divf %584, %585 : vector<2x32xf32>
    %587 = vector.extract_strided_slice %574 {offsets = [0, 64], sizes = [2, 32], strides = [1, 1]} : vector<2x128xf32> to vector<2x32xf32>
    %588 = math.tanh %587 : vector<2x32xf32>
    %589 = vector.extract_strided_slice %574 {offsets = [0, 96], sizes = [2, 32], strides = [1, 1]} : vector<2x128xf32> to vector<2x32xf32>
    %590 = arith.negf %589 : vector<2x32xf32>
    %591 = math.exp %590 : vector<2x32xf32>
    %cst_92 = arith.constant 1.000000e+00 : f32
    %592 = vector.broadcast %cst_92 : f32 to vector<2x32xf32>
    %593 = arith.addf %592, %591 : vector<2x32xf32>
    %594 = arith.divf %592, %593 : vector<2x32xf32>
    %595 = arith.mulf %586, %538 : vector<2x32xf32>
    %596 = arith.mulf %580, %588 : vector<2x32xf32>
    %597 = arith.addf %595, %596 : vector<2x32xf32>
    %598 = math.tanh %597 : vector<2x32xf32>
    %599 = arith.mulf %594, %598 : vector<2x32xf32>
    %600 = tpu.concatenate %540, %570 in 1 : vector<2x32xf32>, vector<2x32xf32> -> vector<2x64xf32>
    %601 = arith.truncf %600 : vector<2x64xf32> to vector<2x64xbf16>
    %cst_93 = arith.constant dense<0.000000e+00> : vector<2x128xf32>
    %602 = tpu.matmul %601, %3, %cst_93 {dimension_numbers = #tpu.dot_dimension_numbers<[1], [0], [0], [1], [0, 0, 1, 1], [], []>} : vector<2x64xbf16>, vector<64x128xbf16>, vector<2x128xf32> -> vector<2x128xf32>
    %603 = vector.broadcast %4 : vector<1x128xf32> to vector<2x128xf32>
    %604 = arith.addf %602, %603 : vector<2x128xf32>
    %605 = vector.extract_strided_slice %604 {offsets = [0, 0], sizes = [2, 32], strides = [1, 1]} : vector<2x128xf32> to vector<2x32xf32>
    %606 = arith.negf %605 : vector<2x32xf32>
    %607 = math.exp %606 : vector<2x32xf32>
    %cst_94 = arith.constant 1.000000e+00 : f32
    %608 = vector.broadcast %cst_94 : f32 to vector<2x32xf32>
    %609 = arith.addf %608, %607 : vector<2x32xf32>
    %610 = arith.divf %608, %609 : vector<2x32xf32>
    %611 = vector.extract_strided_slice %604 {offsets = [0, 32], sizes = [2, 32], strides = [1, 1]} : vector<2x128xf32> to vector<2x32xf32>
    %612 = arith.negf %611 : vector<2x32xf32>
    %613 = math.exp %612 : vector<2x32xf32>
    %cst_95 = arith.constant 1.000000e+00 : f32
    %614 = vector.broadcast %cst_95 : f32 to vector<2x32xf32>
    %615 = arith.addf %614, %613 : vector<2x32xf32>
    %616 = arith.divf %614, %615 : vector<2x32xf32>
    %617 = vector.extract_strided_slice %604 {offsets = [0, 64], sizes = [2, 32], strides = [1, 1]} : vector<2x128xf32> to vector<2x32xf32>
    %618 = math.tanh %617 : vector<2x32xf32>
    %619 = vector.extract_strided_slice %604 {offsets = [0, 96], sizes = [2, 32], strides = [1, 1]} : vector<2x128xf32> to vector<2x32xf32>
    %620 = arith.negf %619 : vector<2x32xf32>
    %621 = math.exp %620 : vector<2x32xf32>
    %cst_96 = arith.constant 1.000000e+00 : f32
    %622 = vector.broadcast %cst_96 : f32 to vector<2x32xf32>
    %623 = arith.addf %622, %621 : vector<2x32xf32>
    %624 = arith.divf %622, %623 : vector<2x32xf32>
    %625 = arith.mulf %616, %568 : vector<2x32xf32>
    %626 = arith.mulf %610, %618 : vector<2x32xf32>
    %627 = arith.addf %625, %626 : vector<2x32xf32>
    %628 = math.tanh %627 : vector<2x32xf32>
    %629 = arith.mulf %624, %628 : vector<2x32xf32>
    %630 = vector.extract_strided_slice %9 {offsets = [22, 0], sizes = [2, 128], strides = [1, 1]} : vector<32x128xf32> to vector<2x128xf32>
    %631 = arith.truncf %599 : vector<2x32xf32> to vector<2x32xbf16>
    %cst_97 = arith.constant dense<0.000000e+00> : vector<2x128xf32>
    %632 = tpu.matmul %631, %1, %cst_97 {dimension_numbers = #tpu.dot_dimension_numbers<[1], [0], [0], [1], [0, 0, 1, 1], [], []>} : vector<2x32xbf16>, vector<32x128xbf16>, vector<2x128xf32> -> vector<2x128xf32>
    %633 = arith.addf %630, %632 : vector<2x128xf32>
    %634 = vector.extract_strided_slice %633 {offsets = [0, 0], sizes = [2, 32], strides = [1, 1]} : vector<2x128xf32> to vector<2x32xf32>
    %635 = arith.negf %634 : vector<2x32xf32>
    %636 = math.exp %635 : vector<2x32xf32>
    %cst_98 = arith.constant 1.000000e+00 : f32
    %637 = vector.broadcast %cst_98 : f32 to vector<2x32xf32>
    %638 = arith.addf %637, %636 : vector<2x32xf32>
    %639 = arith.divf %637, %638 : vector<2x32xf32>
    %640 = vector.extract_strided_slice %633 {offsets = [0, 32], sizes = [2, 32], strides = [1, 1]} : vector<2x128xf32> to vector<2x32xf32>
    %641 = arith.negf %640 : vector<2x32xf32>
    %642 = math.exp %641 : vector<2x32xf32>
    %cst_99 = arith.constant 1.000000e+00 : f32
    %643 = vector.broadcast %cst_99 : f32 to vector<2x32xf32>
    %644 = arith.addf %643, %642 : vector<2x32xf32>
    %645 = arith.divf %643, %644 : vector<2x32xf32>
    %646 = vector.extract_strided_slice %633 {offsets = [0, 64], sizes = [2, 32], strides = [1, 1]} : vector<2x128xf32> to vector<2x32xf32>
    %647 = math.tanh %646 : vector<2x32xf32>
    %648 = vector.extract_strided_slice %633 {offsets = [0, 96], sizes = [2, 32], strides = [1, 1]} : vector<2x128xf32> to vector<2x32xf32>
    %649 = arith.negf %648 : vector<2x32xf32>
    %650 = math.exp %649 : vector<2x32xf32>
    %cst_100 = arith.constant 1.000000e+00 : f32
    %651 = vector.broadcast %cst_100 : f32 to vector<2x32xf32>
    %652 = arith.addf %651, %650 : vector<2x32xf32>
    %653 = arith.divf %651, %652 : vector<2x32xf32>
    %654 = arith.mulf %645, %597 : vector<2x32xf32>
    %655 = arith.mulf %639, %647 : vector<2x32xf32>
    %656 = arith.addf %654, %655 : vector<2x32xf32>
    %657 = math.tanh %656 : vector<2x32xf32>
    %658 = arith.mulf %653, %657 : vector<2x32xf32>
    %659 = tpu.concatenate %599, %629 in 1 : vector<2x32xf32>, vector<2x32xf32> -> vector<2x64xf32>
    %660 = arith.truncf %659 : vector<2x64xf32> to vector<2x64xbf16>
    %cst_101 = arith.constant dense<0.000000e+00> : vector<2x128xf32>
    %661 = tpu.matmul %660, %3, %cst_101 {dimension_numbers = #tpu.dot_dimension_numbers<[1], [0], [0], [1], [0, 0, 1, 1], [], []>} : vector<2x64xbf16>, vector<64x128xbf16>, vector<2x128xf32> -> vector<2x128xf32>
    %662 = vector.broadcast %4 : vector<1x128xf32> to vector<2x128xf32>
    %663 = arith.addf %661, %662 : vector<2x128xf32>
    %664 = vector.extract_strided_slice %663 {offsets = [0, 0], sizes = [2, 32], strides = [1, 1]} : vector<2x128xf32> to vector<2x32xf32>
    %665 = arith.negf %664 : vector<2x32xf32>
    %666 = math.exp %665 : vector<2x32xf32>
    %cst_102 = arith.constant 1.000000e+00 : f32
    %667 = vector.broadcast %cst_102 : f32 to vector<2x32xf32>
    %668 = arith.addf %667, %666 : vector<2x32xf32>
    %669 = arith.divf %667, %668 : vector<2x32xf32>
    %670 = vector.extract_strided_slice %663 {offsets = [0, 32], sizes = [2, 32], strides = [1, 1]} : vector<2x128xf32> to vector<2x32xf32>
    %671 = arith.negf %670 : vector<2x32xf32>
    %672 = math.exp %671 : vector<2x32xf32>
    %cst_103 = arith.constant 1.000000e+00 : f32
    %673 = vector.broadcast %cst_103 : f32 to vector<2x32xf32>
    %674 = arith.addf %673, %672 : vector<2x32xf32>
    %675 = arith.divf %673, %674 : vector<2x32xf32>
    %676 = vector.extract_strided_slice %663 {offsets = [0, 64], sizes = [2, 32], strides = [1, 1]} : vector<2x128xf32> to vector<2x32xf32>
    %677 = math.tanh %676 : vector<2x32xf32>
    %678 = vector.extract_strided_slice %663 {offsets = [0, 96], sizes = [2, 32], strides = [1, 1]} : vector<2x128xf32> to vector<2x32xf32>
    %679 = arith.negf %678 : vector<2x32xf32>
    %680 = math.exp %679 : vector<2x32xf32>
    %cst_104 = arith.constant 1.000000e+00 : f32
    %681 = vector.broadcast %cst_104 : f32 to vector<2x32xf32>
    %682 = arith.addf %681, %680 : vector<2x32xf32>
    %683 = arith.divf %681, %682 : vector<2x32xf32>
    %684 = arith.mulf %675, %627 : vector<2x32xf32>
    %685 = arith.mulf %669, %677 : vector<2x32xf32>
    %686 = arith.addf %684, %685 : vector<2x32xf32>
    %687 = math.tanh %686 : vector<2x32xf32>
    %688 = arith.mulf %683, %687 : vector<2x32xf32>
    %689 = vector.extract_strided_slice %9 {offsets = [24, 0], sizes = [2, 128], strides = [1, 1]} : vector<32x128xf32> to vector<2x128xf32>
    %690 = arith.truncf %658 : vector<2x32xf32> to vector<2x32xbf16>
    %cst_105 = arith.constant dense<0.000000e+00> : vector<2x128xf32>
    %691 = tpu.matmul %690, %1, %cst_105 {dimension_numbers = #tpu.dot_dimension_numbers<[1], [0], [0], [1], [0, 0, 1, 1], [], []>} : vector<2x32xbf16>, vector<32x128xbf16>, vector<2x128xf32> -> vector<2x128xf32>
    %692 = arith.addf %689, %691 : vector<2x128xf32>
    %693 = vector.extract_strided_slice %692 {offsets = [0, 0], sizes = [2, 32], strides = [1, 1]} : vector<2x128xf32> to vector<2x32xf32>
    %694 = arith.negf %693 : vector<2x32xf32>
    %695 = math.exp %694 : vector<2x32xf32>
    %cst_106 = arith.constant 1.000000e+00 : f32
    %696 = vector.broadcast %cst_106 : f32 to vector<2x32xf32>
    %697 = arith.addf %696, %695 : vector<2x32xf32>
    %698 = arith.divf %696, %697 : vector<2x32xf32>
    %699 = vector.extract_strided_slice %692 {offsets = [0, 32], sizes = [2, 32], strides = [1, 1]} : vector<2x128xf32> to vector<2x32xf32>
    %700 = arith.negf %699 : vector<2x32xf32>
    %701 = math.exp %700 : vector<2x32xf32>
    %cst_107 = arith.constant 1.000000e+00 : f32
    %702 = vector.broadcast %cst_107 : f32 to vector<2x32xf32>
    %703 = arith.addf %702, %701 : vector<2x32xf32>
    %704 = arith.divf %702, %703 : vector<2x32xf32>
    %705 = vector.extract_strided_slice %692 {offsets = [0, 64], sizes = [2, 32], strides = [1, 1]} : vector<2x128xf32> to vector<2x32xf32>
    %706 = math.tanh %705 : vector<2x32xf32>
    %707 = vector.extract_strided_slice %692 {offsets = [0, 96], sizes = [2, 32], strides = [1, 1]} : vector<2x128xf32> to vector<2x32xf32>
    %708 = arith.negf %707 : vector<2x32xf32>
    %709 = math.exp %708 : vector<2x32xf32>
    %cst_108 = arith.constant 1.000000e+00 : f32
    %710 = vector.broadcast %cst_108 : f32 to vector<2x32xf32>
    %711 = arith.addf %710, %709 : vector<2x32xf32>
    %712 = arith.divf %710, %711 : vector<2x32xf32>
    %713 = arith.mulf %704, %656 : vector<2x32xf32>
    %714 = arith.mulf %698, %706 : vector<2x32xf32>
    %715 = arith.addf %713, %714 : vector<2x32xf32>
    %716 = math.tanh %715 : vector<2x32xf32>
    %717 = arith.mulf %712, %716 : vector<2x32xf32>
    %718 = tpu.concatenate %658, %688 in 1 : vector<2x32xf32>, vector<2x32xf32> -> vector<2x64xf32>
    %719 = arith.truncf %718 : vector<2x64xf32> to vector<2x64xbf16>
    %cst_109 = arith.constant dense<0.000000e+00> : vector<2x128xf32>
    %720 = tpu.matmul %719, %3, %cst_109 {dimension_numbers = #tpu.dot_dimension_numbers<[1], [0], [0], [1], [0, 0, 1, 1], [], []>} : vector<2x64xbf16>, vector<64x128xbf16>, vector<2x128xf32> -> vector<2x128xf32>
    %721 = vector.broadcast %4 : vector<1x128xf32> to vector<2x128xf32>
    %722 = arith.addf %720, %721 : vector<2x128xf32>
    %723 = vector.extract_strided_slice %722 {offsets = [0, 0], sizes = [2, 32], strides = [1, 1]} : vector<2x128xf32> to vector<2x32xf32>
    %724 = arith.negf %723 : vector<2x32xf32>
    %725 = math.exp %724 : vector<2x32xf32>
    %cst_110 = arith.constant 1.000000e+00 : f32
    %726 = vector.broadcast %cst_110 : f32 to vector<2x32xf32>
    %727 = arith.addf %726, %725 : vector<2x32xf32>
    %728 = arith.divf %726, %727 : vector<2x32xf32>
    %729 = vector.extract_strided_slice %722 {offsets = [0, 32], sizes = [2, 32], strides = [1, 1]} : vector<2x128xf32> to vector<2x32xf32>
    %730 = arith.negf %729 : vector<2x32xf32>
    %731 = math.exp %730 : vector<2x32xf32>
    %cst_111 = arith.constant 1.000000e+00 : f32
    %732 = vector.broadcast %cst_111 : f32 to vector<2x32xf32>
    %733 = arith.addf %732, %731 : vector<2x32xf32>
    %734 = arith.divf %732, %733 : vector<2x32xf32>
    %735 = vector.extract_strided_slice %722 {offsets = [0, 64], sizes = [2, 32], strides = [1, 1]} : vector<2x128xf32> to vector<2x32xf32>
    %736 = math.tanh %735 : vector<2x32xf32>
    %737 = vector.extract_strided_slice %722 {offsets = [0, 96], sizes = [2, 32], strides = [1, 1]} : vector<2x128xf32> to vector<2x32xf32>
    %738 = arith.negf %737 : vector<2x32xf32>
    %739 = math.exp %738 : vector<2x32xf32>
    %cst_112 = arith.constant 1.000000e+00 : f32
    %740 = vector.broadcast %cst_112 : f32 to vector<2x32xf32>
    %741 = arith.addf %740, %739 : vector<2x32xf32>
    %742 = arith.divf %740, %741 : vector<2x32xf32>
    %743 = arith.mulf %734, %686 : vector<2x32xf32>
    %744 = arith.mulf %728, %736 : vector<2x32xf32>
    %745 = arith.addf %743, %744 : vector<2x32xf32>
    %746 = math.tanh %745 : vector<2x32xf32>
    %747 = arith.mulf %742, %746 : vector<2x32xf32>
    %748 = vector.extract_strided_slice %9 {offsets = [26, 0], sizes = [2, 128], strides = [1, 1]} : vector<32x128xf32> to vector<2x128xf32>
    %749 = arith.truncf %717 : vector<2x32xf32> to vector<2x32xbf16>
    %cst_113 = arith.constant dense<0.000000e+00> : vector<2x128xf32>
    %750 = tpu.matmul %749, %1, %cst_113 {dimension_numbers = #tpu.dot_dimension_numbers<[1], [0], [0], [1], [0, 0, 1, 1], [], []>} : vector<2x32xbf16>, vector<32x128xbf16>, vector<2x128xf32> -> vector<2x128xf32>
    %751 = arith.addf %748, %750 : vector<2x128xf32>
    %752 = vector.extract_strided_slice %751 {offsets = [0, 0], sizes = [2, 32], strides = [1, 1]} : vector<2x128xf32> to vector<2x32xf32>
    %753 = arith.negf %752 : vector<2x32xf32>
    %754 = math.exp %753 : vector<2x32xf32>
    %cst_114 = arith.constant 1.000000e+00 : f32
    %755 = vector.broadcast %cst_114 : f32 to vector<2x32xf32>
    %756 = arith.addf %755, %754 : vector<2x32xf32>
    %757 = arith.divf %755, %756 : vector<2x32xf32>
    %758 = vector.extract_strided_slice %751 {offsets = [0, 32], sizes = [2, 32], strides = [1, 1]} : vector<2x128xf32> to vector<2x32xf32>
    %759 = arith.negf %758 : vector<2x32xf32>
    %760 = math.exp %759 : vector<2x32xf32>
    %cst_115 = arith.constant 1.000000e+00 : f32
    %761 = vector.broadcast %cst_115 : f32 to vector<2x32xf32>
    %762 = arith.addf %761, %760 : vector<2x32xf32>
    %763 = arith.divf %761, %762 : vector<2x32xf32>
    %764 = vector.extract_strided_slice %751 {offsets = [0, 64], sizes = [2, 32], strides = [1, 1]} : vector<2x128xf32> to vector<2x32xf32>
    %765 = math.tanh %764 : vector<2x32xf32>
    %766 = vector.extract_strided_slice %751 {offsets = [0, 96], sizes = [2, 32], strides = [1, 1]} : vector<2x128xf32> to vector<2x32xf32>
    %767 = arith.negf %766 : vector<2x32xf32>
    %768 = math.exp %767 : vector<2x32xf32>
    %cst_116 = arith.constant 1.000000e+00 : f32
    %769 = vector.broadcast %cst_116 : f32 to vector<2x32xf32>
    %770 = arith.addf %769, %768 : vector<2x32xf32>
    %771 = arith.divf %769, %770 : vector<2x32xf32>
    %772 = arith.mulf %763, %715 : vector<2x32xf32>
    %773 = arith.mulf %757, %765 : vector<2x32xf32>
    %774 = arith.addf %772, %773 : vector<2x32xf32>
    %775 = math.tanh %774 : vector<2x32xf32>
    %776 = arith.mulf %771, %775 : vector<2x32xf32>
    %777 = tpu.concatenate %717, %747 in 1 : vector<2x32xf32>, vector<2x32xf32> -> vector<2x64xf32>
    %778 = arith.truncf %777 : vector<2x64xf32> to vector<2x64xbf16>
    %cst_117 = arith.constant dense<0.000000e+00> : vector<2x128xf32>
    %779 = tpu.matmul %778, %3, %cst_117 {dimension_numbers = #tpu.dot_dimension_numbers<[1], [0], [0], [1], [0, 0, 1, 1], [], []>} : vector<2x64xbf16>, vector<64x128xbf16>, vector<2x128xf32> -> vector<2x128xf32>
    %780 = vector.broadcast %4 : vector<1x128xf32> to vector<2x128xf32>
    %781 = arith.addf %779, %780 : vector<2x128xf32>
    %782 = vector.extract_strided_slice %781 {offsets = [0, 0], sizes = [2, 32], strides = [1, 1]} : vector<2x128xf32> to vector<2x32xf32>
    %783 = arith.negf %782 : vector<2x32xf32>
    %784 = math.exp %783 : vector<2x32xf32>
    %cst_118 = arith.constant 1.000000e+00 : f32
    %785 = vector.broadcast %cst_118 : f32 to vector<2x32xf32>
    %786 = arith.addf %785, %784 : vector<2x32xf32>
    %787 = arith.divf %785, %786 : vector<2x32xf32>
    %788 = vector.extract_strided_slice %781 {offsets = [0, 32], sizes = [2, 32], strides = [1, 1]} : vector<2x128xf32> to vector<2x32xf32>
    %789 = arith.negf %788 : vector<2x32xf32>
    %790 = math.exp %789 : vector<2x32xf32>
    %cst_119 = arith.constant 1.000000e+00 : f32
    %791 = vector.broadcast %cst_119 : f32 to vector<2x32xf32>
    %792 = arith.addf %791, %790 : vector<2x32xf32>
    %793 = arith.divf %791, %792 : vector<2x32xf32>
    %794 = vector.extract_strided_slice %781 {offsets = [0, 64], sizes = [2, 32], strides = [1, 1]} : vector<2x128xf32> to vector<2x32xf32>
    %795 = math.tanh %794 : vector<2x32xf32>
    %796 = vector.extract_strided_slice %781 {offsets = [0, 96], sizes = [2, 32], strides = [1, 1]} : vector<2x128xf32> to vector<2x32xf32>
    %797 = arith.negf %796 : vector<2x32xf32>
    %798 = math.exp %797 : vector<2x32xf32>
    %cst_120 = arith.constant 1.000000e+00 : f32
    %799 = vector.broadcast %cst_120 : f32 to vector<2x32xf32>
    %800 = arith.addf %799, %798 : vector<2x32xf32>
    %801 = arith.divf %799, %800 : vector<2x32xf32>
    %802 = arith.mulf %793, %745 : vector<2x32xf32>
    %803 = arith.mulf %787, %795 : vector<2x32xf32>
    %804 = arith.addf %802, %803 : vector<2x32xf32>
    %805 = math.tanh %804 : vector<2x32xf32>
    %806 = arith.mulf %801, %805 : vector<2x32xf32>
    %807 = vector.extract_strided_slice %9 {offsets = [28, 0], sizes = [2, 128], strides = [1, 1]} : vector<32x128xf32> to vector<2x128xf32>
    %808 = arith.truncf %776 : vector<2x32xf32> to vector<2x32xbf16>
    %cst_121 = arith.constant dense<0.000000e+00> : vector<2x128xf32>
    %809 = tpu.matmul %808, %1, %cst_121 {dimension_numbers = #tpu.dot_dimension_numbers<[1], [0], [0], [1], [0, 0, 1, 1], [], []>} : vector<2x32xbf16>, vector<32x128xbf16>, vector<2x128xf32> -> vector<2x128xf32>
    %810 = arith.addf %807, %809 : vector<2x128xf32>
    %811 = vector.extract_strided_slice %810 {offsets = [0, 0], sizes = [2, 32], strides = [1, 1]} : vector<2x128xf32> to vector<2x32xf32>
    %812 = arith.negf %811 : vector<2x32xf32>
    %813 = math.exp %812 : vector<2x32xf32>
    %cst_122 = arith.constant 1.000000e+00 : f32
    %814 = vector.broadcast %cst_122 : f32 to vector<2x32xf32>
    %815 = arith.addf %814, %813 : vector<2x32xf32>
    %816 = arith.divf %814, %815 : vector<2x32xf32>
    %817 = vector.extract_strided_slice %810 {offsets = [0, 32], sizes = [2, 32], strides = [1, 1]} : vector<2x128xf32> to vector<2x32xf32>
    %818 = arith.negf %817 : vector<2x32xf32>
    %819 = math.exp %818 : vector<2x32xf32>
    %cst_123 = arith.constant 1.000000e+00 : f32
    %820 = vector.broadcast %cst_123 : f32 to vector<2x32xf32>
    %821 = arith.addf %820, %819 : vector<2x32xf32>
    %822 = arith.divf %820, %821 : vector<2x32xf32>
    %823 = vector.extract_strided_slice %810 {offsets = [0, 64], sizes = [2, 32], strides = [1, 1]} : vector<2x128xf32> to vector<2x32xf32>
    %824 = math.tanh %823 : vector<2x32xf32>
    %825 = vector.extract_strided_slice %810 {offsets = [0, 96], sizes = [2, 32], strides = [1, 1]} : vector<2x128xf32> to vector<2x32xf32>
    %826 = arith.negf %825 : vector<2x32xf32>
    %827 = math.exp %826 : vector<2x32xf32>
    %cst_124 = arith.constant 1.000000e+00 : f32
    %828 = vector.broadcast %cst_124 : f32 to vector<2x32xf32>
    %829 = arith.addf %828, %827 : vector<2x32xf32>
    %830 = arith.divf %828, %829 : vector<2x32xf32>
    %831 = arith.mulf %822, %774 : vector<2x32xf32>
    %832 = arith.mulf %816, %824 : vector<2x32xf32>
    %833 = arith.addf %831, %832 : vector<2x32xf32>
    %834 = math.tanh %833 : vector<2x32xf32>
    %835 = arith.mulf %830, %834 : vector<2x32xf32>
    %836 = tpu.concatenate %776, %806 in 1 : vector<2x32xf32>, vector<2x32xf32> -> vector<2x64xf32>
    %837 = arith.truncf %836 : vector<2x64xf32> to vector<2x64xbf16>
    %cst_125 = arith.constant dense<0.000000e+00> : vector<2x128xf32>
    %838 = tpu.matmul %837, %3, %cst_125 {dimension_numbers = #tpu.dot_dimension_numbers<[1], [0], [0], [1], [0, 0, 1, 1], [], []>} : vector<2x64xbf16>, vector<64x128xbf16>, vector<2x128xf32> -> vector<2x128xf32>
    %839 = vector.broadcast %4 : vector<1x128xf32> to vector<2x128xf32>
    %840 = arith.addf %838, %839 : vector<2x128xf32>
    %841 = vector.extract_strided_slice %840 {offsets = [0, 0], sizes = [2, 32], strides = [1, 1]} : vector<2x128xf32> to vector<2x32xf32>
    %842 = arith.negf %841 : vector<2x32xf32>
    %843 = math.exp %842 : vector<2x32xf32>
    %cst_126 = arith.constant 1.000000e+00 : f32
    %844 = vector.broadcast %cst_126 : f32 to vector<2x32xf32>
    %845 = arith.addf %844, %843 : vector<2x32xf32>
    %846 = arith.divf %844, %845 : vector<2x32xf32>
    %847 = vector.extract_strided_slice %840 {offsets = [0, 32], sizes = [2, 32], strides = [1, 1]} : vector<2x128xf32> to vector<2x32xf32>
    %848 = arith.negf %847 : vector<2x32xf32>
    %849 = math.exp %848 : vector<2x32xf32>
    %cst_127 = arith.constant 1.000000e+00 : f32
    %850 = vector.broadcast %cst_127 : f32 to vector<2x32xf32>
    %851 = arith.addf %850, %849 : vector<2x32xf32>
    %852 = arith.divf %850, %851 : vector<2x32xf32>
    %853 = vector.extract_strided_slice %840 {offsets = [0, 64], sizes = [2, 32], strides = [1, 1]} : vector<2x128xf32> to vector<2x32xf32>
    %854 = math.tanh %853 : vector<2x32xf32>
    %855 = vector.extract_strided_slice %840 {offsets = [0, 96], sizes = [2, 32], strides = [1, 1]} : vector<2x128xf32> to vector<2x32xf32>
    %856 = arith.negf %855 : vector<2x32xf32>
    %857 = math.exp %856 : vector<2x32xf32>
    %cst_128 = arith.constant 1.000000e+00 : f32
    %858 = vector.broadcast %cst_128 : f32 to vector<2x32xf32>
    %859 = arith.addf %858, %857 : vector<2x32xf32>
    %860 = arith.divf %858, %859 : vector<2x32xf32>
    %861 = arith.mulf %852, %804 : vector<2x32xf32>
    %862 = arith.mulf %846, %854 : vector<2x32xf32>
    %863 = arith.addf %861, %862 : vector<2x32xf32>
    %864 = math.tanh %863 : vector<2x32xf32>
    %865 = arith.mulf %860, %864 : vector<2x32xf32>
    %866 = vector.extract_strided_slice %9 {offsets = [30, 0], sizes = [2, 128], strides = [1, 1]} : vector<32x128xf32> to vector<2x128xf32>
    %867 = arith.truncf %835 : vector<2x32xf32> to vector<2x32xbf16>
    %cst_129 = arith.constant dense<0.000000e+00> : vector<2x128xf32>
    %868 = tpu.matmul %867, %1, %cst_129 {dimension_numbers = #tpu.dot_dimension_numbers<[1], [0], [0], [1], [0, 0, 1, 1], [], []>} : vector<2x32xbf16>, vector<32x128xbf16>, vector<2x128xf32> -> vector<2x128xf32>
    %869 = arith.addf %866, %868 : vector<2x128xf32>
    %870 = vector.extract_strided_slice %869 {offsets = [0, 0], sizes = [2, 32], strides = [1, 1]} : vector<2x128xf32> to vector<2x32xf32>
    %871 = arith.negf %870 : vector<2x32xf32>
    %872 = math.exp %871 : vector<2x32xf32>
    %cst_130 = arith.constant 1.000000e+00 : f32
    %873 = vector.broadcast %cst_130 : f32 to vector<2x32xf32>
    %874 = arith.addf %873, %872 : vector<2x32xf32>
    %875 = arith.divf %873, %874 : vector<2x32xf32>
    %876 = vector.extract_strided_slice %869 {offsets = [0, 32], sizes = [2, 32], strides = [1, 1]} : vector<2x128xf32> to vector<2x32xf32>
    %877 = arith.negf %876 : vector<2x32xf32>
    %878 = math.exp %877 : vector<2x32xf32>
    %cst_131 = arith.constant 1.000000e+00 : f32
    %879 = vector.broadcast %cst_131 : f32 to vector<2x32xf32>
    %880 = arith.addf %879, %878 : vector<2x32xf32>
    %881 = arith.divf %879, %880 : vector<2x32xf32>
    %882 = vector.extract_strided_slice %869 {offsets = [0, 64], sizes = [2, 32], strides = [1, 1]} : vector<2x128xf32> to vector<2x32xf32>
    %883 = math.tanh %882 : vector<2x32xf32>
    %884 = vector.extract_strided_slice %869 {offsets = [0, 96], sizes = [2, 32], strides = [1, 1]} : vector<2x128xf32> to vector<2x32xf32>
    %885 = arith.negf %884 : vector<2x32xf32>
    %886 = math.exp %885 : vector<2x32xf32>
    %cst_132 = arith.constant 1.000000e+00 : f32
    %887 = vector.broadcast %cst_132 : f32 to vector<2x32xf32>
    %888 = arith.addf %887, %886 : vector<2x32xf32>
    %889 = arith.divf %887, %888 : vector<2x32xf32>
    %890 = arith.mulf %881, %833 : vector<2x32xf32>
    %891 = arith.mulf %875, %883 : vector<2x32xf32>
    %892 = arith.addf %890, %891 : vector<2x32xf32>
    %893 = math.tanh %892 : vector<2x32xf32>
    %894 = arith.mulf %889, %893 : vector<2x32xf32>
    %895 = tpu.concatenate %835, %865 in 1 : vector<2x32xf32>, vector<2x32xf32> -> vector<2x64xf32>
    %896 = arith.truncf %895 : vector<2x64xf32> to vector<2x64xbf16>
    %cst_133 = arith.constant dense<0.000000e+00> : vector<2x128xf32>
    %897 = tpu.matmul %896, %3, %cst_133 {dimension_numbers = #tpu.dot_dimension_numbers<[1], [0], [0], [1], [0, 0, 1, 1], [], []>} : vector<2x64xbf16>, vector<64x128xbf16>, vector<2x128xf32> -> vector<2x128xf32>
    %898 = vector.broadcast %4 : vector<1x128xf32> to vector<2x128xf32>
    %899 = arith.addf %897, %898 : vector<2x128xf32>
    %900 = vector.extract_strided_slice %899 {offsets = [0, 0], sizes = [2, 32], strides = [1, 1]} : vector<2x128xf32> to vector<2x32xf32>
    %901 = arith.negf %900 : vector<2x32xf32>
    %902 = math.exp %901 : vector<2x32xf32>
    %cst_134 = arith.constant 1.000000e+00 : f32
    %903 = vector.broadcast %cst_134 : f32 to vector<2x32xf32>
    %904 = arith.addf %903, %902 : vector<2x32xf32>
    %905 = arith.divf %903, %904 : vector<2x32xf32>
    %906 = vector.extract_strided_slice %899 {offsets = [0, 32], sizes = [2, 32], strides = [1, 1]} : vector<2x128xf32> to vector<2x32xf32>
    %907 = arith.negf %906 : vector<2x32xf32>
    %908 = math.exp %907 : vector<2x32xf32>
    %cst_135 = arith.constant 1.000000e+00 : f32
    %909 = vector.broadcast %cst_135 : f32 to vector<2x32xf32>
    %910 = arith.addf %909, %908 : vector<2x32xf32>
    %911 = arith.divf %909, %910 : vector<2x32xf32>
    %912 = vector.extract_strided_slice %899 {offsets = [0, 64], sizes = [2, 32], strides = [1, 1]} : vector<2x128xf32> to vector<2x32xf32>
    %913 = math.tanh %912 : vector<2x32xf32>
    %914 = vector.extract_strided_slice %899 {offsets = [0, 96], sizes = [2, 32], strides = [1, 1]} : vector<2x128xf32> to vector<2x32xf32>
    %915 = arith.negf %914 : vector<2x32xf32>
    %916 = math.exp %915 : vector<2x32xf32>
    %cst_136 = arith.constant 1.000000e+00 : f32
    %917 = vector.broadcast %cst_136 : f32 to vector<2x32xf32>
    %918 = arith.addf %917, %916 : vector<2x32xf32>
    %919 = arith.divf %917, %918 : vector<2x32xf32>
    %920 = arith.mulf %911, %863 : vector<2x32xf32>
    %921 = arith.mulf %905, %913 : vector<2x32xf32>
    %922 = arith.addf %920, %921 : vector<2x32xf32>
    %923 = math.tanh %922 : vector<2x32xf32>
    %924 = arith.mulf %919, %923 : vector<2x32xf32>
    %925 = tpu.concatenate %894, %924 in 1 : vector<2x32xf32>, vector<2x32xf32> -> vector<2x64xf32>
    %926 = arith.truncf %925 : vector<2x64xf32> to vector<2x64xbf16>
    %cst_137 = arith.constant dense<0.000000e+00> : vector<2x128xf32>
    %927 = tpu.matmul %926, %3, %cst_137 {dimension_numbers = #tpu.dot_dimension_numbers<[1], [0], [0], [1], [0, 0, 1, 1], [], []>} : vector<2x64xbf16>, vector<64x128xbf16>, vector<2x128xf32> -> vector<2x128xf32>
    %928 = vector.broadcast %4 : vector<1x128xf32> to vector<2x128xf32>
    %929 = arith.addf %927, %928 : vector<2x128xf32>
    %930 = vector.extract_strided_slice %929 {offsets = [0, 0], sizes = [2, 32], strides = [1, 1]} : vector<2x128xf32> to vector<2x32xf32>
    %931 = arith.negf %930 : vector<2x32xf32>
    %932 = math.exp %931 : vector<2x32xf32>
    %cst_138 = arith.constant 1.000000e+00 : f32
    %933 = vector.broadcast %cst_138 : f32 to vector<2x32xf32>
    %934 = arith.addf %933, %932 : vector<2x32xf32>
    %935 = arith.divf %933, %934 : vector<2x32xf32>
    %936 = vector.extract_strided_slice %929 {offsets = [0, 32], sizes = [2, 32], strides = [1, 1]} : vector<2x128xf32> to vector<2x32xf32>
    %937 = arith.negf %936 : vector<2x32xf32>
    %938 = math.exp %937 : vector<2x32xf32>
    %cst_139 = arith.constant 1.000000e+00 : f32
    %939 = vector.broadcast %cst_139 : f32 to vector<2x32xf32>
    %940 = arith.addf %939, %938 : vector<2x32xf32>
    %941 = arith.divf %939, %940 : vector<2x32xf32>
    %942 = vector.extract_strided_slice %929 {offsets = [0, 64], sizes = [2, 32], strides = [1, 1]} : vector<2x128xf32> to vector<2x32xf32>
    %943 = math.tanh %942 : vector<2x32xf32>
    %944 = vector.extract_strided_slice %929 {offsets = [0, 96], sizes = [2, 32], strides = [1, 1]} : vector<2x128xf32> to vector<2x32xf32>
    %945 = arith.negf %944 : vector<2x32xf32>
    %946 = math.exp %945 : vector<2x32xf32>
    %cst_140 = arith.constant 1.000000e+00 : f32
    %947 = vector.broadcast %cst_140 : f32 to vector<2x32xf32>
    %948 = arith.addf %947, %946 : vector<2x32xf32>
    %949 = arith.divf %947, %948 : vector<2x32xf32>
    %950 = arith.mulf %941, %922 : vector<2x32xf32>
    %951 = arith.mulf %935, %943 : vector<2x32xf32>
    %952 = arith.addf %950, %951 : vector<2x32xf32>
    %953 = math.tanh %952 : vector<2x32xf32>
    %954 = arith.mulf %949, %953 : vector<2x32xf32>
    %c0_141 = arith.constant 0 : index
    %c0_142 = arith.constant 0 : index
    %c0_143 = arith.constant 0 : index
    %955 = vector.load %arg7[%c0_141, %c0_142, %c0_143] : memref<1x2x32xf32, #tpu.memory_space<vmem>>, vector<1x2x32xf32>
    %956 = vector.shape_cast %955 : vector<1x2x32xf32> to vector<2x32xf32>
    %957 = vector.shape_cast %954 : vector<2x32xf32> to vector<1x2x32xf32>
    tpu.vector_store %arg7[%c0_141, %c0_142, %c0_143], %957 {strides = array<i32>} : memref<1x2x32xf32, #tpu.memory_space<vmem>>, vector<1x2x32xf32>,
    return
  }
  func.func @transform_0(%arg0: i32) -> (i32, i32, i32) {
    %c0_i32 = arith.constant 0 : i32
    %c0_i32_0 = arith.constant 0 : i32
    %c0_i32_1 = arith.constant 0 : i32
    return %arg0, %c0_i32, %c0_i32_0 : i32, i32, i32
  }
  func.func @transform_1(%arg0: i32) -> (i32, i32) {
    %c0_i32 = arith.constant 0 : i32
    %c0_i32_0 = arith.constant 0 : i32
    %c0_i32_1 = arith.constant 0 : i32
    return %c0_i32, %c0_i32_0 : i32, i32
  }
  func.func @transform_2(%arg0: i32) -> (i32, i32) {
    %c0_i32 = arith.constant 0 : i32
    %c0_i32_0 = arith.constant 0 : i32
    %c0_i32_1 = arith.constant 0 : i32
    return %c0_i32, %c0_i32_0 : i32, i32
  }
  func.func @transform_3(%arg0: i32) -> (i32, i32) {
    %c0_i32 = arith.constant 0 : i32
    %c0_i32_0 = arith.constant 0 : i32
    %c0_i32_1 = arith.constant 0 : i32
    return %c0_i32, %c0_i32_0 : i32, i32
  }
  func.func @transform_4(%arg0: i32) -> (i32, i32) {
    %c0_i32 = arith.constant 0 : i32
    %c0_i32_0 = arith.constant 0 : i32
    %c0_i32_1 = arith.constant 0 : i32
    return %c0_i32, %c0_i32_0 : i32, i32
  }
  func.func @transform_5(%arg0: i32) -> (i32, i32) {
    %c0_i32 = arith.constant 0 : i32
    %c0_i32_0 = arith.constant 0 : i32
    %c0_i32_1 = arith.constant 0 : i32
    return %c0_i32, %c0_i32_0 : i32, i32
  }
  func.func @transform_6(%arg0: i32) -> (i32, i32, i32) {
    %c0_i32 = arith.constant 0 : i32
    %c0_i32_0 = arith.constant 0 : i32
    %c0_i32_1 = arith.constant 0 : i32
    return %arg0, %c0_i32, %c0_i32_0 : i32, i32, i32
  }
}

</mosaic_0001>

<llo_original>
// kernel: encoder_forward.1
$region0: #{encoder_forward.1}
  #allocation0 [shape = 'u32[]', space=smem, size = 0x4, offset = 0x4, fixed_abs, tag = 'smem constant byte address 0x4 - core index']
  #allocation1 [shape = 'u32[144,128]{1,0:T(1,128)}', space=vmem, size = 0x12000, scoped, tag = 'internal scratch']
  %s0 = inlined_call_operand.vmem [shape: bf16[1,32,4], index: 0, kind: input, shape index: {}]
  %s1 = inlined_call_operand.vmem [shape: bf16[4,128], index: 1, kind: input, shape index: {}]
  %s2 = inlined_call_operand.vmem [shape: bf16[32,128], index: 2, kind: input, shape index: {}]
  %s3 = inlined_call_operand.vmem [shape: f32[1,128], index: 3, kind: input, shape index: {}]
  %s4 = inlined_call_operand.vmem [shape: bf16[64,128], index: 4, kind: input, shape index: {}]
  %s5 = inlined_call_operand.vmem [shape: f32[1,128], index: 5, kind: input, shape index: {}]
  %s6 = inlined_call_operand.hbm [shape: f32[1,2,32], index: 6, kind: output, shape index: {}]
  %s7 = sld [smem:[#allocation0]]
  $region34: #{encoder_forward.1} parent=0
    _
  %s9 = ssub.s32 1, %s7
  %s10 = scalar_select 0, %s9, %s7
  $region1: #{encoder_forward.1} parent=0
    #allocation2 [shape = 'u8[1024]{0}', space=vmem, size = 0x400, scoped, tag = 'output window, operand 0, single buffered']
    #allocation3 [shape = 's32[1]{0}', space=sflag, size = 0x4, scoped, tag = 'scoped memory for encoder_forward.1']
    %11 = vsyncpa [#allocation3], 0
    // Predicated region
    $region2: #{encoder_forward.1} parent=1 // pred_check
      _
    $region3: #{encoder_forward.1} parent=1 // pred_check_branch
      %13 = sbr.rel (0) target = $region5
    $region4: #{encoder_forward.1} parent=1 // pred_region
      _
    $region5: #{encoder_forward.1} parent=1 // pred_fallthru
      _
    // Predicated region
    $region6: #{encoder_forward.1} parent=1 // pred_check
      _
    $region7: #{encoder_forward.1} parent=1 // pred_check_branch
      %15 = sbr.rel (0) target = $region9
    $region8: #{encoder_forward.1} parent=1 // pred_region
      _
    $region9: #{encoder_forward.1} parent=1 // pred_fallthru
      _
    // Predicated region
    $region10: #{encoder_forward.1} parent=1 // pred_check
      _
    $region11: #{encoder_forward.1} parent=1 // pred_check_branch
      %17 = sbr.rel (0) target = $region13
    $region12: #{encoder_forward.1} parent=1 // pred_region
      _
    $region13: #{encoder_forward.1} parent=1 // pred_fallthru
      _
    // Predicated region
    $region14: #{encoder_forward.1} parent=1 // pred_check
      _
    $region15: #{encoder_forward.1} parent=1 // pred_check_branch
      %19 = sbr.rel (0) target = $region17
    $region16: #{encoder_forward.1} parent=1 // pred_region
      _
    $region17: #{encoder_forward.1} parent=1 // pred_fallthru
      _
    // Predicated region
    $region18: #{encoder_forward.1} parent=1 // pred_check
      _
    $region19: #{encoder_forward.1} parent=1 // pred_check_branch
      %21 = sbr.rel (0) target = $region21
    $region20: #{encoder_forward.1} parent=1 // pred_region
      _
    $region21: #{encoder_forward.1} parent=1 // pred_fallthru
      _
    // Predicated region
    $region22: #{encoder_forward.1} parent=1 // pred_check
      _
    $region23: #{encoder_forward.1} parent=1 // pred_check_branch
      %23 = sbr.rel (0) target = $region25
    $region24: #{encoder_forward.1} parent=1 // pred_region
      _
    $region25: #{encoder_forward.1} parent=1 // pred_fallthru
      _
    %v25 = vld [vmem:[%s1] sm:$0x3]
    %v26 = vld [vmem:[%s2] sm:$0xf]
    %v27 = vld [vmem:[%s2 + $0x4] sm:$0xf]
    %v28 = vld [vmem:[%s2 + $0x8] sm:$0xf]
    %v29 = vld [vmem:[%s2 + $0xc] sm:$0xf]
    %v30 = vld [vmem:[%s3] sm:$0x1]
    %v31 = vld [vmem:[%s4] sm:$0xf]
    %v32 = vld [vmem:[%s4 + $0x4] sm:$0xf]
    %v33 = vld [vmem:[%s4 + $0x8] sm:$0xf]
    %v34 = vld [vmem:[%s4 + $0xc] sm:$0xf]
    %v35 = vld [vmem:[%s4 + $0x10] sm:$0xf]
    %v36 = vld [vmem:[%s4 + $0x14] sm:$0xf]
    %v37 = vld [vmem:[%s4 + $0x18] sm:$0xf]
    %v38 = vld [vmem:[%s4 + $0x1c] sm:$0xf]
    %v39 = vld [vmem:[%s5] sm:$0x1]
    %v40 = vld [vmem:[%s0] sm:$0xf]
    %v41 = vld [vmem:[%s0 + $0x4] sm:$0xf]
    %v42 = vld [vmem:[%s0 + $0x8] sm:$0xf]
    %v43 = vld [vmem:[%s0 + $0xc] sm:$0xf]
    %v45 = vlaneseq
    %v46 = vshrl.u32 %v45, 7
    %v47 = vsub.s32 0, %v46
    %v48 = vrot.slane %v30, %v47
    %v54 = vunpack.c.l.b16 %v40
    %v55 = vunpack.c.l.b16 %v41
    %v56 = vunpack.c.l.b16 %v42
    %v57 = vunpack.c.l.b16 %v43
    %v58 = vpack.c.b16 %v55, %v54
    %v59 = vpack.c.b16 %v57, %v56
    %vm60 = vcmask 31744
    %v62 = vsel %vm60, %v58, 0
    %v65 = vsel %vm60, %v59, 0
    %vm67 = vcmask 1041408
    %v69 = vsel %vm67, %v25, 0
    %71 = vmatprep.subr.bf16.mxu0 0
    %72 = vmatpush1.bf16.msra.mxu0 %v69
    %73 = vmatprep.subr.bf16.mxu0 0
    %74 = vmatpush1.bf16.msra.mxu0 0
    %75 = vmatprep.subr.bf16.mxu0 0
    %76 = vmatpush1.bf16.msra.mxu0 0
    %77 = vmatprep.subr.bf16.mxu0 0
    %78 = vmatpush1.bf16.msra.mxu0 0
    %79 = vmatprep.subr.bf16.mxu0 0
    %80 = vmatpush1.bf16.msra.mxu0 0
    %81 = vmatprep.subr.bf16.mxu0 0
    %82 = vmatpush1.bf16.msra.mxu0 0
    %83 = vmatprep.subr.bf16.mxu0 0
    %84 = vmatpush1.bf16.msra.mxu0 0
    %85 = vmatprep.subr.bf16.mxu0 0
    %86 = vmatpush1.bf16.msra.mxu0 0
    %87 = vmatprep.subr.bf16.mxu0 0
    %88 = vmatpush1.bf16.msra.mxu0 0
    %89 = vmatprep.subr.bf16.mxu0 0
    %90 = vmatpush1.bf16.msra.mxu0 0
    %91 = vmatprep.subr.bf16.mxu0 0
    %92 = vmatpush1.bf16.msra.mxu0 0
    %93 = vmatprep.subr.bf16.mxu0 0
    %94 = vmatpush1.bf16.msra.mxu0 0
    %95 = vmatprep.subr.bf16.mxu0 0
    %96 = vmatpush1.bf16.msra.mxu0 0
    %97 = vmatprep.subr.bf16.mxu0 0
    %98 = vmatpush1.bf16.msra.mxu0 0
    %99 = vmatprep.subr.bf16.mxu0 0
    %100 = vmatpush1.bf16.msra.mxu0 0
    %101 = vmatprep.subr.bf16.mxu0 0
    %102 = vmatpush1.bf16.msra.mxu0 0
    %103 = vmatprep.mubr.bf16.mxu0 0
    %104 = vmatmul.mubr.bf16.gmra.mrb[0].mxu0 %v62
    %v105 = vpop.f32.mrb[0].mxu0
    %v106 = vadd.f32 %v48, %v105
    %v107 = vpop.f32.mrb[0].mxu0
    %v108 = vpop.f32.mrb[0].mxu0
    %v109 = vadd.f32 %v48, %v108
    %v110 = vpop.f32.mrb[0].mxu0
    %111 = vmatprep.mubr.bf16.mxu0 0
    %112 = vmatmul.mubr.bf16.gmra.mrb[0].mxu0 %v65
    %v113 = vpop.f32.mrb[0].mxu0
    %v114 = vadd.f32 %v48, %v113
    %v115 = vpop.f32.mrb[0].mxu0
    %v116 = vpop.f32.mrb[0].mxu0
    %v117 = vadd.f32 %v48, %v116
    %v118 = vpop.f32.mrb[0].mxu0
    %119 = vdwg.mxu0
    %v124 = vunpack.c.l.b16 %v26
    %v125 = vunpack.c.l.b16 %v27
    %v126 = vunpack.c.l.b16 %v28
    %v127 = vunpack.c.l.b16 %v29
    %v128 = vpack.c.b16 %v125, %v124
    %v129 = vpack.c.b16 %v127, %v126
    %vm132 = vcmask 261120
    %v134 = vsel %vm132, 0, 0
    %136 = vmatprep.subr.bf16.mxu0 0
    %137 = vmatpush1.bf16.msra.mxu0 %v128
    %138 = vmatprep.subr.bf16.mxu0 0
    %139 = vmatpush1.bf16.msra.mxu0 %v129
    %140 = vmatprep.subr.bf16.mxu0 0
    %141 = vmatpush1.bf16.msra.mxu0 0
    %142 = vmatprep.subr.bf16.mxu0 0
    %143 = vmatpush1.bf16.msra.mxu0 0
    %144 = vmatprep.subr.bf16.mxu0 0
    %145 = vmatpush1.bf16.msra.mxu0 0
    %146 = vmatprep.subr.bf16.mxu0 0
    %147 = vmatpush1.bf16.msra.mxu0 0
    %148 = vmatprep.subr.bf16.mxu0 0
    %149 = vmatpush1.bf16.msra.mxu0 0
    %150 = vmatprep.subr.bf16.mxu0 0
    %151 = vmatpush1.bf16.msra.mxu0 0
    %152 = vmatprep.subr.bf16.mxu0 0
    %153 = vmatpush1.bf16.msra.mxu0 0
    %154 = vmatprep.subr.bf16.mxu0 0
    %155 = vmatpush1.bf16.msra.mxu0 0
    %156 = vmatprep.subr.bf16.mxu0 0
    %157 = vmatpush1.bf16.msra.mxu0 0
    %158 = vmatprep.subr.bf16.mxu0 0
    %159 = vmatpush1.bf16.msra.mxu0 0
    %160 = vmatprep.subr.bf16.mxu0 0
    %161 = vmatpush1.bf16.msra.mxu0 0
    %162 = vmatprep.subr.bf16.mxu0 0
    %163 = vmatpush1.bf16.msra.mxu0 0
    %164 = vmatprep.subr.bf16.mxu0 0
    %165 = vmatpush1.bf16.msra.mxu0 0
    %166 = vmatprep.subr.bf16.mxu0 0
    %167 = vmatpush1.bf16.msra.mxu0 0
    %168 = vmatprep.mubr.bf16.mxu0 0
    %169 = vmatmul.mubr.bf16.gmra.mrb[0].mxu0 %v134
    %v170 = vpop.f32.mrb[0].mxu0
    %v171 = vadd.f32 0.0, %v170
    %v172 = vpop.f32.mrb[0].mxu0
    %v173 = vpop.f32.mrb[0].mxu0
    %v174 = vpop.f32.mrb[0].mxu0
    %175 = vdwg.mxu0
    %v176 = vadd.f32 %v106, %v171
    %v177 = vxor.u32 %v176, 2147483648
    %v178 = vmul.f32 %v177, 1.442695
    %v179 = vpow.pop %v178
    %v180 = vadd.f32 %v179, 1.0
    %v181 = vrcp.pop %v180
    %v182 = vmul.f32 1.0, %v181
    %v183 = vtanh.pop %v176
    %v184 = vmul.f32 %v182, 0.0
    %186 = vrot.lane.b32.xlu0 %v183, 64
    %v187 = vpop.permute.xlu0 %186
    %v189 = vmul.f32 %v182, %v187
    %191 = vrot.lane.b32.xlu0 %v189, 32
    %v192 = vpop.permute.xlu0 %191
    %v194 = vadd.f32 %v184, %v192
    %v195 = vtanh.pop %v194
    %197 = vrot.lane.b32.xlu0 %v195, 64
    %v198 = vpop.permute.xlu0 %197
    %v200 = vmul.f32 %v182, %v198
    %v201 = vpack.c.bf16 %v200, %v200
    %203 = vrot.lane.b32.xlu0 %v201, 32
    %v204 = vpop.permute.xlu0 %203
    %v206 = vsel %vm132, %v204, 0
    %208 = vmatprep.subr.bf16.mxu0 0
    %209 = vmatpush1.bf16.msra.mxu0 %v128
    %210 = vmatprep.subr.bf16.mxu0 0
    %211 = vmatpush1.bf16.msra.mxu0 %v129
    %212 = vmatprep.subr.bf16.mxu0 0
    %213 = vmatpush1.bf16.msra.mxu0 0
    %214 = vmatprep.subr.bf16.mxu0 0
    %215 = vmatpush1.bf16.msra.mxu0 0
    %216 = vmatprep.subr.bf16.mxu0 0
    %217 = vmatpush1.bf16.msra.mxu0 0
    %218 = vmatprep.subr.bf16.mxu0 0
    %219 = vmatpush1.bf16.msra.mxu0 0
    %220 = vmatprep.subr.bf16.mxu0 0
    %221 = vmatpush1.bf16.msra.mxu0 0
    %222 = vmatprep.subr.bf16.mxu0 0
    %223 = vmatpush1.bf16.msra.mxu0 0
    %224 = vmatprep.subr.bf16.mxu0 0
    %225 = vmatpush1.bf16.msra.mxu0 0
    %226 = vmatprep.subr.bf16.mxu0 0
    %227 = vmatpush1.bf16.msra.mxu0 0
    %228 = vmatprep.subr.bf16.mxu0 0
    %229 = vmatpush1.bf16.msra.mxu0 0
    %230 = vmatprep.subr.bf16.mxu0 0
    %231 = vmatpush1.bf16.msra.mxu0 0
    %232 = vmatprep.subr.bf16.mxu0 0
    %233 = vmatpush1.bf16.msra.mxu0 0
    %234 = vmatprep.subr.bf16.mxu0 0
    %235 = vmatpush1.bf16.msra.mxu0 0
    %236 = vmatprep.subr.bf16.mxu0 0
    %237 = vmatpush1.bf16.msra.mxu0 0
    %238 = vmatprep.subr.bf16.mxu0 0
    %239 = vmatpush1.bf16.msra.mxu0 0
    %240 = vmatprep.mubr.bf16.mxu0 0
    %241 = vmatmul.mubr.bf16.gmra.mrb[0].mxu0 %v206
    %v242 = vpop.f32.mrb[0].mxu0
    %v243 = vadd.f32 0.0, %v242
    %v244 = vpop.f32.mrb[0].mxu0
    %v245 = vpop.f32.mrb[0].mxu0
    %v246 = vpop.f32.mrb[0].mxu0
    %247 = vdwg.mxu0
    %v249 = vrot.slane %v243, 6
    %v251 = vadd.f32 %v106, %v249
    %v252 = vxor.u32 %v251, 2147483648
    %v253 = vmul.f32 %v252, 1.442695
    %v254 = vpow.pop %v253
    %v255 = vadd.f32 %v254, 1.0
    %v256 = vrcp.pop %v255
    %v257 = vmul.f32 1.0, %v256
    %v258 = vtanh.pop %v251
    %v260 = vrot.slane %v194, 6
    %v262 = vmul.f32 %v257, %v260
    %264 = vrot.lane.b32.xlu0 %v258, 64
    %v265 = vpop.permute.xlu0 %264
    %v267 = vmul.f32 %v257, %v265
    %269 = vrot.lane.b32.xlu0 %v267, 32
    %v270 = vpop.permute.xlu0 %269
    %v272 = vadd.f32 %v262, %v270
    %v273 = vtanh.pop %v272
    %275 = vrot.lane.b32.xlu0 %v273, 64
    %v276 = vpop.permute.xlu0 %275
    %v278 = vmul.f32 %v257, %v276
    %280 = vrot.lane.b32.xlu0 %v200, 32
    %v281 = vpop.permute.xlu0 %280
    %v283 = vsel %vm132, %v281, 0.0
    %v284 = vpack.c.bf16 %v283, %v283
    %v286 = vlaneseq
    %v287 = vshrl.u32 %v286, 7
    %v288 = vsub.s32 0, %v287
    %v289 = vrot.slane %v39, %v288
    %v299 = vunpack.c.l.b16 %v31
    %v300 = vunpack.c.l.b16 %v32
    %v301 = vunpack.c.l.b16 %v33
    %v302 = vunpack.c.l.b16 %v34
    %v303 = vunpack.c.l.b16 %v35
    %v304 = vunpack.c.l.b16 %v36
    %v305 = vunpack.c.l.b16 %v37
    %v306 = vunpack.c.l.b16 %v38
    %v307 = vpack.c.b16 %v300, %v299
    %v308 = vpack.c.b16 %v302, %v301
    %v309 = vpack.c.b16 %v304, %v303
    %v310 = vpack.c.b16 %v306, %v305
    %vm315 = vcmask 523264
    %v317 = vsel %vm315, %v284, 0
    %319 = vmatprep.subr.bf16.mxu0 0
    %320 = vmatpush1.bf16.msra.mxu0 %v307
    %321 = vmatprep.subr.bf16.mxu0 0
    %322 = vmatpush1.bf16.msra.mxu0 %v308
    %323 = vmatprep.subr.bf16.mxu0 0
    %324 = vmatpush1.bf16.msra.mxu0 %v309
    %325 = vmatprep.subr.bf16.mxu0 0
    %326 = vmatpush1.bf16.msra.mxu0 %v310
    %327 = vmatprep.subr.bf16.mxu0 0
    %328 = vmatpush1.bf16.msra.mxu0 0
    %329 = vmatprep.subr.bf16.mxu0 0
    %330 = vmatpush1.bf16.msra.mxu0 0
    %331 = vmatprep.subr.bf16.mxu0 0
    %332 = vmatpush1.bf16.msra.mxu0 0
    %333 = vmatprep.subr.bf16.mxu0 0
    %334 = vmatpush1.bf16.msra.mxu0 0
    %335 = vmatprep.subr.bf16.mxu0 0
    %336 = vmatpush1.bf16.msra.mxu0 0
    %337 = vmatprep.subr.bf16.mxu0 0
    %338 = vmatpush1.bf16.msra.mxu0 0
    %339 = vmatprep.subr.bf16.mxu0 0
    %340 = vmatpush1.bf16.msra.mxu0 0
    %341 = vmatprep.subr.bf16.mxu0 0
    %342 = vmatpush1.bf16.msra.mxu0 0
    %343 = vmatprep.subr.bf16.mxu0 0
    %344 = vmatpush1.bf16.msra.mxu0 0
    %345 = vmatprep.subr.bf16.mxu0 0
    %346 = vmatpush1.bf16.msra.mxu0 0
    %347 = vmatprep.subr.bf16.mxu0 0
    %348 = vmatpush1.bf16.msra.mxu0 0
    %349 = vmatprep.subr.bf16.mxu0 0
    %350 = vmatpush1.bf16.msra.mxu0 0
    %351 = vmatprep.mubr.bf16.mxu0 0
    %352 = vmatmul.mubr.bf16.gmra.mrb[0].mxu0 %v317
    %v353 = vpop.f32.mrb[0].mxu0
    %v354 = vadd.f32 %v289, %v353
    %v355 = vpop.f32.mrb[0].mxu0
    %v356 = vpop.f32.mrb[0].mxu0
    %v357 = vpop.f32.mrb[0].mxu0
    %358 = vdwg.mxu0
    %v359 = vxor.u32 %v354, 2147483648
    %v360 = vmul.f32 %v359, 1.442695
    %v361 = vpow.pop %v360
    %v362 = vadd.f32 %v361, 1.0
    %v363 = vrcp.pop %v362
    %v364 = vmul.f32 1.0, %v363
    %v365 = vtanh.pop %v354
    %v366 = vmul.f32 %v364, 0.0
    %368 = vrot.lane.b32.xlu0 %v365, 64
    %v369 = vpop.permute.xlu0 %368
    %v371 = vmul.f32 %v364, %v369
    %373 = vrot.lane.b32.xlu0 %v371, 32
    %v374 = vpop.permute.xlu0 %373
    %v376 = vadd.f32 %v366, %v374
    %v377 = vtanh.pop %v376
    %379 = vrot.lane.b32.xlu0 %v377, 64
    %v380 = vpop.permute.xlu0 %379
    %v382 = vmul.f32 %v364, %v380
    %v383 = vpack.c.bf16 %v278, %v278
    %v385 = vrot.slane %v383, 1
    %386 = vrot.lane.b32.xlu0 %v385, 32
    %v387 = vpop.permute.xlu0 %386
    %v389 = vsel %vm132, %v387, 0
    %391 = vmatprep.subr.bf16.mxu0 0
    %392 = vmatpush1.bf16.msra.mxu0 %v128
    %393 = vmatprep.subr.bf16.mxu0 0
    %394 = vmatpush1.bf16.msra.mxu0 %v129
    %395 = vmatprep.subr.bf16.mxu0 0
    %396 = vmatpush1.bf16.msra.mxu0 0
    %397 = vmatprep.subr.bf16.mxu0 0
    %398 = vmatpush1.bf16.msra.mxu0 0
    %399 = vmatprep.subr.bf16.mxu0 0
    %400 = vmatpush1.bf16.msra.mxu0 0
    %401 = vmatprep.subr.bf16.mxu0 0
    %402 = vmatpush1.bf16.msra.mxu0 0
    %403 = vmatprep.subr.bf16.mxu0 0
    %404 = vmatpush1.bf16.msra.mxu0 0
    %405 = vmatprep.subr.bf16.mxu0 0
    %406 = vmatpush1.bf16.msra.mxu0 0
    %407 = vmatprep.subr.bf16.mxu0 0
    %408 = vmatpush1.bf16.msra.mxu0 0
    %409 = vmatprep.subr.bf16.mxu0 0
    %410 = vmatpush1.bf16.msra.mxu0 0
    %411 = vmatprep.subr.bf16.mxu0 0
    %412 = vmatpush1.bf16.msra.mxu0 0
    %413 = vmatprep.subr.bf16.mxu0 0
    %414 = vmatpush1.bf16.msra.mxu0 0
    %415 = vmatprep.subr.bf16.mxu0 0
    %416 = vmatpush1.bf16.msra.mxu0 0
    %417 = vmatprep.subr.bf16.mxu0 0
    %418 = vmatpush1.bf16.msra.mxu0 0
    %419 = vmatprep.subr.bf16.mxu0 0
    %420 = vmatpush1.bf16.msra.mxu0 0
    %421 = vmatprep.subr.bf16.mxu0 0
    %422 = vmatpush1.bf16.msra.mxu0 0
    %423 = vmatprep.mubr.bf16.mxu0 0
    %424 = vmatmul.mubr.bf16.gmra.mrb[0].mxu0 %v389
    %v425 = vpop.f32.mrb[0].mxu0
    %v426 = vadd.f32 0.0, %v425
    %v427 = vpop.f32.mrb[0].mxu0
    %v428 = vpop.f32.mrb[0].mxu0
    %v429 = vpop.f32.mrb[0].mxu0
    %430 = vdwg.mxu0
    %v432 = vrot.slane %v426, 4
    %v434 = vadd.f32 %v106, %v432
    %v435 = vxor.u32 %v434, 2147483648
    %v436 = vmul.f32 %v435, 1.442695
    %v437 = vpow.pop %v436
    %v438 = vadd.f32 %v437, 1.0
    %v439 = vrcp.pop %v438
    %v440 = vmul.f32 1.0, %v439
    %v441 = vtanh.pop %v434
    %v443 = vrot.slane %v272, 6
    %v445 = vmul.f32 %v440, %v443
    %447 = vrot.lane.b32.xlu0 %v441, 64
    %v448 = vpop.permute.xlu0 %447
    %v450 = vmul.f32 %v440, %v448
    %452 = vrot.lane.b32.xlu0 %v450, 32
    %v453 = vpop.permute.xlu0 %452
    %v455 = vadd.f32 %v445, %v453
    %v456 = vtanh.pop %v455
    %458 = vrot.lane.b32.xlu0 %v456, 64
    %v459 = vpop.permute.xlu0 %458
    %v461 = vmul.f32 %v440, %v459
    %463 = vrot.lane.b32.xlu0 %v278, 32
    %v464 = vpop.permute.xlu0 %463
    %v467 = vrot.slane %v382, 6
    %468 = vrot.lane.b32.xlu0 %v467, 64
    %v469 = vpop.permute.xlu0 %468
    %v471 = vsel %vm132, %v464, %v469
    %v472 = vpack.c.bf16 %v471, %v471
    %v474 = vrot.slane %v472, 1
    %v476 = vsel %vm315, %v474, 0
    %478 = vmatprep.subr.bf16.mxu0 0
    %479 = vmatpush1.bf16.msra.mxu0 %v307
    %480 = vmatprep.subr.bf16.mxu0 0
    %481 = vmatpush1.bf16.msra.mxu0 %v308
    %482 = vmatprep.subr.bf16.mxu0 0
    %483 = vmatpush1.bf16.msra.mxu0 %v309
    %484 = vmatprep.subr.bf16.mxu0 0
    %485 = vmatpush1.bf16.msra.mxu0 %v310
    %486 = vmatprep.subr.bf16.mxu0 0
    %487 = vmatpush1.bf16.msra.mxu0 0
    %488 = vmatprep.subr.bf16.mxu0 0
    %489 = vmatpush1.bf16.msra.mxu0 0
    %490 = vmatprep.subr.bf16.mxu0 0
    %491 = vmatpush1.bf16.msra.mxu0 0
    %492 = vmatprep.subr.bf16.mxu0 0
    %493 = vmatpush1.bf16.msra.mxu0 0
    %494 = vmatprep.subr.bf16.mxu0 0
    %495 = vmatpush1.bf16.msra.mxu0 0
    %496 = vmatprep.subr.bf16.mxu0 0
    %497 = vmatpush1.bf16.msra.mxu0 0
    %498 = vmatprep.subr.bf16.mxu0 0
    %499 = vmatpush1.bf16.msra.mxu0 0
    %500 = vmatprep.subr.bf16.mxu0 0
    %501 = vmatpush1.bf16.msra.mxu0 0
    %502 = vmatprep.subr.bf16.mxu0 0
    %503 = vmatpush1.bf16.msra.mxu0 0
    %504 = vmatprep.subr.bf16.mxu0 0
    %505 = vmatpush1.bf16.msra.mxu0 0
    %506 = vmatprep.subr.bf16.mxu0 0
    %507 = vmatpush1.bf16.msra.mxu0 0
    %508 = vmatprep.subr.bf16.mxu0 0
    %509 = vmatpush1.bf16.msra.mxu0 0
    %510 = vmatprep.mubr.bf16.mxu0 0
    %511 = vmatmul.mubr.bf16.gmra.mrb[0].mxu0 %v476
    %v512 = vpop.f32.mrb[0].mxu0
    %v513 = vadd.f32 %v289, %v512
    %v514 = vpop.f32.mrb[0].mxu0
    %v515 = vpop.f32.mrb[0].mxu0
    %v516 = vpop.f32.mrb[0].mxu0
    %517 = vdwg.mxu0
    %v518 = vxor.u32 %v513, 2147483648
    %v519 = vmul.f32 %v518, 1.442695
    %v520 = vpow.pop %v519
    %v521 = vadd.f32 %v520, 1.0
    %v522 = vrcp.pop %v521
    %v523 = vmul.f32 1.0, %v522
    %v524 = vtanh.pop %v513
    %v525 = vmul.f32 %v523, %v376
    %527 = vrot.lane.b32.xlu0 %v524, 64
    %v528 = vpop.permute.xlu0 %527
    %v530 = vmul.f32 %v523, %v528
    %532 = vrot.lane.b32.xlu0 %v530, 32
    %v533 = vpop.permute.xlu0 %532
    %v535 = vadd.f32 %v525, %v533
    %v536 = vtanh.pop %v535
    %538 = vrot.lane.b32.xlu0 %v536, 64
    %v539 = vpop.permute.xlu0 %538
    %v541 = vmul.f32 %v523, %v539
    %v542 = vpack.c.bf16 %v461, %v461
    %v544 = vrot.slane %v542, 2
    %545 = vrot.lane.b32.xlu0 %v544, 32
    %v546 = vpop.permute.xlu0 %545
    %v548 = vsel %vm132, %v546, 0
    %550 = vmatprep.subr.bf16.mxu0 0
    %551 = vmatpush1.bf16.msra.mxu0 %v128
    %552 = vmatprep.subr.bf16.mxu0 0
    %553 = vmatpush1.bf16.msra.mxu0 %v129
    %554 = vmatprep.subr.bf16.mxu0 0
    %555 = vmatpush1.bf16.msra.mxu0 0
    %556 = vmatprep.subr.bf16.mxu0 0
    %557 = vmatpush1.bf16.msra.mxu0 0
    %558 = vmatprep.subr.bf16.mxu0 0
    %559 = vmatpush1.bf16.msra.mxu0 0
    %560 = vmatprep.subr.bf16.mxu0 0
    %561 = vmatpush1.bf16.msra.mxu0 0
    %562 = vmatprep.subr.bf16.mxu0 0
    %563 = vmatpush1.bf16.msra.mxu0 0
    %564 = vmatprep.subr.bf16.mxu0 0
    %565 = vmatpush1.bf16.msra.mxu0 0
    %566 = vmatprep.subr.bf16.mxu0 0
    %567 = vmatpush1.bf16.msra.mxu0 0
    %568 = vmatprep.subr.bf16.mxu0 0
    %569 = vmatpush1.bf16.msra.mxu0 0
    %570 = vmatprep.subr.bf16.mxu0 0
    %571 = vmatpush1.bf16.msra.mxu0 0
    %572 = vmatprep.subr.bf16.mxu0 0
    %573 = vmatpush1.bf16.msra.mxu0 0
    %574 = vmatprep.subr.bf16.mxu0 0
    %575 = vmatpush1.bf16.msra.mxu0 0
    %576 = vmatprep.subr.bf16.mxu0 0
    %577 = vmatpush1.bf16.msra.mxu0 0
    %578 = vmatprep.subr.bf16.mxu0 0
    %579 = vmatpush1.bf16.msra.mxu0 0
    %580 = vmatprep.subr.bf16.mxu0 0
    %581 = vmatpush1.bf16.msra.mxu0 0
    %582 = vmatprep.mubr.bf16.mxu0 0
    %583 = vmatmul.mubr.bf16.gmra.mrb[0].mxu0 %v548
    %v584 = vpop.f32.mrb[0].mxu0
    %v585 = vadd.f32 0.0, %v584
    %v586 = vpop.f32.mrb[0].mxu0
    %v587 = vpop.f32.mrb[0].mxu0
    %v588 = vpop.f32.mrb[0].mxu0
    %589 = vdwg.mxu0
    %v591 = vrot.slane %v585, 2
    %v593 = vadd.f32 %v106, %v591
    %v594 = vxor.u32 %v593, 2147483648
    %v595 = vmul.f32 %v594, 1.442695
    %v596 = vpow.pop %v595
    %v597 = vadd.f32 %v596, 1.0
    %v598 = vrcp.pop %v597
    %v599 = vmul.f32 1.0, %v598
    %v600 = vtanh.pop %v593
    %v602 = vrot.slane %v455, 6
    %v604 = vmul.f32 %v599, %v602
    %606 = vrot.lane.b32.xlu0 %v600, 64
    %v607 = vpop.permute.xlu0 %606
    %v609 = vmul.f32 %v599, %v607
    %611 = vrot.lane.b32.xlu0 %v609, 32
    %v612 = vpop.permute.xlu0 %611
    %v614 = vadd.f32 %v604, %v612
    %v615 = vtanh.pop %v614
    %617 = vrot.lane.b32.xlu0 %v615, 64
    %v618 = vpop.permute.xlu0 %617
    %v620 = vmul.f32 %v599, %v618
    %622 = vrot.lane.b32.xlu0 %v461, 32
    %v623 = vpop.permute.xlu0 %622
    %v626 = vrot.slane %v541, 4
    %627 = vrot.lane.b32.xlu0 %v626, 64
    %v628 = vpop.permute.xlu0 %627
    %v630 = vsel %vm132, %v623, %v628
    %v631 = vpack.c.bf16 %v630, %v630
    %v633 = vrot.slane %v631, 2
    %v635 = vsel %vm315, %v633, 0
    %637 = vmatprep.subr.bf16.mxu0 0
    %638 = vmatpush1.bf16.msra.mxu0 %v307
    %639 = vmatprep.subr.bf16.mxu0 0
    %640 = vmatpush1.bf16.msra.mxu0 %v308
    %641 = vmatprep.subr.bf16.mxu0 0
    %642 = vmatpush1.bf16.msra.mxu0 %v309
    %643 = vmatprep.subr.bf16.mxu0 0
    %644 = vmatpush1.bf16.msra.mxu0 %v310
    %645 = vmatprep.subr.bf16.mxu0 0
    %646 = vmatpush1.bf16.msra.mxu0 0
    %647 = vmatprep.subr.bf16.mxu0 0
    %648 = vmatpush1.bf16.msra.mxu0 0
    %649 = vmatprep.subr.bf16.mxu0 0
    %650 = vmatpush1.bf16.msra.mxu0 0
    %651 = vmatprep.subr.bf16.mxu0 0
    %652 = vmatpush1.bf16.msra.mxu0 0
    %653 = vmatprep.subr.bf16.mxu0 0
    %654 = vmatpush1.bf16.msra.mxu0 0
    %655 = vmatprep.subr.bf16.mxu0 0
    %656 = vmatpush1.bf16.msra.mxu0 0
    %657 = vmatprep.subr.bf16.mxu0 0
    %658 = vmatpush1.bf16.msra.mxu0 0
    %659 = vmatprep.subr.bf16.mxu0 0
    %660 = vmatpush1.bf16.msra.mxu0 0
    %661 = vmatprep.subr.bf16.mxu0 0
    %662 = vmatpush1.bf16.msra.mxu0 0
    %663 = vmatprep.subr.bf16.mxu0 0
    %664 = vmatpush1.bf16.msra.mxu0 0
    %665 = vmatprep.subr.bf16.mxu0 0
    %666 = vmatpush1.bf16.msra.mxu0 0
    %667 = vmatprep.subr.bf16.mxu0 0
    %668 = vmatpush1.bf16.msra.mxu0 0
    %669 = vmatprep.mubr.bf16.mxu0 0
    %670 = vmatmul.mubr.bf16.gmra.mrb[0].mxu0 %v635
    %v671 = vpop.f32.mrb[0].mxu0
    %v672 = vadd.f32 %v289, %v671
    %v673 = vpop.f32.mrb[0].mxu0
    %v674 = vpop.f32.mrb[0].mxu0
    %v675 = vpop.f32.mrb[0].mxu0
    %676 = vdwg.mxu0
    %v677 = vxor.u32 %v672, 2147483648
    %v678 = vmul.f32 %v677, 1.442695
    %v679 = vpow.pop %v678
    %v680 = vadd.f32 %v679, 1.0
    %v681 = vrcp.pop %v680
    %v682 = vmul.f32 1.0, %v681
    %v683 = vtanh.pop %v672
    %v684 = vmul.f32 %v682, %v535
    %686 = vrot.lane.b32.xlu0 %v683, 64
    %v687 = vpop.permute.xlu0 %686
    %v689 = vmul.f32 %v682, %v687
    %691 = vrot.lane.b32.xlu0 %v689, 32
    %v692 = vpop.permute.xlu0 %691
    %v694 = vadd.f32 %v684, %v692
    %v695 = vtanh.pop %v694
    %697 = vrot.lane.b32.xlu0 %v695, 64
    %v698 = vpop.permute.xlu0 %697
    %v700 = vmul.f32 %v682, %v698
    %v701 = vpack.c.bf16 %v620, %v620
    %v703 = vrot.slane %v701, 3
    %704 = vrot.lane.b32.xlu0 %v703, 32
    %v705 = vpop.permute.xlu0 %704
    %v707 = vsel %vm132, %v705, 0
    %709 = vmatprep.subr.bf16.mxu0 0
    %710 = vmatpush1.bf16.msra.mxu0 %v128
    %711 = vmatprep.subr.bf16.mxu0 0
    %712 = vmatpush1.bf16.msra.mxu0 %v129
    %713 = vmatprep.subr.bf16.mxu0 0
    %714 = vmatpush1.bf16.msra.mxu0 0
    %715 = vmatprep.subr.bf16.mxu0 0
    %716 = vmatpush1.bf16.msra.mxu0 0
    %717 = vmatprep.subr.bf16.mxu0 0
    %718 = vmatpush1.bf16.msra.mxu0 0
    %719 = vmatprep.subr.bf16.mxu0 0
    %720 = vmatpush1.bf16.msra.mxu0 0
    %721 = vmatprep.subr.bf16.mxu0 0
    %722 = vmatpush1.bf16.msra.mxu0 0
    %723 = vmatprep.subr.bf16.mxu0 0
    %724 = vmatpush1.bf16.msra.mxu0 0
    %725 = vmatprep.subr.bf16.mxu0 0
    %726 = vmatpush1.bf16.msra.mxu0 0
    %727 = vmatprep.subr.bf16.mxu0 0
    %728 = vmatpush1.bf16.msra.mxu0 0
    %729 = vmatprep.subr.bf16.mxu0 0
    %730 = vmatpush1.bf16.msra.mxu0 0
    %731 = vmatprep.subr.bf16.mxu0 0
    %732 = vmatpush1.bf16.msra.mxu0 0
    %733 = vmatprep.subr.bf16.mxu0 0
    %734 = vmatpush1.bf16.msra.mxu0 0
    %735 = vmatprep.subr.bf16.mxu0 0
    %736 = vmatpush1.bf16.msra.mxu0 0
    %737 = vmatprep.subr.bf16.mxu0 0
    %738 = vmatpush1.bf16.msra.mxu0 0
    %739 = vmatprep.subr.bf16.mxu0 0
    %740 = vmatpush1.bf16.msra.mxu0 0
    %741 = vmatprep.mubr.bf16.mxu0 0
    %742 = vmatmul.mubr.bf16.gmra.mrb[0].mxu0 %v707
    %v743 = vpop.f32.mrb[0].mxu0
    %v744 = vadd.f32 0.0, %v743
    %v745 = vpop.f32.mrb[0].mxu0
    %v746 = vpop.f32.mrb[0].mxu0
    %v747 = vpop.f32.mrb[0].mxu0
    %748 = vdwg.mxu0
    %v749 = vadd.f32 %v109, %v744
    %v750 = vxor.u32 %v749, 2147483648
    %v751 = vmul.f32 %v750, 1.442695
    %v752 = vpow.pop %v751
    %v753 = vadd.f32 %v752, 1.0
    %v754 = vrcp.pop %v753
    %v755 = vmul.f32 1.0, %v754
    %v756 = vtanh.pop %v749
    %v758 = vrot.slane %v614, 6
    %v760 = vmul.f32 %v755, %v758
    %762 = vrot.lane.b32.xlu0 %v756, 64
    %v763 = vpop.permute.xlu0 %762
    %v765 = vmul.f32 %v755, %v763
    %767 = vrot.lane.b32.xlu0 %v765, 32
    %v768 = vpop.permute.xlu0 %767
    %v770 = vadd.f32 %v760, %v768
    %v771 = vtanh.pop %v770
    %773 = vrot.lane.b32.xlu0 %v771, 64
    %v774 = vpop.permute.xlu0 %773
    %v776 = vmul.f32 %v755, %v774
    %778 = vrot.lane.b32.xlu0 %v620, 32
    %v779 = vpop.permute.xlu0 %778
    %v782 = vrot.slane %v700, 2
    %783 = vrot.lane.b32.xlu0 %v782, 64
    %v784 = vpop.permute.xlu0 %783
    %v786 = vsel %vm132, %v779, %v784
    %v787 = vpack.c.bf16 %v786, %v786
    %v789 = vrot.slane %v787, 3
    %v791 = vsel %vm315, %v789, 0
    %793 = vmatprep.subr.bf16.mxu0 0
    %794 = vmatpush1.bf16.msra.mxu0 %v307
    %795 = vmatprep.subr.bf16.mxu0 0
    %796 = vmatpush1.bf16.msra.mxu0 %v308
    %797 = vmatprep.subr.bf16.mxu0 0
    %798 = vmatpush1.bf16.msra.mxu0 %v309
    %799 = vmatprep.subr.bf16.mxu0 0
    %800 = vmatpush1.bf16.msra.mxu0 %v310
    %801 = vmatprep.subr.bf16.mxu0 0
    %802 = vmatpush1.bf16.msra.mxu0 0
    %803 = vmatprep.subr.bf16.mxu0 0
    %804 = vmatpush1.bf16.msra.mxu0 0
    %805 = vmatprep.subr.bf16.mxu0 0
    %806 = vmatpush1.bf16.msra.mxu0 0
    %807 = vmatprep.subr.bf16.mxu0 0
    %808 = vmatpush1.bf16.msra.mxu0 0
    %809 = vmatprep.subr.bf16.mxu0 0
    %810 = vmatpush1.bf16.msra.mxu0 0
    %811 = vmatprep.subr.bf16.mxu0 0
    %812 = vmatpush1.bf16.msra.mxu0 0
    %813 = vmatprep.subr.bf16.mxu0 0
    %814 = vmatpush1.bf16.msra.mxu0 0
    %815 = vmatprep.subr.bf16.mxu0 0
    %816 = vmatpush1.bf16.msra.mxu0 0
    %817 = vmatprep.subr.bf16.mxu0 0
    %818 = vmatpush1.bf16.msra.mxu0 0
    %819 = vmatprep.subr.bf16.mxu0 0
    %820 = vmatpush1.bf16.msra.mxu0 0
    %821 = vmatprep.subr.bf16.mxu0 0
    %822 = vmatpush1.bf16.msra.mxu0 0
    %823 = vmatprep.subr.bf16.mxu0 0
    %824 = vmatpush1.bf16.msra.mxu0 0
    %825 = vmatprep.mubr.bf16.mxu0 0
    %826 = vmatmul.mubr.bf16.gmra.mrb[0].mxu0 %v791
    %v827 = vpop.f32.mrb[0].mxu0
    %v828 = vadd.f32 %v289, %v827
    %v829 = vpop.f32.mrb[0].mxu0
    %v830 = vpop.f32.mrb[0].mxu0
    %v831 = vpop.f32.mrb[0].mxu0
    %832 = vdwg.mxu0
    %v833 = vxor.u32 %v828, 2147483648
    %v834 = vmul.f32 %v833, 1.442695
    %v835 = vpow.pop %v834
    %v836 = vadd.f32 %v835, 1.0
    %v837 = vrcp.pop %v836
    %v838 = vmul.f32 1.0, %v837
    %v839 = vtanh.pop %v828
    %v840 = vmul.f32 %v838, %v694
    %842 = vrot.lane.b32.xlu0 %v839, 64
    %v843 = vpop.permute.xlu0 %842
    %v845 = vmul.f32 %v838, %v843
    %847 = vrot.lane.b32.xlu0 %v845, 32
    %v848 = vpop.permute.xlu0 %847
    %v850 = vadd.f32 %v840, %v848
    %v851 = vtanh.pop %v850
    %853 = vrot.lane.b32.xlu0 %v851, 64
    %v854 = vpop.permute.xlu0 %853
    %v856 = vmul.f32 %v838, %v854
    %v857 = vpack.c.bf16 %v776, %v776
    %859 = vrot.lane.b32.xlu0 %v857, 32
    %v860 = vpop.permute.xlu0 %859
    %v862 = vsel %vm132, %v860, 0
    %864 = vmatprep.subr.bf16.mxu0 0
    %865 = vmatpush1.bf16.msra.mxu0 %v128
    %866 = vmatprep.subr.bf16.mxu0 0
    %867 = vmatpush1.bf16.msra.mxu0 %v129
    %868 = vmatprep.subr.bf16.mxu0 0
    %869 = vmatpush1.bf16.msra.mxu0 0
    %870 = vmatprep.subr.bf16.mxu0 0
    %871 = vmatpush1.bf16.msra.mxu0 0
    %872 = vmatprep.subr.bf16.mxu0 0
    %873 = vmatpush1.bf16.msra.mxu0 0
    %874 = vmatprep.subr.bf16.mxu0 0
    %875 = vmatpush1.bf16.msra.mxu0 0
    %876 = vmatprep.subr.bf16.mxu0 0
    %877 = vmatpush1.bf16.msra.mxu0 0
    %878 = vmatprep.subr.bf16.mxu0 0
    %879 = vmatpush1.bf16.msra.mxu0 0
    %880 = vmatprep.subr.bf16.mxu0 0
    %881 = vmatpush1.bf16.msra.mxu0 0
    %882 = vmatprep.subr.bf16.mxu0 0
    %883 = vmatpush1.bf16.msra.mxu0 0
    %884 = vmatprep.subr.bf16.mxu0 0
    %885 = vmatpush1.bf16.msra.mxu0 0
    %886 = vmatprep.subr.bf16.mxu0 0
    %887 = vmatpush1.bf16.msra.mxu0 0
    %888 = vmatprep.subr.bf16.mxu0 0
    %889 = vmatpush1.bf16.msra.mxu0 0
    %890 = vmatprep.subr.bf16.mxu0 0
    %891 = vmatpush1.bf16.msra.mxu0 0
    %892 = vmatprep.subr.bf16.mxu0 0
    %893 = vmatpush1.bf16.msra.mxu0 0
    %894 = vmatprep.subr.bf16.mxu0 0
    %895 = vmatpush1.bf16.msra.mxu0 0
    %896 = vmatprep.mubr.bf16.mxu0 0
    %897 = vmatmul.mubr.bf16.gmra.mrb[0].mxu0 %v862
    %v898 = vpop.f32.mrb[0].mxu0
    %v899 = vadd.f32 0.0, %v898
    %v900 = vpop.f32.mrb[0].mxu0
    %v901 = vpop.f32.mrb[0].mxu0
    %v902 = vpop.f32.mrb[0].mxu0
    %903 = vdwg.mxu0
    %v905 = vrot.slane %v899, 6
    %v907 = vadd.f32 %v109, %v905
    %v908 = vxor.u32 %v907, 2147483648
    %v909 = vmul.f32 %v908, 1.442695
    %v910 = vpow.pop %v909
    %v911 = vadd.f32 %v910, 1.0
    %v912 = vrcp.pop %v911
    %v913 = vmul.f32 1.0, %v912
    %v914 = vtanh.pop %v907
    %v916 = vrot.slane %v770, 6
    %v918 = vmul.f32 %v913, %v916
    %920 = vrot.lane.b32.xlu0 %v914, 64
    %v921 = vpop.permute.xlu0 %920
    %v923 = vmul.f32 %v913, %v921
    %925 = vrot.lane.b32.xlu0 %v923, 32
    %v926 = vpop.permute.xlu0 %925
    %v928 = vadd.f32 %v918, %v926
    %v929 = vtanh.pop %v928
    %931 = vrot.lane.b32.xlu0 %v929, 64
    %v932 = vpop.permute.xlu0 %931
    %v934 = vmul.f32 %v913, %v932
    %936 = vrot.lane.b32.xlu0 %v776, 32
    %v937 = vpop.permute.xlu0 %936
    %940 = vrot.lane.b32.xlu0 %v856, 64
    %v941 = vpop.permute.xlu0 %940
    %v943 = vsel %vm132, %v937, %v941
    %v944 = vpack.c.bf16 %v943, %v943
    %v946 = vsel %vm315, %v944, 0
    %948 = vmatprep.subr.bf16.mxu0 0
    %949 = vmatpush1.bf16.msra.mxu0 %v307
    %950 = vmatprep.subr.bf16.mxu0 0
    %951 = vmatpush1.bf16.msra.mxu0 %v308
    %952 = vmatprep.subr.bf16.mxu0 0
    %953 = vmatpush1.bf16.msra.mxu0 %v309
    %954 = vmatprep.subr.bf16.mxu0 0
    %955 = vmatpush1.bf16.msra.mxu0 %v310
    %956 = vmatprep.subr.bf16.mxu0 0
    %957 = vmatpush1.bf16.msra.mxu0 0
    %958 = vmatprep.subr.bf16.mxu0 0
    %959 = vmatpush1.bf16.msra.mxu0 0
    %960 = vmatprep.subr.bf16.mxu0 0
    %961 = vmatpush1.bf16.msra.mxu0 0
    %962 = vmatprep.subr.bf16.mxu0 0
    %963 = vmatpush1.bf16.msra.mxu0 0
    %964 = vmatprep.subr.bf16.mxu0 0
    %965 = vmatpush1.bf16.msra.mxu0 0
    %966 = vmatprep.subr.bf16.mxu0 0
    %967 = vmatpush1.bf16.msra.mxu0 0
    %968 = vmatprep.subr.bf16.mxu0 0
    %969 = vmatpush1.bf16.msra.mxu0 0
    %970 = vmatprep.subr.bf16.mxu0 0
    %971 = vmatpush1.bf16.msra.mxu0 0
    %972 = vmatprep.subr.bf16.mxu0 0
    %973 = vmatpush1.bf16.msra.mxu0 0
    %974 = vmatprep.subr.bf16.mxu0 0
    %975 = vmatpush1.bf16.msra.mxu0 0
    %976 = vmatprep.subr.bf16.mxu0 0
    %977 = vmatpush1.bf16.msra.mxu0 0
    %978 = vmatprep.subr.bf16.mxu0 0
    %979 = vmatpush1.bf16.msra.mxu0 0
    %980 = vmatprep.mubr.bf16.mxu0 0
    %981 = vmatmul.mubr.bf16.gmra.mrb[0].mxu0 %v946
    %v982 = vpop.f32.mrb[0].mxu0
    %v983 = vadd.f32 %v289, %v982
    %v984 = vpop.f32.mrb[0].mxu0
    %v985 = vpop.f32.mrb[0].mxu0
    %v986 = vpop.f32.mrb[0].mxu0
    %987 = vdwg.mxu0
    %v988 = vxor.u32 %v983, 2147483648
    %v989 = vmul.f32 %v988, 1.442695
    %v990 = vpow.pop %v989
    %v991 = vadd.f32 %v990, 1.0
    %v992 = vrcp.pop %v991
    %v993 = vmul.f32 1.0, %v992
    %v994 = vtanh.pop %v983
    %v995 = vmul.f32 %v993, %v850
    %997 = vrot.lane.b32.xlu0 %v994, 64
    %v998 = vpop.permute.xlu0 %997
    %v1000 = vmul.f32 %v993, %v998
    %1002 = vrot.lane.b32.xlu0 %v1000, 32
    %v1003 = vpop.permute.xlu0 %1002
    %v1005 = vadd.f32 %v995, %v1003
    %v1006 = vtanh.pop %v1005
    %1008 = vrot.lane.b32.xlu0 %v1006, 64
    %v1009 = vpop.permute.xlu0 %1008
    %v1011 = vmul.f32 %v993, %v1009
    %v1012 = vpack.c.bf16 %v934, %v934
    %v1014 = vrot.slane %v1012, 1
    %1015 = vrot.lane.b32.xlu0 %v1014, 32
    %v1016 = vpop.permute.xlu0 %1015
    %v1018 = vsel %vm132, %v1016, 0
    %1020 = vmatprep.subr.bf16.mxu0 0
    %1021 = vmatpush1.bf16.msra.mxu0 %v128
    %1022 = vmatprep.subr.bf16.mxu0 0
    %1023 = vmatpush1.bf16.msra.mxu0 %v129
    %1024 = vmatprep.subr.bf16.mxu0 0
    %1025 = vmatpush1.bf16.msra.mxu0 0
    %1026 = vmatprep.subr.bf16.mxu0 0
    %1027 = vmatpush1.bf16.msra.mxu0 0
    %1028 = vmatprep.subr.bf16.mxu0 0
    %1029 = vmatpush1.bf16.msra.mxu0 0
    %1030 = vmatprep.subr.bf16.mxu0 0
    %1031 = vmatpush1.bf16.msra.mxu0 0
    %1032 = vmatprep.subr.bf16.mxu0 0
    %1033 = vmatpush1.bf16.msra.mxu0 0
    %1034 = vmatprep.subr.bf16.mxu0 0
    %1035 = vmatpush1.bf16.msra.mxu0 0
    %1036 = vmatprep.subr.bf16.mxu0 0
    %1037 = vmatpush1.bf16.msra.mxu0 0
    %1038 = vmatprep.subr.bf16.mxu0 0
    %1039 = vmatpush1.bf16.msra.mxu0 0
    %1040 = vmatprep.subr.bf16.mxu0 0
    %1041 = vmatpush1.bf16.msra.mxu0 0
    %1042 = vmatprep.subr.bf16.mxu0 0
    %1043 = vmatpush1.bf16.msra.mxu0 0
    %1044 = vmatprep.subr.bf16.mxu0 0
    %1045 = vmatpush1.bf16.msra.mxu0 0
    %1046 = vmatprep.subr.bf16.mxu0 0
    %1047 = vmatpush1.bf16.msra.mxu0 0
    %1048 = vmatprep.subr.bf16.mxu0 0
    %1049 = vmatpush1.bf16.msra.mxu0 0
    %1050 = vmatprep.subr.bf16.mxu0 0
    %1051 = vmatpush1.bf16.msra.mxu0 0
    %1052 = vmatprep.mubr.bf16.mxu0 0
    %1053 = vmatmul.mubr.bf16.gmra.mrb[0].mxu0 %v1018
    %v1054 = vpop.f32.mrb[0].mxu0
    %v1055 = vadd.f32 0.0, %v1054
    %v1056 = vpop.f32.mrb[0].mxu0
    %v1057 = vpop.f32.mrb[0].mxu0
    %v1058 = vpop.f32.mrb[0].mxu0
    %1059 = vdwg.mxu0
    %v1061 = vrot.slane %v1055, 4
    %v1063 = vadd.f32 %v109, %v1061
    %v1064 = vxor.u32 %v1063, 2147483648
    %v1065 = vmul.f32 %v1064, 1.442695
    %v1066 = vpow.pop %v1065
    %v1067 = vadd.f32 %v1066, 1.0
    %v1068 = vrcp.pop %v1067
    %v1069 = vmul.f32 1.0, %v1068
    %v1070 = vtanh.pop %v1063
    %v1072 = vrot.slane %v928, 6
    %v1074 = vmul.f32 %v1069, %v1072
    %1076 = vrot.lane.b32.xlu0 %v1070, 64
    %v1077 = vpop.permute.xlu0 %1076
    %v1079 = vmul.f32 %v1069, %v1077
    %1081 = vrot.lane.b32.xlu0 %v1079, 32
    %v1082 = vpop.permute.xlu0 %1081
    %v1084 = vadd.f32 %v1074, %v1082
    %v1085 = vtanh.pop %v1084
    %1087 = vrot.lane.b32.xlu0 %v1085, 64
    %v1088 = vpop.permute.xlu0 %1087
    %v1090 = vmul.f32 %v1069, %v1088
    %1092 = vrot.lane.b32.xlu0 %v934, 32
    %v1093 = vpop.permute.xlu0 %1092
    %v1096 = vrot.slane %v1011, 6
    %1097 = vrot.lane.b32.xlu0 %v1096, 64
    %v1098 = vpop.permute.xlu0 %1097
    %v1100 = vsel %vm132, %v1093, %v1098
    %v1101 = vpack.c.bf16 %v1100, %v1100
    %v1103 = vrot.slane %v1101, 1
    %v1105 = vsel %vm315, %v1103, 0
    %1107 = vmatprep.subr.bf16.mxu0 0
    %1108 = vmatpush1.bf16.msra.mxu0 %v307
    %1109 = vmatprep.subr.bf16.mxu0 0
    %1110 = vmatpush1.bf16.msra.mxu0 %v308
    %1111 = vmatprep.subr.bf16.mxu0 0
    %1112 = vmatpush1.bf16.msra.mxu0 %v309
    %1113 = vmatprep.subr.bf16.mxu0 0
    %1114 = vmatpush1.bf16.msra.mxu0 %v310
    %1115 = vmatprep.subr.bf16.mxu0 0
    %1116 = vmatpush1.bf16.msra.mxu0 0
    %1117 = vmatprep.subr.bf16.mxu0 0
    %1118 = vmatpush1.bf16.msra.mxu0 0
    %1119 = vmatprep.subr.bf16.mxu0 0
    %1120 = vmatpush1.bf16.msra.mxu0 0
    %1121 = vmatprep.subr.bf16.mxu0 0
    %1122 = vmatpush1.bf16.msra.mxu0 0
    %1123 = vmatprep.subr.bf16.mxu0 0
    %1124 = vmatpush1.bf16.msra.mxu0 0
    %1125 = vmatprep.subr.bf16.mxu0 0
    %1126 = vmatpush1.bf16.msra.mxu0 0
    %1127 = vmatprep.subr.bf16.mxu0 0
    %1128 = vmatpush1.bf16.msra.mxu0 0
    %1129 = vmatprep.subr.bf16.mxu0 0
    %1130 = vmatpush1.bf16.msra.mxu0 0
    %1131 = vmatprep.subr.bf16.mxu0 0
    %1132 = vmatpush1.bf16.msra.mxu0 0
    %1133 = vmatprep.subr.bf16.mxu0 0
    %1134 = vmatpush1.bf16.msra.mxu0 0
    %1135 = vmatprep.subr.bf16.mxu0 0
    %1136 = vmatpush1.bf16.msra.mxu0 0
    %1137 = vmatprep.subr.bf16.mxu0 0
    %1138 = vmatpush1.bf16.msra.mxu0 0
    %1139 = vmatprep.mubr.bf16.mxu0 0
    %1140 = vmatmul.mubr.bf16.gmra.mrb[0].mxu0 %v1105
    %v1141 = vpop.f32.mrb[0].mxu0
    %v1142 = vadd.f32 %v289, %v1141
    %v1143 = vpop.f32.mrb[0].mxu0
    %v1144 = vpop.f32.mrb[0].mxu0
    %v1145 = vpop.f32.mrb[0].mxu0
    %1146 = vdwg.mxu0
    %v1147 = vxor.u32 %v1142, 2147483648
    %v1148 = vmul.f32 %v1147, 1.442695
    %v1149 = vpow.pop %v1148
    %v1150 = vadd.f32 %v1149, 1.0
    %v1151 = vrcp.pop %v1150
    %v1152 = vmul.f32 1.0, %v1151
    %v1153 = vtanh.pop %v1142
    %v1154 = vmul.f32 %v1152, %v1005
    %1156 = vrot.lane.b32.xlu0 %v1153, 64
    %v1157 = vpop.permute.xlu0 %1156
    %v1159 = vmul.f32 %v1152, %v1157
    %1161 = vrot.lane.b32.xlu0 %v1159, 32
    %v1162 = vpop.permute.xlu0 %1161
    %v1164 = vadd.f32 %v1154, %v1162
    %v1165 = vtanh.pop %v1164
    %1167 = vrot.lane.b32.xlu0 %v1165, 64
    %v1168 = vpop.permute.xlu0 %1167
    %v1170 = vmul.f32 %v1152, %v1168
    %v1171 = vpack.c.bf16 %v1090, %v1090
    %v1173 = vrot.slane %v1171, 2
    %1174 = vrot.lane.b32.xlu0 %v1173, 32
    %v1175 = vpop.permute.xlu0 %1174
    %v1177 = vsel %vm132, %v1175, 0
    %1179 = vmatprep.subr.bf16.mxu0 0
    %1180 = vmatpush1.bf16.msra.mxu0 %v128
    %1181 = vmatprep.subr.bf16.mxu0 0
    %1182 = vmatpush1.bf16.msra.mxu0 %v129
    %1183 = vmatprep.subr.bf16.mxu0 0
    %1184 = vmatpush1.bf16.msra.mxu0 0
    %1185 = vmatprep.subr.bf16.mxu0 0
    %1186 = vmatpush1.bf16.msra.mxu0 0
    %1187 = vmatprep.subr.bf16.mxu0 0
    %1188 = vmatpush1.bf16.msra.mxu0 0
    %1189 = vmatprep.subr.bf16.mxu0 0
    %1190 = vmatpush1.bf16.msra.mxu0 0
    %1191 = vmatprep.subr.bf16.mxu0 0
    %1192 = vmatpush1.bf16.msra.mxu0 0
    %1193 = vmatprep.subr.bf16.mxu0 0
    %1194 = vmatpush1.bf16.msra.mxu0 0
    %1195 = vmatprep.subr.bf16.mxu0 0
    %1196 = vmatpush1.bf16.msra.mxu0 0
    %1197 = vmatprep.subr.bf16.mxu0 0
    %1198 = vmatpush1.bf16.msra.mxu0 0
    %1199 = vmatprep.subr.bf16.mxu0 0
    %1200 = vmatpush1.bf16.msra.mxu0 0
    %1201 = vmatprep.subr.bf16.mxu0 0
    %1202 = vmatpush1.bf16.msra.mxu0 0
    %1203 = vmatprep.subr.bf16.mxu0 0
    %1204 = vmatpush1.bf16.msra.mxu0 0
    %1205 = vmatprep.subr.bf16.mxu0 0
    %1206 = vmatpush1.bf16.msra.mxu0 0
    %1207 = vmatprep.subr.bf16.mxu0 0
    %1208 = vmatpush1.bf16.msra.mxu0 0
    %1209 = vmatprep.subr.bf16.mxu0 0
    %1210 = vmatpush1.bf16.msra.mxu0 0
    %1211 = vmatprep.mubr.bf16.mxu0 0
    %1212 = vmatmul.mubr.bf16.gmra.mrb[0].mxu0 %v1177
    %v1213 = vpop.f32.mrb[0].mxu0
    %v1214 = vadd.f32 0.0, %v1213
    %v1215 = vpop.f32.mrb[0].mxu0
    %v1216 = vpop.f32.mrb[0].mxu0
    %v1217 = vpop.f32.mrb[0].mxu0
    %1218 = vdwg.mxu0
    %v1220 = vrot.slane %v1214, 2
    %v1222 = vadd.f32 %v109, %v1220
    %v1223 = vxor.u32 %v1222, 2147483648
    %v1224 = vmul.f32 %v1223, 1.442695
    %v1225 = vpow.pop %v1224
    %v1226 = vadd.f32 %v1225, 1.0
    %v1227 = vrcp.pop %v1226
    %v1228 = vmul.f32 1.0, %v1227
    %v1229 = vtanh.pop %v1222
    %v1231 = vrot.slane %v1084, 6
    %v1233 = vmul.f32 %v1228, %v1231
    %1235 = vrot.lane.b32.xlu0 %v1229, 64
    %v1236 = vpop.permute.xlu0 %1235
    %v1238 = vmul.f32 %v1228, %v1236
    %1240 = vrot.lane.b32.xlu0 %v1238, 32
    %v1241 = vpop.permute.xlu0 %1240
    %v1243 = vadd.f32 %v1233, %v1241
    %v1244 = vtanh.pop %v1243
    %1246 = vrot.lane.b32.xlu0 %v1244, 64
    %v1247 = vpop.permute.xlu0 %1246
    %v1249 = vmul.f32 %v1228, %v1247
    %1251 = vrot.lane.b32.xlu0 %v1090, 32
    %v1252 = vpop.permute.xlu0 %1251
    %v1255 = vrot.slane %v1170, 4
    %1256 = vrot.lane.b32.xlu0 %v1255, 64
    %v1257 = vpop.permute.xlu0 %1256
    %v1259 = vsel %vm132, %v1252, %v1257
    %v1260 = vpack.c.bf16 %v1259, %v1259
    %v1262 = vrot.slane %v1260, 2
    %v1264 = vsel %vm315, %v1262, 0
    %1266 = vmatprep.subr.bf16.mxu0 0
    %1267 = vmatpush1.bf16.msra.mxu0 %v307
    %1268 = vmatprep.subr.bf16.mxu0 0
    %1269 = vmatpush1.bf16.msra.mxu0 %v308
    %1270 = vmatprep.subr.bf16.mxu0 0
    %1271 = vmatpush1.bf16.msra.mxu0 %v309
    %1272 = vmatprep.subr.bf16.mxu0 0
    %1273 = vmatpush1.bf16.msra.mxu0 %v310
    %1274 = vmatprep.subr.bf16.mxu0 0
    %1275 = vmatpush1.bf16.msra.mxu0 0
    %1276 = vmatprep.subr.bf16.mxu0 0
    %1277 = vmatpush1.bf16.msra.mxu0 0
    %1278 = vmatprep.subr.bf16.mxu0 0
    %1279 = vmatpush1.bf16.msra.mxu0 0
    %1280 = vmatprep.subr.bf16.mxu0 0
    %1281 = vmatpush1.bf16.msra.mxu0 0
    %1282 = vmatprep.subr.bf16.mxu0 0
    %1283 = vmatpush1.bf16.msra.mxu0 0
    %1284 = vmatprep.subr.bf16.mxu0 0
    %1285 = vmatpush1.bf16.msra.mxu0 0
    %1286 = vmatprep.subr.bf16.mxu0 0
    %1287 = vmatpush1.bf16.msra.mxu0 0
    %1288 = vmatprep.subr.bf16.mxu0 0
    %1289 = vmatpush1.bf16.msra.mxu0 0
    %1290 = vmatprep.subr.bf16.mxu0 0
    %1291 = vmatpush1.bf16.msra.mxu0 0
    %1292 = vmatprep.subr.bf16.mxu0 0
    %1293 = vmatpush1.bf16.msra.mxu0 0
    %1294 = vmatprep.subr.bf16.mxu0 0
    %1295 = vmatpush1.bf16.msra.mxu0 0
    %1296 = vmatprep.subr.bf16.mxu0 0
    %1297 = vmatpush1.bf16.msra.mxu0 0
    %1298 = vmatprep.mubr.bf16.mxu0 0
    %1299 = vmatmul.mubr.bf16.gmra.mrb[0].mxu0 %v1264
    %v1300 = vpop.f32.mrb[0].mxu0
    %v1301 = vadd.f32 %v289, %v1300
    %v1302 = vpop.f32.mrb[0].mxu0
    %v1303 = vpop.f32.mrb[0].mxu0
    %v1304 = vpop.f32.mrb[0].mxu0
    %1305 = vdwg.mxu0
    %v1306 = vxor.u32 %v1301, 2147483648
    %v1307 = vmul.f32 %v1306, 1.442695
    %v1308 = vpow.pop %v1307
    %v1309 = vadd.f32 %v1308, 1.0
    %v1310 = vrcp.pop %v1309
    %v1311 = vmul.f32 1.0, %v1310
    %v1312 = vtanh.pop %v1301
    %v1313 = vmul.f32 %v1311, %v1164
    %1315 = vrot.lane.b32.xlu0 %v1312, 64
    %v1316 = vpop.permute.xlu0 %1315
    %v1318 = vmul.f32 %v1311, %v1316
    %1320 = vrot.lane.b32.xlu0 %v1318, 32
    %v1321 = vpop.permute.xlu0 %1320
    %v1323 = vadd.f32 %v1313, %v1321
    %v1324 = vtanh.pop %v1323
    %1326 = vrot.lane.b32.xlu0 %v1324, 64
    %v1327 = vpop.permute.xlu0 %1326
    %v1329 = vmul.f32 %v1311, %v1327
    %v1330 = vpack.c.bf16 %v1249, %v1249
    %v1332 = vrot.slane %v1330, 3
    %1333 = vrot.lane.b32.xlu0 %v1332, 32
    %v1334 = vpop.permute.xlu0 %1333
    %v1336 = vsel %vm132, %v1334, 0
    %1338 = vmatprep.subr.bf16.mxu0 0
    %1339 = vmatpush1.bf16.msra.mxu0 %v128
    %1340 = vmatprep.subr.bf16.mxu0 0
    %1341 = vmatpush1.bf16.msra.mxu0 %v129
    %1342 = vmatprep.subr.bf16.mxu0 0
    %1343 = vmatpush1.bf16.msra.mxu0 0
    %1344 = vmatprep.subr.bf16.mxu0 0
    %1345 = vmatpush1.bf16.msra.mxu0 0
    %1346 = vmatprep.subr.bf16.mxu0 0
    %1347 = vmatpush1.bf16.msra.mxu0 0
    %1348 = vmatprep.subr.bf16.mxu0 0
    %1349 = vmatpush1.bf16.msra.mxu0 0
    %1350 = vmatprep.subr.bf16.mxu0 0
    %1351 = vmatpush1.bf16.msra.mxu0 0
    %1352 = vmatprep.subr.bf16.mxu0 0
    %1353 = vmatpush1.bf16.msra.mxu0 0
    %1354 = vmatprep.subr.bf16.mxu0 0
    %1355 = vmatpush1.bf16.msra.mxu0 0
    %1356 = vmatprep.subr.bf16.mxu0 0
    %1357 = vmatpush1.bf16.msra.mxu0 0
    %1358 = vmatprep.subr.bf16.mxu0 0
    %1359 = vmatpush1.bf16.msra.mxu0 0
    %1360 = vmatprep.subr.bf16.mxu0 0
    %1361 = vmatpush1.bf16.msra.mxu0 0
    %1362 = vmatprep.subr.bf16.mxu0 0
    %1363 = vmatpush1.bf16.msra.mxu0 0
    %1364 = vmatprep.subr.bf16.mxu0 0
    %1365 = vmatpush1.bf16.msra.mxu0 0
    %1366 = vmatprep.subr.bf16.mxu0 0
    %1367 = vmatpush1.bf16.msra.mxu0 0
    %1368 = vmatprep.subr.bf16.mxu0 0
    %1369 = vmatpush1.bf16.msra.mxu0 0
    %1370 = vmatprep.mubr.bf16.mxu0 0
    %1371 = vmatmul.mubr.bf16.gmra.mrb[0].mxu0 %v1336
    %v1372 = vpop.f32.mrb[0].mxu0
    %v1373 = vadd.f32 0.0, %v1372
    %v1374 = vpop.f32.mrb[0].mxu0
    %v1375 = vpop.f32.mrb[0].mxu0
    %v1376 = vpop.f32.mrb[0].mxu0
    %1377 = vdwg.mxu0
    %v1378 = vadd.f32 %v114, %v1373
    %v1379 = vxor.u32 %v1378, 2147483648
    %v1380 = vmul.f32 %v1379, 1.442695
    %v1381 = vpow.pop %v1380
    %v1382 = vadd.f32 %v1381, 1.0
    %v1383 = vrcp.pop %v1382
    %v1384 = vmul.f32 1.0, %v1383
    %v1385 = vtanh.pop %v1378
    %v1387 = vrot.slane %v1243, 6
    %v1389 = vmul.f32 %v1384, %v1387
    %1391 = vrot.lane.b32.xlu0 %v1385, 64
    %v1392 = vpop.permute.xlu0 %1391
    %v1394 = vmul.f32 %v1384, %v1392
    %1396 = vrot.lane.b32.xlu0 %v1394, 32
    %v1397 = vpop.permute.xlu0 %1396
    %v1399 = vadd.f32 %v1389, %v1397
    %v1400 = vtanh.pop %v1399
    %1402 = vrot.lane.b32.xlu0 %v1400, 64
    %v1403 = vpop.permute.xlu0 %1402
    %v1405 = vmul.f32 %v1384, %v1403
    %1407 = vrot.lane.b32.xlu0 %v1249, 32
    %v1408 = vpop.permute.xlu0 %1407
    %v1411 = vrot.slane %v1329, 2
    %1412 = vrot.lane.b32.xlu0 %v1411, 64
    %v1413 = vpop.permute.xlu0 %1412
    %v1415 = vsel %vm132, %v1408, %v1413
    %v1416 = vpack.c.bf16 %v1415, %v1415
    %v1418 = vrot.slane %v1416, 3
    %v1420 = vsel %vm315, %v1418, 0
    %1422 = vmatprep.subr.bf16.mxu0 0
    %1423 = vmatpush1.bf16.msra.mxu0 %v307
    %1424 = vmatprep.subr.bf16.mxu0 0
    %1425 = vmatpush1.bf16.msra.mxu0 %v308
    %1426 = vmatprep.subr.bf16.mxu0 0
    %1427 = vmatpush1.bf16.msra.mxu0 %v309
    %1428 = vmatprep.subr.bf16.mxu0 0
    %1429 = vmatpush1.bf16.msra.mxu0 %v310
    %1430 = vmatprep.subr.bf16.mxu0 0
    %1431 = vmatpush1.bf16.msra.mxu0 0
    %1432 = vmatprep.subr.bf16.mxu0 0
    %1433 = vmatpush1.bf16.msra.mxu0 0
    %1434 = vmatprep.subr.bf16.mxu0 0
    %1435 = vmatpush1.bf16.msra.mxu0 0
    %1436 = vmatprep.subr.bf16.mxu0 0
    %1437 = vmatpush1.bf16.msra.mxu0 0
    %1438 = vmatprep.subr.bf16.mxu0 0
    %1439 = vmatpush1.bf16.msra.mxu0 0
    %1440 = vmatprep.subr.bf16.mxu0 0
    %1441 = vmatpush1.bf16.msra.mxu0 0
    %1442 = vmatprep.subr.bf16.mxu0 0
    %1443 = vmatpush1.bf16.msra.mxu0 0
    %1444 = vmatprep.subr.bf16.mxu0 0
    %1445 = vmatpush1.bf16.msra.mxu0 0
    %1446 = vmatprep.subr.bf16.mxu0 0
    %1447 = vmatpush1.bf16.msra.mxu0 0
    %1448 = vmatprep.subr.bf16.mxu0 0
    %1449 = vmatpush1.bf16.msra.mxu0 0
    %1450 = vmatprep.subr.bf16.mxu0 0
    %1451 = vmatpush1.bf16.msra.mxu0 0
    %1452 = vmatprep.subr.bf16.mxu0 0
    %1453 = vmatpush1.bf16.msra.mxu0 0
    %1454 = vmatprep.mubr.bf16.mxu0 0
    %1455 = vmatmul.mubr.bf16.gmra.mrb[0].mxu0 %v1420
    %v1456 = vpop.f32.mrb[0].mxu0
    %v1457 = vadd.f32 %v289, %v1456
    %v1458 = vpop.f32.mrb[0].mxu0
    %v1459 = vpop.f32.mrb[0].mxu0
    %v1460 = vpop.f32.mrb[0].mxu0
    %1461 = vdwg.mxu0
    %v1462 = vxor.u32 %v1457, 2147483648
    %v1463 = vmul.f32 %v1462, 1.442695
    %v1464 = vpow.pop %v1463
    %v1465 = vadd.f32 %v1464, 1.0
    %v1466 = vrcp.pop %v1465
    %v1467 = vmul.f32 1.0, %v1466
    %v1468 = vtanh.pop %v1457
    %v1469 = vmul.f32 %v1467, %v1323
    %1471 = vrot.lane.b32.xlu0 %v1468, 64
    %v1472 = vpop.permute.xlu0 %1471
    %v1474 = vmul.f32 %v1467, %v1472
    %1476 = vrot.lane.b32.xlu0 %v1474, 32
    %v1477 = vpop.permute.xlu0 %1476
    %v1479 = vadd.f32 %v1469, %v1477
    %v1480 = vtanh.pop %v1479
    %1482 = vrot.lane.b32.xlu0 %v1480, 64
    %v1483 = vpop.permute.xlu0 %1482
    %v1485 = vmul.f32 %v1467, %v1483
    %v1486 = vpack.c.bf16 %v1405, %v1405
    %1488 = vrot.lane.b32.xlu0 %v1486, 32
    %v1489 = vpop.permute.xlu0 %1488
    %v1491 = vsel %vm132, %v1489, 0
    %1493 = vmatprep.subr.bf16.mxu0 0
    %1494 = vmatpush1.bf16.msra.mxu0 %v128
    %1495 = vmatprep.subr.bf16.mxu0 0
    %1496 = vmatpush1.bf16.msra.mxu0 %v129
    %1497 = vmatprep.subr.bf16.mxu0 0
    %1498 = vmatpush1.bf16.msra.mxu0 0
    %1499 = vmatprep.subr.bf16.mxu0 0
    %1500 = vmatpush1.bf16.msra.mxu0 0
    %1501 = vmatprep.subr.bf16.mxu0 0
    %1502 = vmatpush1.bf16.msra.mxu0 0
    %1503 = vmatprep.subr.bf16.mxu0 0
    %1504 = vmatpush1.bf16.msra.mxu0 0
    %1505 = vmatprep.subr.bf16.mxu0 0
    %1506 = vmatpush1.bf16.msra.mxu0 0
    %1507 = vmatprep.subr.bf16.mxu0 0
    %1508 = vmatpush1.bf16.msra.mxu0 0
    %1509 = vmatprep.subr.bf16.mxu0 0
    %1510 = vmatpush1.bf16.msra.mxu0 0
    %1511 = vmatprep.subr.bf16.mxu0 0
    %1512 = vmatpush1.bf16.msra.mxu0 0
    %1513 = vmatprep.subr.bf16.mxu0 0
    %1514 = vmatpush1.bf16.msra.mxu0 0
    %1515 = vmatprep.subr.bf16.mxu0 0
    %1516 = vmatpush1.bf16.msra.mxu0 0
    %1517 = vmatprep.subr.bf16.mxu0 0
    %1518 = vmatpush1.bf16.msra.mxu0 0
    %1519 = vmatprep.subr.bf16.mxu0 0
    %1520 = vmatpush1.bf16.msra.mxu0 0
    %1521 = vmatprep.subr.bf16.mxu0 0
    %1522 = vmatpush1.bf16.msra.mxu0 0
    %1523 = vmatprep.subr.bf16.mxu0 0
    %1524 = vmatpush1.bf16.msra.mxu0 0
    %1525 = vmatprep.mubr.bf16.mxu0 0
    %1526 = vmatmul.mubr.bf16.gmra.mrb[0].mxu0 %v1491
    %v1527 = vpop.f32.mrb[0].mxu0
    %v1528 = vadd.f32 0.0, %v1527
    %v1529 = vpop.f32.mrb[0].mxu0
    %v1530 = vpop.f32.mrb[0].mxu0
    %v1531 = vpop.f32.mrb[0].mxu0
    %1532 = vdwg.mxu0
    %v1534 = vrot.slane %v1528, 6
    %v1536 = vadd.f32 %v114, %v1534
    %v1537 = vxor.u32 %v1536, 2147483648
    %v1538 = vmul.f32 %v1537, 1.442695
    %v1539 = vpow.pop %v1538
    %v1540 = vadd.f32 %v1539, 1.0
    %v1541 = vrcp.pop %v1540
    %v1542 = vmul.f32 1.0, %v1541
    %v1543 = vtanh.pop %v1536
    %v1545 = vrot.slane %v1399, 6
    %v1547 = vmul.f32 %v1542, %v1545
    %1549 = vrot.lane.b32.xlu0 %v1543, 64
    %v1550 = vpop.permute.xlu0 %1549
    %v1552 = vmul.f32 %v1542, %v1550
    %1554 = vrot.lane.b32.xlu0 %v1552, 32
    %v1555 = vpop.permute.xlu0 %1554
    %v1557 = vadd.f32 %v1547, %v1555
    %v1558 = vtanh.pop %v1557
    %1560 = vrot.lane.b32.xlu0 %v1558, 64
    %v1561 = vpop.permute.xlu0 %1560
    %v1563 = vmul.f32 %v1542, %v1561
    %1565 = vrot.lane.b32.xlu0 %v1405, 32
    %v1566 = vpop.permute.xlu0 %1565
    %1569 = vrot.lane.b32.xlu0 %v1485, 64
    %v1570 = vpop.permute.xlu0 %1569
    %v1572 = vsel %vm132, %v1566, %v1570
    %v1573 = vpack.c.bf16 %v1572, %v1572
    %v1575 = vsel %vm315, %v1573, 0
    %1577 = vmatprep.subr.bf16.mxu0 0
    %1578 = vmatpush1.bf16.msra.mxu0 %v307
    %1579 = vmatprep.subr.bf16.mxu0 0
    %1580 = vmatpush1.bf16.msra.mxu0 %v308
    %1581 = vmatprep.subr.bf16.mxu0 0
    %1582 = vmatpush1.bf16.msra.mxu0 %v309
    %1583 = vmatprep.subr.bf16.mxu0 0
    %1584 = vmatpush1.bf16.msra.mxu0 %v310
    %1585 = vmatprep.subr.bf16.mxu0 0
    %1586 = vmatpush1.bf16.msra.mxu0 0
    %1587 = vmatprep.subr.bf16.mxu0 0
    %1588 = vmatpush1.bf16.msra.mxu0 0
    %1589 = vmatprep.subr.bf16.mxu0 0
    %1590 = vmatpush1.bf16.msra.mxu0 0
    %1591 = vmatprep.subr.bf16.mxu0 0
    %1592 = vmatpush1.bf16.msra.mxu0 0
    %1593 = vmatprep.subr.bf16.mxu0 0
    %1594 = vmatpush1.bf16.msra.mxu0 0
    %1595 = vmatprep.subr.bf16.mxu0 0
    %1596 = vmatpush1.bf16.msra.mxu0 0
    %1597 = vmatprep.subr.bf16.mxu0 0
    %1598 = vmatpush1.bf16.msra.mxu0 0
    %1599 = vmatprep.subr.bf16.mxu0 0
    %1600 = vmatpush1.bf16.msra.mxu0 0
    %1601 = vmatprep.subr.bf16.mxu0 0
    %1602 = vmatpush1.bf16.msra.mxu0 0
    %1603 = vmatprep.subr.bf16.mxu0 0
    %1604 = vmatpush1.bf16.msra.mxu0 0
    %1605 = vmatprep.subr.bf16.mxu0 0
    %1606 = vmatpush1.bf16.msra.mxu0 0
    %1607 = vmatprep.subr.bf16.mxu0 0
    %1608 = vmatpush1.bf16.msra.mxu0 0
    %1609 = vmatprep.mubr.bf16.mxu0 0
    %1610 = vmatmul.mubr.bf16.gmra.mrb[0].mxu0 %v1575
    %v1611 = vpop.f32.mrb[0].mxu0
    %v1612 = vadd.f32 %v289, %v1611
    %v1613 = vpop.f32.mrb[0].mxu0
    %v1614 = vpop.f32.mrb[0].mxu0
    %v1615 = vpop.f32.mrb[0].mxu0
    %1616 = vdwg.mxu0
    %v1617 = vxor.u32 %v1612, 2147483648
    %v1618 = vmul.f32 %v1617, 1.442695
    %v1619 = vpow.pop %v1618
    %v1620 = vadd.f32 %v1619, 1.0
    %v1621 = vrcp.pop %v1620
    %v1622 = vmul.f32 1.0, %v1621
    %v1623 = vtanh.pop %v1612
    %v1624 = vmul.f32 %v1622, %v1479
    %1626 = vrot.lane.b32.xlu0 %v1623, 64
    %v1627 = vpop.permute.xlu0 %1626
    %v1629 = vmul.f32 %v1622, %v1627
    %1631 = vrot.lane.b32.xlu0 %v1629, 32
    %v1632 = vpop.permute.xlu0 %1631
    %v1634 = vadd.f32 %v1624, %v1632
    %v1635 = vtanh.pop %v1634
    %1637 = vrot.lane.b32.xlu0 %v1635, 64
    %v1638 = vpop.permute.xlu0 %1637
    %v1640 = vmul.f32 %v1622, %v1638
    %v1641 = vpack.c.bf16 %v1563, %v1563
    %v1643 = vrot.slane %v1641, 1
    %1644 = vrot.lane.b32.xlu0 %v1643, 32
    %v1645 = vpop.permute.xlu0 %1644
    %v1647 = vsel %vm132, %v1645, 0
    %1649 = vmatprep.subr.bf16.mxu0 0
    %1650 = vmatpush1.bf16.msra.mxu0 %v128
    %1651 = vmatprep.subr.bf16.mxu0 0
    %1652 = vmatpush1.bf16.msra.mxu0 %v129
    %1653 = vmatprep.subr.bf16.mxu0 0
    %1654 = vmatpush1.bf16.msra.mxu0 0
    %1655 = vmatprep.subr.bf16.mxu0 0
    %1656 = vmatpush1.bf16.msra.mxu0 0
    %1657 = vmatprep.subr.bf16.mxu0 0
    %1658 = vmatpush1.bf16.msra.mxu0 0
    %1659 = vmatprep.subr.bf16.mxu0 0
    %1660 = vmatpush1.bf16.msra.mxu0 0
    %1661 = vmatprep.subr.bf16.mxu0 0
    %1662 = vmatpush1.bf16.msra.mxu0 0
    %1663 = vmatprep.subr.bf16.mxu0 0
    %1664 = vmatpush1.bf16.msra.mxu0 0
    %1665 = vmatprep.subr.bf16.mxu0 0
    %1666 = vmatpush1.bf16.msra.mxu0 0
    %1667 = vmatprep.subr.bf16.mxu0 0
    %1668 = vmatpush1.bf16.msra.mxu0 0
    %1669 = vmatprep.subr.bf16.mxu0 0
    %1670 = vmatpush1.bf16.msra.mxu0 0
    %1671 = vmatprep.subr.bf16.mxu0 0
    %1672 = vmatpush1.bf16.msra.mxu0 0
    %1673 = vmatprep.subr.bf16.mxu0 0
    %1674 = vmatpush1.bf16.msra.mxu0 0
    %1675 = vmatprep.subr.bf16.mxu0 0
    %1676 = vmatpush1.bf16.msra.mxu0 0
    %1677 = vmatprep.subr.bf16.mxu0 0
    %1678 = vmatpush1.bf16.msra.mxu0 0
    %1679 = vmatprep.subr.bf16.mxu0 0
    %1680 = vmatpush1.bf16.msra.mxu0 0
    %1681 = vmatprep.mubr.bf16.mxu0 0
    %1682 = vmatmul.mubr.bf16.gmra.mrb[0].mxu0 %v1647
    %v1683 = vpop.f32.mrb[0].mxu0
    %v1684 = vadd.f32 0.0, %v1683
    %v1685 = vpop.f32.mrb[0].mxu0
    %v1686 = vpop.f32.mrb[0].mxu0
    %v1687 = vpop.f32.mrb[0].mxu0
    %1688 = vdwg.mxu0
    %v1690 = vrot.slane %v1684, 4
    %v1692 = vadd.f32 %v114, %v1690
    %v1693 = vxor.u32 %v1692, 2147483648
    %v1694 = vmul.f32 %v1693, 1.442695
    %v1695 = vpow.pop %v1694
    %v1696 = vadd.f32 %v1695, 1.0
    %v1697 = vrcp.pop %v1696
    %v1698 = vmul.f32 1.0, %v1697
    %v1699 = vtanh.pop %v1692
    %v1701 = vrot.slane %v1557, 6
    %v1703 = vmul.f32 %v1698, %v1701
    %1705 = vrot.lane.b32.xlu0 %v1699, 64
    %v1706 = vpop.permute.xlu0 %1705
    %v1708 = vmul.f32 %v1698, %v1706
    %1710 = vrot.lane.b32.xlu0 %v1708, 32
    %v1711 = vpop.permute.xlu0 %1710
    %v1713 = vadd.f32 %v1703, %v1711
    %v1714 = vtanh.pop %v1713
    %1716 = vrot.lane.b32.xlu0 %v1714, 64
    %v1717 = vpop.permute.xlu0 %1716
    %v1719 = vmul.f32 %v1698, %v1717
    %1721 = vrot.lane.b32.xlu0 %v1563, 32
    %v1722 = vpop.permute.xlu0 %1721
    %v1725 = vrot.slane %v1640, 6
    %1726 = vrot.lane.b32.xlu0 %v1725, 64
    %v1727 = vpop.permute.xlu0 %1726
    %v1729 = vsel %vm132, %v1722, %v1727
    %v1730 = vpack.c.bf16 %v1729, %v1729
    %v1732 = vrot.slane %v1730, 1
    %v1734 = vsel %vm315, %v1732, 0
    %1736 = vmatprep.subr.bf16.mxu0 0
    %1737 = vmatpush1.bf16.msra.mxu0 %v307
    %1738 = vmatprep.subr.bf16.mxu0 0
    %1739 = vmatpush1.bf16.msra.mxu0 %v308
    %1740 = vmatprep.subr.bf16.mxu0 0
    %1741 = vmatpush1.bf16.msra.mxu0 %v309
    %1742 = vmatprep.subr.bf16.mxu0 0
    %1743 = vmatpush1.bf16.msra.mxu0 %v310
    %1744 = vmatprep.subr.bf16.mxu0 0
    %1745 = vmatpush1.bf16.msra.mxu0 0
    %1746 = vmatprep.subr.bf16.mxu0 0
    %1747 = vmatpush1.bf16.msra.mxu0 0
    %1748 = vmatprep.subr.bf16.mxu0 0
    %1749 = vmatpush1.bf16.msra.mxu0 0
    %1750 = vmatprep.subr.bf16.mxu0 0
    %1751 = vmatpush1.bf16.msra.mxu0 0
    %1752 = vmatprep.subr.bf16.mxu0 0
    %1753 = vmatpush1.bf16.msra.mxu0 0
    %1754 = vmatprep.subr.bf16.mxu0 0
    %1755 = vmatpush1.bf16.msra.mxu0 0
    %1756 = vmatprep.subr.bf16.mxu0 0
    %1757 = vmatpush1.bf16.msra.mxu0 0
    %1758 = vmatprep.subr.bf16.mxu0 0
    %1759 = vmatpush1.bf16.msra.mxu0 0
    %1760 = vmatprep.subr.bf16.mxu0 0
    %1761 = vmatpush1.bf16.msra.mxu0 0
    %1762 = vmatprep.subr.bf16.mxu0 0
    %1763 = vmatpush1.bf16.msra.mxu0 0
    %1764 = vmatprep.subr.bf16.mxu0 0
    %1765 = vmatpush1.bf16.msra.mxu0 0
    %1766 = vmatprep.subr.bf16.mxu0 0
    %1767 = vmatpush1.bf16.msra.mxu0 0
    %1768 = vmatprep.mubr.bf16.mxu0 0
    %1769 = vmatmul.mubr.bf16.gmra.mrb[0].mxu0 %v1734
    %v1770 = vpop.f32.mrb[0].mxu0
    %v1771 = vadd.f32 %v289, %v1770
    %v1772 = vpop.f32.mrb[0].mxu0
    %v1773 = vpop.f32.mrb[0].mxu0
    %v1774 = vpop.f32.mrb[0].mxu0
    %1775 = vdwg.mxu0
    %v1776 = vxor.u32 %v1771, 2147483648
    %v1777 = vmul.f32 %v1776, 1.442695
    %v1778 = vpow.pop %v1777
    %v1779 = vadd.f32 %v1778, 1.0
    %v1780 = vrcp.pop %v1779
    %v1781 = vmul.f32 1.0, %v1780
    %v1782 = vtanh.pop %v1771
    %v1783 = vmul.f32 %v1781, %v1634
    %1785 = vrot.lane.b32.xlu0 %v1782, 64
    %v1786 = vpop.permute.xlu0 %1785
    %v1788 = vmul.f32 %v1781, %v1786
    %1790 = vrot.lane.b32.xlu0 %v1788, 32
    %v1791 = vpop.permute.xlu0 %1790
    %v1793 = vadd.f32 %v1783, %v1791
    %v1794 = vtanh.pop %v1793
    %1796 = vrot.lane.b32.xlu0 %v1794, 64
    %v1797 = vpop.permute.xlu0 %1796
    %v1799 = vmul.f32 %v1781, %v1797
    %v1800 = vpack.c.bf16 %v1719, %v1719
    %v1802 = vrot.slane %v1800, 2
    %1803 = vrot.lane.b32.xlu0 %v1802, 32
    %v1804 = vpop.permute.xlu0 %1803
    %v1806 = vsel %vm132, %v1804, 0
    %1808 = vmatprep.subr.bf16.mxu0 0
    %1809 = vmatpush1.bf16.msra.mxu0 %v128
    %1810 = vmatprep.subr.bf16.mxu0 0
    %1811 = vmatpush1.bf16.msra.mxu0 %v129
    %1812 = vmatprep.subr.bf16.mxu0 0
    %1813 = vmatpush1.bf16.msra.mxu0 0
    %1814 = vmatprep.subr.bf16.mxu0 0
    %1815 = vmatpush1.bf16.msra.mxu0 0
    %1816 = vmatprep.subr.bf16.mxu0 0
    %1817 = vmatpush1.bf16.msra.mxu0 0
    %1818 = vmatprep.subr.bf16.mxu0 0
    %1819 = vmatpush1.bf16.msra.mxu0 0
    %1820 = vmatprep.subr.bf16.mxu0 0
    %1821 = vmatpush1.bf16.msra.mxu0 0
    %1822 = vmatprep.subr.bf16.mxu0 0
    %1823 = vmatpush1.bf16.msra.mxu0 0
    %1824 = vmatprep.subr.bf16.mxu0 0
    %1825 = vmatpush1.bf16.msra.mxu0 0
    %1826 = vmatprep.subr.bf16.mxu0 0
    %1827 = vmatpush1.bf16.msra.mxu0 0
    %1828 = vmatprep.subr.bf16.mxu0 0
    %1829 = vmatpush1.bf16.msra.mxu0 0
    %1830 = vmatprep.subr.bf16.mxu0 0
    %1831 = vmatpush1.bf16.msra.mxu0 0
    %1832 = vmatprep.subr.bf16.mxu0 0
    %1833 = vmatpush1.bf16.msra.mxu0 0
    %1834 = vmatprep.subr.bf16.mxu0 0
    %1835 = vmatpush1.bf16.msra.mxu0 0
    %1836 = vmatprep.subr.bf16.mxu0 0
    %1837 = vmatpush1.bf16.msra.mxu0 0
    %1838 = vmatprep.subr.bf16.mxu0 0
    %1839 = vmatpush1.bf16.msra.mxu0 0
    %1840 = vmatprep.mubr.bf16.mxu0 0
    %1841 = vmatmul.mubr.bf16.gmra.mrb[0].mxu0 %v1806
    %v1842 = vpop.f32.mrb[0].mxu0
    %v1843 = vadd.f32 0.0, %v1842
    %v1844 = vpop.f32.mrb[0].mxu0
    %v1845 = vpop.f32.mrb[0].mxu0
    %v1846 = vpop.f32.mrb[0].mxu0
    %1847 = vdwg.mxu0
    %v1849 = vrot.slane %v1843, 2
    %v1851 = vadd.f32 %v114, %v1849
    %v1852 = vxor.u32 %v1851, 2147483648
    %v1853 = vmul.f32 %v1852, 1.442695
    %v1854 = vpow.pop %v1853
    %v1855 = vadd.f32 %v1854, 1.0
    %v1856 = vrcp.pop %v1855
    %v1857 = vmul.f32 1.0, %v1856
    %v1858 = vtanh.pop %v1851
    %v1860 = vrot.slane %v1713, 6
    %v1862 = vmul.f32 %v1857, %v1860
    %1864 = vrot.lane.b32.xlu0 %v1858, 64
    %v1865 = vpop.permute.xlu0 %1864
    %v1867 = vmul.f32 %v1857, %v1865
    %1869 = vrot.lane.b32.xlu0 %v1867, 32
    %v1870 = vpop.permute.xlu0 %1869
    %v1872 = vadd.f32 %v1862, %v1870
    %v1873 = vtanh.pop %v1872
    %1875 = vrot.lane.b32.xlu0 %v1873, 64
    %v1876 = vpop.permute.xlu0 %1875
    %v1878 = vmul.f32 %v1857, %v1876
    %1880 = vrot.lane.b32.xlu0 %v1719, 32
    %v1881 = vpop.permute.xlu0 %1880
    %v1884 = vrot.slane %v1799, 4
    %1885 = vrot.lane.b32.xlu0 %v1884, 64
    %v1886 = vpop.permute.xlu0 %1885
    %v1888 = vsel %vm132, %v1881, %v1886
    %v1889 = vpack.c.bf16 %v1888, %v1888
    %v1891 = vrot.slane %v1889, 2
    %v1893 = vsel %vm315, %v1891, 0
    %1895 = vmatprep.subr.bf16.mxu0 0
    %1896 = vmatpush1.bf16.msra.mxu0 %v307
    %1897 = vmatprep.subr.bf16.mxu0 0
    %1898 = vmatpush1.bf16.msra.mxu0 %v308
    %1899 = vmatprep.subr.bf16.mxu0 0
    %1900 = vmatpush1.bf16.msra.mxu0 %v309
    %1901 = vmatprep.subr.bf16.mxu0 0
    %1902 = vmatpush1.bf16.msra.mxu0 %v310
    %1903 = vmatprep.subr.bf16.mxu0 0
    %1904 = vmatpush1.bf16.msra.mxu0 0
    %1905 = vmatprep.subr.bf16.mxu0 0
    %1906 = vmatpush1.bf16.msra.mxu0 0
    %1907 = vmatprep.subr.bf16.mxu0 0
    %1908 = vmatpush1.bf16.msra.mxu0 0
    %1909 = vmatprep.subr.bf16.mxu0 0
    %1910 = vmatpush1.bf16.msra.mxu0 0
    %1911 = vmatprep.subr.bf16.mxu0 0
    %1912 = vmatpush1.bf16.msra.mxu0 0
    %1913 = vmatprep.subr.bf16.mxu0 0
    %1914 = vmatpush1.bf16.msra.mxu0 0
    %1915 = vmatprep.subr.bf16.mxu0 0
    %1916 = vmatpush1.bf16.msra.mxu0 0
    %1917 = vmatprep.subr.bf16.mxu0 0
    %1918 = vmatpush1.bf16.msra.mxu0 0
    %1919 = vmatprep.subr.bf16.mxu0 0
    %1920 = vmatpush1.bf16.msra.mxu0 0
    %1921 = vmatprep.subr.bf16.mxu0 0
    %1922 = vmatpush1.bf16.msra.mxu0 0
    %1923 = vmatprep.subr.bf16.mxu0 0
    %1924 = vmatpush1.bf16.msra.mxu0 0
    %1925 = vmatprep.subr.bf16.mxu0 0
    %1926 = vmatpush1.bf16.msra.mxu0 0
    %1927 = vmatprep.mubr.bf16.mxu0 0
    %1928 = vmatmul.mubr.bf16.gmra.mrb[0].mxu0 %v1893
    %v1929 = vpop.f32.mrb[0].mxu0
    %v1930 = vadd.f32 %v289, %v1929
    %v1931 = vpop.f32.mrb[0].mxu0
    %v1932 = vpop.f32.mrb[0].mxu0
    %v1933 = vpop.f32.mrb[0].mxu0
    %1934 = vdwg.mxu0
    %v1935 = vxor.u32 %v1930, 2147483648
    %v1936 = vmul.f32 %v1935, 1.442695
    %v1937 = vpow.pop %v1936
    %v1938 = vadd.f32 %v1937, 1.0
    %v1939 = vrcp.pop %v1938
    %v1940 = vmul.f32 1.0, %v1939
    %v1941 = vtanh.pop %v1930
    %v1942 = vmul.f32 %v1940, %v1793
    %1944 = vrot.lane.b32.xlu0 %v1941, 64
    %v1945 = vpop.permute.xlu0 %1944
    %v1947 = vmul.f32 %v1940, %v1945
    %1949 = vrot.lane.b32.xlu0 %v1947, 32
    %v1950 = vpop.permute.xlu0 %1949
    %v1952 = vadd.f32 %v1942, %v1950
    %v1953 = vtanh.pop %v1952
    %1955 = vrot.lane.b32.xlu0 %v1953, 64
    %v1956 = vpop.permute.xlu0 %1955
    %v1958 = vmul.f32 %v1940, %v1956
    %v1959 = vpack.c.bf16 %v1878, %v1878
    %v1961 = vrot.slane %v1959, 3
    %1962 = vrot.lane.b32.xlu0 %v1961, 32
    %v1963 = vpop.permute.xlu0 %1962
    %v1965 = vsel %vm132, %v1963, 0
    %1967 = vmatprep.subr.bf16.mxu0 0
    %1968 = vmatpush1.bf16.msra.mxu0 %v128
    %1969 = vmatprep.subr.bf16.mxu0 0
    %1970 = vmatpush1.bf16.msra.mxu0 %v129
    %1971 = vmatprep.subr.bf16.mxu0 0
    %1972 = vmatpush1.bf16.msra.mxu0 0
    %1973 = vmatprep.subr.bf16.mxu0 0
    %1974 = vmatpush1.bf16.msra.mxu0 0
    %1975 = vmatprep.subr.bf16.mxu0 0
    %1976 = vmatpush1.bf16.msra.mxu0 0
    %1977 = vmatprep.subr.bf16.mxu0 0
    %1978 = vmatpush1.bf16.msra.mxu0 0
    %1979 = vmatprep.subr.bf16.mxu0 0
    %1980 = vmatpush1.bf16.msra.mxu0 0
    %1981 = vmatprep.subr.bf16.mxu0 0
    %1982 = vmatpush1.bf16.msra.mxu0 0
    %1983 = vmatprep.subr.bf16.mxu0 0
    %1984 = vmatpush1.bf16.msra.mxu0 0
    %1985 = vmatprep.subr.bf16.mxu0 0
    %1986 = vmatpush1.bf16.msra.mxu0 0
    %1987 = vmatprep.subr.bf16.mxu0 0
    %1988 = vmatpush1.bf16.msra.mxu0 0
    %1989 = vmatprep.subr.bf16.mxu0 0
    %1990 = vmatpush1.bf16.msra.mxu0 0
    %1991 = vmatprep.subr.bf16.mxu0 0
    %1992 = vmatpush1.bf16.msra.mxu0 0
    %1993 = vmatprep.subr.bf16.mxu0 0
    %1994 = vmatpush1.bf16.msra.mxu0 0
    %1995 = vmatprep.subr.bf16.mxu0 0
    %1996 = vmatpush1.bf16.msra.mxu0 0
    %1997 = vmatprep.subr.bf16.mxu0 0
    %1998 = vmatpush1.bf16.msra.mxu0 0
    %1999 = vmatprep.mubr.bf16.mxu0 0
    %2000 = vmatmul.mubr.bf16.gmra.mrb[0].mxu0 %v1965
    %v2001 = vpop.f32.mrb[0].mxu0
    %v2002 = vadd.f32 0.0, %v2001
    %v2003 = vpop.f32.mrb[0].mxu0
    %v2004 = vpop.f32.mrb[0].mxu0
    %v2005 = vpop.f32.mrb[0].mxu0
    %2006 = vdwg.mxu0
    %v2007 = vadd.f32 %v117, %v2002
    %v2008 = vxor.u32 %v2007, 2147483648
    %v2009 = vmul.f32 %v2008, 1.442695
    %v2010 = vpow.pop %v2009
    %v2011 = vadd.f32 %v2010, 1.0
    %v2012 = vrcp.pop %v2011
    %v2013 = vmul.f32 1.0, %v2012
    %v2014 = vtanh.pop %v2007
    %v2016 = vrot.slane %v1872, 6
    %v2018 = vmul.f32 %v2013, %v2016
    %2020 = vrot.lane.b32.xlu0 %v2014, 64
    %v2021 = vpop.permute.xlu0 %2020
    %v2023 = vmul.f32 %v2013, %v2021
    %2025 = vrot.lane.b32.xlu0 %v2023, 32
    %v2026 = vpop.permute.xlu0 %2025
    %v2028 = vadd.f32 %v2018, %v2026
    %v2029 = vtanh.pop %v2028
    %2031 = vrot.lane.b32.xlu0 %v2029, 64
    %v2032 = vpop.permute.xlu0 %2031
    %v2034 = vmul.f32 %v2013, %v2032
    %2036 = vrot.lane.b32.xlu0 %v1878, 32
    %v2037 = vpop.permute.xlu0 %2036
    %v2040 = vrot.slane %v1958, 2
    %2041 = vrot.lane.b32.xlu0 %v2040, 64
    %v2042 = vpop.permute.xlu0 %2041
    %v2044 = vsel %vm132, %v2037, %v2042
    %v2045 = vpack.c.bf16 %v2044, %v2044
    %v2047 = vrot.slane %v2045, 3
    %v2049 = vsel %vm315, %v2047, 0
    %2051 = vmatprep.subr.bf16.mxu0 0
    %2052 = vmatpush1.bf16.msra.mxu0 %v307
    %2053 = vmatprep.subr.bf16.mxu0 0
    %2054 = vmatpush1.bf16.msra.mxu0 %v308
    %2055 = vmatprep.subr.bf16.mxu0 0
    %2056 = vmatpush1.bf16.msra.mxu0 %v309
    %2057 = vmatprep.subr.bf16.mxu0 0
    %2058 = vmatpush1.bf16.msra.mxu0 %v310
    %2059 = vmatprep.subr.bf16.mxu0 0
    %2060 = vmatpush1.bf16.msra.mxu0 0
    %2061 = vmatprep.subr.bf16.mxu0 0
    %2062 = vmatpush1.bf16.msra.mxu0 0
    %2063 = vmatprep.subr.bf16.mxu0 0
    %2064 = vmatpush1.bf16.msra.mxu0 0
    %2065 = vmatprep.subr.bf16.mxu0 0
    %2066 = vmatpush1.bf16.msra.mxu0 0
    %2067 = vmatprep.subr.bf16.mxu0 0
    %2068 = vmatpush1.bf16.msra.mxu0 0
    %2069 = vmatprep.subr.bf16.mxu0 0
    %2070 = vmatpush1.bf16.msra.mxu0 0
    %2071 = vmatprep.subr.bf16.mxu0 0
    %2072 = vmatpush1.bf16.msra.mxu0 0
    %2073 = vmatprep.subr.bf16.mxu0 0
    %2074 = vmatpush1.bf16.msra.mxu0 0
    %2075 = vmatprep.subr.bf16.mxu0 0
    %2076 = vmatpush1.bf16.msra.mxu0 0
    %2077 = vmatprep.subr.bf16.mxu0 0
    %2078 = vmatpush1.bf16.msra.mxu0 0
    %2079 = vmatprep.subr.bf16.mxu0 0
    %2080 = vmatpush1.bf16.msra.mxu0 0
    %2081 = vmatprep.subr.bf16.mxu0 0
    %2082 = vmatpush1.bf16.msra.mxu0 0
    %2083 = vmatprep.mubr.bf16.mxu0 0
    %2084 = vmatmul.mubr.bf16.gmra.mrb[0].mxu0 %v2049
    %v2085 = vpop.f32.mrb[0].mxu0
    %v2086 = vadd.f32 %v289, %v2085
    %v2087 = vpop.f32.mrb[0].mxu0
    %v2088 = vpop.f32.mrb[0].mxu0
    %v2089 = vpop.f32.mrb[0].mxu0
    %2090 = vdwg.mxu0
    %v2091 = vxor.u32 %v2086, 2147483648
    %v2092 = vmul.f32 %v2091, 1.442695
    %v2093 = vpow.pop %v2092
    %v2094 = vadd.f32 %v2093, 1.0
    %v2095 = vrcp.pop %v2094
    %v2096 = vmul.f32 1.0, %v2095
    %v2097 = vtanh.pop %v2086
    %v2098 = vmul.f32 %v2096, %v1952
    %2100 = vrot.lane.b32.xlu0 %v2097, 64
    %v2101 = vpop.permute.xlu0 %2100
    %v2103 = vmul.f32 %v2096, %v2101
    %2105 = vrot.lane.b32.xlu0 %v2103, 32
    %v2106 = vpop.permute.xlu0 %2105
    %v2108 = vadd.f32 %v2098, %v2106
    %v2109 = vtanh.pop %v2108
    %2111 = vrot.lane.b32.xlu0 %v2109, 64
    %v2112 = vpop.permute.xlu0 %2111
    %v2114 = vmul.f32 %v2096, %v2112
    %v2115 = vpack.c.bf16 %v2034, %v2034
    %2117 = vrot.lane.b32.xlu0 %v2115, 32
    %v2118 = vpop.permute.xlu0 %2117
    %v2120 = vsel %vm132, %v2118, 0
    %2122 = vmatprep.subr.bf16.mxu0 0
    %2123 = vmatpush1.bf16.msra.mxu0 %v128
    %2124 = vmatprep.subr.bf16.mxu0 0
    %2125 = vmatpush1.bf16.msra.mxu0 %v129
    %2126 = vmatprep.subr.bf16.mxu0 0
    %2127 = vmatpush1.bf16.msra.mxu0 0
    %2128 = vmatprep.subr.bf16.mxu0 0
    %2129 = vmatpush1.bf16.msra.mxu0 0
    %2130 = vmatprep.subr.bf16.mxu0 0
    %2131 = vmatpush1.bf16.msra.mxu0 0
    %2132 = vmatprep.subr.bf16.mxu0 0
    %2133 = vmatpush1.bf16.msra.mxu0 0
    %2134 = vmatprep.subr.bf16.mxu0 0
    %2135 = vmatpush1.bf16.msra.mxu0 0
    %2136 = vmatprep.subr.bf16.mxu0 0
    %2137 = vmatpush1.bf16.msra.mxu0 0
    %2138 = vmatprep.subr.bf16.mxu0 0
    %2139 = vmatpush1.bf16.msra.mxu0 0
    %2140 = vmatprep.subr.bf16.mxu0 0
    %2141 = vmatpush1.bf16.msra.mxu0 0
    %2142 = vmatprep.subr.bf16.mxu0 0
    %2143 = vmatpush1.bf16.msra.mxu0 0
    %2144 = vmatprep.subr.bf16.mxu0 0
    %2145 = vmatpush1.bf16.msra.mxu0 0
    %2146 = vmatprep.subr.bf16.mxu0 0
    %2147 = vmatpush1.bf16.msra.mxu0 0
    %2148 = vmatprep.subr.bf16.mxu0 0
    %2149 = vmatpush1.bf16.msra.mxu0 0
    %2150 = vmatprep.subr.bf16.mxu0 0
    %2151 = vmatpush1.bf16.msra.mxu0 0
    %2152 = vmatprep.subr.bf16.mxu0 0
    %2153 = vmatpush1.bf16.msra.mxu0 0
    %2154 = vmatprep.mubr.bf16.mxu0 0
    %2155 = vmatmul.mubr.bf16.gmra.mrb[0].mxu0 %v2120
    %v2156 = vpop.f32.mrb[0].mxu0
    %v2157 = vadd.f32 0.0, %v2156
    %v2158 = vpop.f32.mrb[0].mxu0
    %v2159 = vpop.f32.mrb[0].mxu0
    %v2160 = vpop.f32.mrb[0].mxu0
    %2161 = vdwg.mxu0
    %v2163 = vrot.slane %v2157, 6
    %v2165 = vadd.f32 %v117, %v2163
    %v2166 = vxor.u32 %v2165, 2147483648
    %v2167 = vmul.f32 %v2166, 1.442695
    %v2168 = vpow.pop %v2167
    %v2169 = vadd.f32 %v2168, 1.0
    %v2170 = vrcp.pop %v2169
    %v2171 = vmul.f32 1.0, %v2170
    %v2172 = vtanh.pop %v2165
    %v2174 = vrot.slane %v2028, 6
    %v2176 = vmul.f32 %v2171, %v2174
    %2178 = vrot.lane.b32.xlu0 %v2172, 64
    %v2179 = vpop.permute.xlu0 %2178
    %v2181 = vmul.f32 %v2171, %v2179
    %2183 = vrot.lane.b32.xlu0 %v2181, 32
    %v2184 = vpop.permute.xlu0 %2183
    %v2186 = vadd.f32 %v2176, %v2184
    %v2187 = vtanh.pop %v2186
    %2189 = vrot.lane.b32.xlu0 %v2187, 64
    %v2190 = vpop.permute.xlu0 %2189
    %v2192 = vmul.f32 %v2171, %v2190
    %2194 = vrot.lane.b32.xlu0 %v2034, 32
    %v2195 = vpop.permute.xlu0 %2194
    %2198 = vrot.lane.b32.xlu0 %v2114, 64
    %v2199 = vpop.permute.xlu0 %2198
    %v2201 = vsel %vm132, %v2195, %v2199
    %v2202 = vpack.c.bf16 %v2201, %v2201
    %v2204 = vsel %vm315, %v2202, 0
    %2206 = vmatprep.subr.bf16.mxu0 0
    %2207 = vmatpush1.bf16.msra.mxu0 %v307
    %2208 = vmatprep.subr.bf16.mxu0 0
    %2209 = vmatpush1.bf16.msra.mxu0 %v308
    %2210 = vmatprep.subr.bf16.mxu0 0
    %2211 = vmatpush1.bf16.msra.mxu0 %v309
    %2212 = vmatprep.subr.bf16.mxu0 0
    %2213 = vmatpush1.bf16.msra.mxu0 %v310
    %2214 = vmatprep.subr.bf16.mxu0 0
    %2215 = vmatpush1.bf16.msra.mxu0 0
    %2216 = vmatprep.subr.bf16.mxu0 0
    %2217 = vmatpush1.bf16.msra.mxu0 0
    %2218 = vmatprep.subr.bf16.mxu0 0
    %2219 = vmatpush1.bf16.msra.mxu0 0
    %2220 = vmatprep.subr.bf16.mxu0 0
    %2221 = vmatpush1.bf16.msra.mxu0 0
    %2222 = vmatprep.subr.bf16.mxu0 0
    %2223 = vmatpush1.bf16.msra.mxu0 0
    %2224 = vmatprep.subr.bf16.mxu0 0
    %2225 = vmatpush1.bf16.msra.mxu0 0
    %2226 = vmatprep.subr.bf16.mxu0 0
    %2227 = vmatpush1.bf16.msra.mxu0 0
    %2228 = vmatprep.subr.bf16.mxu0 0
    %2229 = vmatpush1.bf16.msra.mxu0 0
    %2230 = vmatprep.subr.bf16.mxu0 0
    %2231 = vmatpush1.bf16.msra.mxu0 0
    %2232 = vmatprep.subr.bf16.mxu0 0
    %2233 = vmatpush1.bf16.msra.mxu0 0
    %2234 = vmatprep.subr.bf16.mxu0 0
    %2235 = vmatpush1.bf16.msra.mxu0 0
    %2236 = vmatprep.subr.bf16.mxu0 0
    %2237 = vmatpush1.bf16.msra.mxu0 0
    %2238 = vmatprep.mubr.bf16.mxu0 0
    %2239 = vmatmul.mubr.bf16.gmra.mrb[0].mxu0 %v2204
    %v2240 = vpop.f32.mrb[0].mxu0
    %v2241 = vadd.f32 %v289, %v2240
    %v2242 = vpop.f32.mrb[0].mxu0
    %v2243 = vpop.f32.mrb[0].mxu0
    %v2244 = vpop.f32.mrb[0].mxu0
    %2245 = vdwg.mxu0
    %v2246 = vxor.u32 %v2241, 2147483648
    %v2247 = vmul.f32 %v2246, 1.442695
    %v2248 = vpow.pop %v2247
    %v2249 = vadd.f32 %v2248, 1.0
    %v2250 = vrcp.pop %v2249
    %v2251 = vmul.f32 1.0, %v2250
    %v2252 = vtanh.pop %v2241
    %v2253 = vmul.f32 %v2251, %v2108
    %2255 = vrot.lane.b32.xlu0 %v2252, 64
    %v2256 = vpop.permute.xlu0 %2255
    %v2258 = vmul.f32 %v2251, %v2256
    %2260 = vrot.lane.b32.xlu0 %v2258, 32
    %v2261 = vpop.permute.xlu0 %2260
    %v2263 = vadd.f32 %v2253, %v2261
    %v2264 = vtanh.pop %v2263
    %2266 = vrot.lane.b32.xlu0 %v2264, 64
    %v2267 = vpop.permute.xlu0 %2266
    %v2269 = vmul.f32 %v2251, %v2267
    %v2270 = vpack.c.bf16 %v2192, %v2192
    %v2272 = vrot.slane %v2270, 1
    %2273 = vrot.lane.b32.xlu0 %v2272, 32
    %v2274 = vpop.permute.xlu0 %2273
    %v2276 = vsel %vm132, %v2274, 0
    %2278 = vmatprep.subr.bf16.mxu0 0
    %2279 = vmatpush1.bf16.msra.mxu0 %v128
    %2280 = vmatprep.subr.bf16.mxu0 0
    %2281 = vmatpush1.bf16.msra.mxu0 %v129
    %2282 = vmatprep.subr.bf16.mxu0 0
    %2283 = vmatpush1.bf16.msra.mxu0 0
    %2284 = vmatprep.subr.bf16.mxu0 0
    %2285 = vmatpush1.bf16.msra.mxu0 0
    %2286 = vmatprep.subr.bf16.mxu0 0
    %2287 = vmatpush1.bf16.msra.mxu0 0
    %2288 = vmatprep.subr.bf16.mxu0 0
    %2289 = vmatpush1.bf16.msra.mxu0 0
    %2290 = vmatprep.subr.bf16.mxu0 0
    %2291 = vmatpush1.bf16.msra.mxu0 0
    %2292 = vmatprep.subr.bf16.mxu0 0
    %2293 = vmatpush1.bf16.msra.mxu0 0
    %2294 = vmatprep.subr.bf16.mxu0 0
    %2295 = vmatpush1.bf16.msra.mxu0 0
    %2296 = vmatprep.subr.bf16.mxu0 0
    %2297 = vmatpush1.bf16.msra.mxu0 0
    %2298 = vmatprep.subr.bf16.mxu0 0
    %2299 = vmatpush1.bf16.msra.mxu0 0
    %2300 = vmatprep.subr.bf16.mxu0 0
    %2301 = vmatpush1.bf16.msra.mxu0 0
    %2302 = vmatprep.subr.bf16.mxu0 0
    %2303 = vmatpush1.bf16.msra.mxu0 0
    %2304 = vmatprep.subr.bf16.mxu0 0
    %2305 = vmatpush1.bf16.msra.mxu0 0
    %2306 = vmatprep.subr.bf16.mxu0 0
    %2307 = vmatpush1.bf16.msra.mxu0 0
    %2308 = vmatprep.subr.bf16.mxu0 0
    %2309 = vmatpush1.bf16.msra.mxu0 0
    %2310 = vmatprep.mubr.bf16.mxu0 0
    %2311 = vmatmul.mubr.bf16.gmra.mrb[0].mxu0 %v2276
    %v2312 = vpop.f32.mrb[0].mxu0
    %v2313 = vadd.f32 0.0, %v2312
    %v2314 = vpop.f32.mrb[0].mxu0
    %v2315 = vpop.f32.mrb[0].mxu0
    %v2316 = vpop.f32.mrb[0].mxu0
    %2317 = vdwg.mxu0
    %v2319 = vrot.slane %v2313, 4
    %v2321 = vadd.f32 %v117, %v2319
    %v2322 = vxor.u32 %v2321, 2147483648
    %v2323 = vmul.f32 %v2322, 1.442695
    %v2324 = vpow.pop %v2323
    %v2325 = vadd.f32 %v2324, 1.0
    %v2326 = vrcp.pop %v2325
    %v2327 = vmul.f32 1.0, %v2326
    %v2328 = vtanh.pop %v2321
    %v2330 = vrot.slane %v2186, 6
    %v2332 = vmul.f32 %v2327, %v2330
    %2334 = vrot.lane.b32.xlu0 %v2328, 64
    %v2335 = vpop.permute.xlu0 %2334
    %v2337 = vmul.f32 %v2327, %v2335
    %2339 = vrot.lane.b32.xlu0 %v2337, 32
    %v2340 = vpop.permute.xlu0 %2339
    %v2342 = vadd.f32 %v2332, %v2340
    %v2343 = vtanh.pop %v2342
    %2345 = vrot.lane.b32.xlu0 %v2343, 64
    %v2346 = vpop.permute.xlu0 %2345
    %v2348 = vmul.f32 %v2327, %v2346
    %2350 = vrot.lane.b32.xlu0 %v2192, 32
    %v2351 = vpop.permute.xlu0 %2350
    %v2354 = vrot.slane %v2269, 6
    %2355 = vrot.lane.b32.xlu0 %v2354, 64
    %v2356 = vpop.permute.xlu0 %2355
    %v2358 = vsel %vm132, %v2351, %v2356
    %v2359 = vpack.c.bf16 %v2358, %v2358
    %v2361 = vrot.slane %v2359, 1
    %v2363 = vsel %vm315, %v2361, 0
    %2365 = vmatprep.subr.bf16.mxu0 0
    %2366 = vmatpush1.bf16.msra.mxu0 %v307
    %2367 = vmatprep.subr.bf16.mxu0 0
    %2368 = vmatpush1.bf16.msra.mxu0 %v308
    %2369 = vmatprep.subr.bf16.mxu0 0
    %2370 = vmatpush1.bf16.msra.mxu0 %v309
    %2371 = vmatprep.subr.bf16.mxu0 0
    %2372 = vmatpush1.bf16.msra.mxu0 %v310
    %2373 = vmatprep.subr.bf16.mxu0 0
    %2374 = vmatpush1.bf16.msra.mxu0 0
    %2375 = vmatprep.subr.bf16.mxu0 0
    %2376 = vmatpush1.bf16.msra.mxu0 0
    %2377 = vmatprep.subr.bf16.mxu0 0
    %2378 = vmatpush1.bf16.msra.mxu0 0
    %2379 = vmatprep.subr.bf16.mxu0 0
    %2380 = vmatpush1.bf16.msra.mxu0 0
    %2381 = vmatprep.subr.bf16.mxu0 0
    %2382 = vmatpush1.bf16.msra.mxu0 0
    %2383 = vmatprep.subr.bf16.mxu0 0
    %2384 = vmatpush1.bf16.msra.mxu0 0
    %2385 = vmatprep.subr.bf16.mxu0 0
    %2386 = vmatpush1.bf16.msra.mxu0 0
    %2387 = vmatprep.subr.bf16.mxu0 0
    %2388 = vmatpush1.bf16.msra.mxu0 0
    %2389 = vmatprep.subr.bf16.mxu0 0
    %2390 = vmatpush1.bf16.msra.mxu0 0
    %2391 = vmatprep.subr.bf16.mxu0 0
    %2392 = vmatpush1.bf16.msra.mxu0 0
    %2393 = vmatprep.subr.bf16.mxu0 0
    %2394 = vmatpush1.bf16.msra.mxu0 0
    %2395 = vmatprep.subr.bf16.mxu0 0
    %2396 = vmatpush1.bf16.msra.mxu0 0
    %2397 = vmatprep.mubr.bf16.mxu0 0
    %2398 = vmatmul.mubr.bf16.gmra.mrb[0].mxu0 %v2363
    %v2399 = vpop.f32.mrb[0].mxu0
    %v2400 = vadd.f32 %v289, %v2399
    %v2401 = vpop.f32.mrb[0].mxu0
    %v2402 = vpop.f32.mrb[0].mxu0
    %v2403 = vpop.f32.mrb[0].mxu0
    %2404 = vdwg.mxu0
    %v2405 = vxor.u32 %v2400, 2147483648
    %v2406 = vmul.f32 %v2405, 1.442695
    %v2407 = vpow.pop %v2406
    %v2408 = vadd.f32 %v2407, 1.0
    %v2409 = vrcp.pop %v2408
    %v2410 = vmul.f32 1.0, %v2409
    %v2411 = vtanh.pop %v2400
    %v2412 = vmul.f32 %v2410, %v2263
    %2414 = vrot.lane.b32.xlu0 %v2411, 64
    %v2415 = vpop.permute.xlu0 %2414
    %v2417 = vmul.f32 %v2410, %v2415
    %2419 = vrot.lane.b32.xlu0 %v2417, 32
    %v2420 = vpop.permute.xlu0 %2419
    %v2422 = vadd.f32 %v2412, %v2420
    %v2423 = vtanh.pop %v2422
    %2425 = vrot.lane.b32.xlu0 %v2423, 64
    %v2426 = vpop.permute.xlu0 %2425
    %v2428 = vmul.f32 %v2410, %v2426
    %v2429 = vpack.c.bf16 %v2348, %v2348
    %v2431 = vrot.slane %v2429, 2
    %2432 = vrot.lane.b32.xlu0 %v2431, 32
    %v2433 = vpop.permute.xlu0 %2432
    %v2435 = vsel %vm132, %v2433, 0
    %2437 = vmatprep.subr.bf16.mxu0 0
    %2438 = vmatpush1.bf16.msra.mxu0 %v128
    %2439 = vmatprep.subr.bf16.mxu0 0
    %2440 = vmatpush1.bf16.msra.mxu0 %v129
    %2441 = vmatprep.subr.bf16.mxu0 0
    %2442 = vmatpush1.bf16.msra.mxu0 0
    %2443 = vmatprep.subr.bf16.mxu0 0
    %2444 = vmatpush1.bf16.msra.mxu0 0
    %2445 = vmatprep.subr.bf16.mxu0 0
    %2446 = vmatpush1.bf16.msra.mxu0 0
    %2447 = vmatprep.subr.bf16.mxu0 0
    %2448 = vmatpush1.bf16.msra.mxu0 0
    %2449 = vmatprep.subr.bf16.mxu0 0
    %2450 = vmatpush1.bf16.msra.mxu0 0
    %2451 = vmatprep.subr.bf16.mxu0 0
    %2452 = vmatpush1.bf16.msra.mxu0 0
    %2453 = vmatprep.subr.bf16.mxu0 0
    %2454 = vmatpush1.bf16.msra.mxu0 0
    %2455 = vmatprep.subr.bf16.mxu0 0
    %2456 = vmatpush1.bf16.msra.mxu0 0
    %2457 = vmatprep.subr.bf16.mxu0 0
    %2458 = vmatpush1.bf16.msra.mxu0 0
    %2459 = vmatprep.subr.bf16.mxu0 0
    %2460 = vmatpush1.bf16.msra.mxu0 0
    %2461 = vmatprep.subr.bf16.mxu0 0
    %2462 = vmatpush1.bf16.msra.mxu0 0
    %2463 = vmatprep.subr.bf16.mxu0 0
    %2464 = vmatpush1.bf16.msra.mxu0 0
    %2465 = vmatprep.subr.bf16.mxu0 0
    %2466 = vmatpush1.bf16.msra.mxu0 0
    %2467 = vmatprep.subr.bf16.mxu0 0
    %2468 = vmatpush1.bf16.msra.mxu0 0
    %2469 = vmatprep.mubr.bf16.mxu0 0
    %2470 = vmatmul.mubr.bf16.gmra.mrb[0].mxu0 %v2435
    %v2471 = vpop.f32.mrb[0].mxu0
    %v2472 = vadd.f32 0.0, %v2471
    %v2473 = vpop.f32.mrb[0].mxu0
    %v2474 = vpop.f32.mrb[0].mxu0
    %v2475 = vpop.f32.mrb[0].mxu0
    %2476 = vdwg.mxu0
    %v2478 = vrot.slane %v2472, 2
    %v2480 = vadd.f32 %v117, %v2478
    %v2481 = vxor.u32 %v2480, 2147483648
    %v2482 = vmul.f32 %v2481, 1.442695
    %v2483 = vpow.pop %v2482
    %v2484 = vadd.f32 %v2483, 1.0
    %v2485 = vrcp.pop %v2484
    %v2486 = vmul.f32 1.0, %v2485
    %v2487 = vtanh.pop %v2480
    %v2489 = vrot.slane %v2342, 6
    %v2491 = vmul.f32 %v2486, %v2489
    %2493 = vrot.lane.b32.xlu0 %v2487, 64
    %v2494 = vpop.permute.xlu0 %2493
    %v2496 = vmul.f32 %v2486, %v2494
    %2498 = vrot.lane.b32.xlu0 %v2496, 32
    %v2499 = vpop.permute.xlu0 %2498
    %v2501 = vadd.f32 %v2491, %v2499
    %v2502 = vtanh.pop %v2501
    %2504 = vrot.lane.b32.xlu0 %v2502, 64
    %v2505 = vpop.permute.xlu0 %2504
    %v2507 = vmul.f32 %v2486, %v2505
    %2509 = vrot.lane.b32.xlu0 %v2348, 32
    %v2510 = vpop.permute.xlu0 %2509
    %v2513 = vrot.slane %v2428, 4
    %2514 = vrot.lane.b32.xlu0 %v2513, 64
    %v2515 = vpop.permute.xlu0 %2514
    %v2517 = vsel %vm132, %v2510, %v2515
    %v2518 = vpack.c.bf16 %v2517, %v2517
    %v2520 = vrot.slane %v2518, 2
    %v2522 = vsel %vm315, %v2520, 0
    %2524 = vmatprep.subr.bf16.mxu0 0
    %2525 = vmatpush1.bf16.msra.mxu0 %v307
    %2526 = vmatprep.subr.bf16.mxu0 0
    %2527 = vmatpush1.bf16.msra.mxu0 %v308
    %2528 = vmatprep.subr.bf16.mxu0 0
    %2529 = vmatpush1.bf16.msra.mxu0 %v309
    %2530 = vmatprep.subr.bf16.mxu0 0
    %2531 = vmatpush1.bf16.msra.mxu0 %v310
    %2532 = vmatprep.subr.bf16.mxu0 0
    %2533 = vmatpush1.bf16.msra.mxu0 0
    %2534 = vmatprep.subr.bf16.mxu0 0
    %2535 = vmatpush1.bf16.msra.mxu0 0
    %2536 = vmatprep.subr.bf16.mxu0 0
    %2537 = vmatpush1.bf16.msra.mxu0 0
    %2538 = vmatprep.subr.bf16.mxu0 0
    %2539 = vmatpush1.bf16.msra.mxu0 0
    %2540 = vmatprep.subr.bf16.mxu0 0
    %2541 = vmatpush1.bf16.msra.mxu0 0
    %2542 = vmatprep.subr.bf16.mxu0 0
    %2543 = vmatpush1.bf16.msra.mxu0 0
    %2544 = vmatprep.subr.bf16.mxu0 0
    %2545 = vmatpush1.bf16.msra.mxu0 0
    %2546 = vmatprep.subr.bf16.mxu0 0
    %2547 = vmatpush1.bf16.msra.mxu0 0
    %2548 = vmatprep.subr.bf16.mxu0 0
    %2549 = vmatpush1.bf16.msra.mxu0 0
    %2550 = vmatprep.subr.bf16.mxu0 0
    %2551 = vmatpush1.bf16.msra.mxu0 0
    %2552 = vmatprep.subr.bf16.mxu0 0
    %2553 = vmatpush1.bf16.msra.mxu0 0
    %2554 = vmatprep.subr.bf16.mxu0 0
    %2555 = vmatpush1.bf16.msra.mxu0 0
    %2556 = vmatprep.mubr.bf16.mxu0 0
    %2557 = vmatmul.mubr.bf16.gmra.mrb[0].mxu0 %v2522
    %v2558 = vpop.f32.mrb[0].mxu0
    %v2559 = vadd.f32 %v289, %v2558
    %v2560 = vpop.f32.mrb[0].mxu0
    %v2561 = vpop.f32.mrb[0].mxu0
    %v2562 = vpop.f32.mrb[0].mxu0
    %2563 = vdwg.mxu0
    %v2564 = vxor.u32 %v2559, 2147483648
    %v2565 = vmul.f32 %v2564, 1.442695
    %v2566 = vpow.pop %v2565
    %v2567 = vadd.f32 %v2566, 1.0
    %v2568 = vrcp.pop %v2567
    %v2569 = vmul.f32 1.0, %v2568
    %v2570 = vtanh.pop %v2559
    %v2571 = vmul.f32 %v2569, %v2422
    %2573 = vrot.lane.b32.xlu0 %v2570, 64
    %v2574 = vpop.permute.xlu0 %2573
    %v2576 = vmul.f32 %v2569, %v2574
    %2578 = vrot.lane.b32.xlu0 %v2576, 32
    %v2579 = vpop.permute.xlu0 %2578
    %v2581 = vadd.f32 %v2571, %v2579
    %v2582 = vtanh.pop %v2581
    %2584 = vrot.lane.b32.xlu0 %v2582, 64
    %v2585 = vpop.permute.xlu0 %2584
    %v2587 = vmul.f32 %v2569, %v2585
    %2589 = vrot.lane.b32.xlu0 %v2507, 32
    %v2590 = vpop.permute.xlu0 %2589
    %v2593 = vrot.slane %v2587, 2
    %2594 = vrot.lane.b32.xlu0 %v2593, 64
    %v2595 = vpop.permute.xlu0 %2594
    %v2597 = vsel %vm132, %v2590, %v2595
    %v2598 = vpack.c.bf16 %v2597, %v2597
    %v2600 = vrot.slane %v2598, 3
    %v2602 = vsel %vm315, %v2600, 0
    %2604 = vmatprep.subr.bf16.mxu0 0
    %2605 = vmatpush1.bf16.msra.mxu0 %v307
    %2606 = vmatprep.subr.bf16.mxu0 0
    %2607 = vmatpush1.bf16.msra.mxu0 %v308
    %2608 = vmatprep.subr.bf16.mxu0 0
    %2609 = vmatpush1.bf16.msra.mxu0 %v309
    %2610 = vmatprep.subr.bf16.mxu0 0
    %2611 = vmatpush1.bf16.msra.mxu0 %v310
    %2612 = vmatprep.subr.bf16.mxu0 0
    %2613 = vmatpush1.bf16.msra.mxu0 0
    %2614 = vmatprep.subr.bf16.mxu0 0
    %2615 = vmatpush1.bf16.msra.mxu0 0
    %2616 = vmatprep.subr.bf16.mxu0 0
    %2617 = vmatpush1.bf16.msra.mxu0 0
    %2618 = vmatprep.subr.bf16.mxu0 0
    %2619 = vmatpush1.bf16.msra.mxu0 0
    %2620 = vmatprep.subr.bf16.mxu0 0
    %2621 = vmatpush1.bf16.msra.mxu0 0
    %2622 = vmatprep.subr.bf16.mxu0 0
    %2623 = vmatpush1.bf16.msra.mxu0 0
    %2624 = vmatprep.subr.bf16.mxu0 0
    %2625 = vmatpush1.bf16.msra.mxu0 0
    %2626 = vmatprep.subr.bf16.mxu0 0
    %2627 = vmatpush1.bf16.msra.mxu0 0
    %2628 = vmatprep.subr.bf16.mxu0 0
    %2629 = vmatpush1.bf16.msra.mxu0 0
    %2630 = vmatprep.subr.bf16.mxu0 0
    %2631 = vmatpush1.bf16.msra.mxu0 0
    %2632 = vmatprep.subr.bf16.mxu0 0
    %2633 = vmatpush1.bf16.msra.mxu0 0
    %2634 = vmatprep.subr.bf16.mxu0 0
    %2635 = vmatpush1.bf16.msra.mxu0 0
    %2636 = vmatprep.mubr.bf16.mxu0 0
    %2637 = vmatmul.mubr.bf16.gmra.mrb[0].mxu0 %v2602
    %v2638 = vpop.f32.mrb[0].mxu0
    %v2639 = vadd.f32 %v289, %v2638
    %v2640 = vpop.f32.mrb[0].mxu0
    %v2641 = vpop.f32.mrb[0].mxu0
    %v2642 = vpop.f32.mrb[0].mxu0
    %2643 = vdwg.mxu0
    %v2644 = vxor.u32 %v2639, 2147483648
    %v2645 = vmul.f32 %v2644, 1.442695
    %v2646 = vpow.pop %v2645
    %v2647 = vadd.f32 %v2646, 1.0
    %v2648 = vrcp.pop %v2647
    %v2649 = vmul.f32 1.0, %v2648
    %v2650 = vtanh.pop %v2639
    %v2651 = vmul.f32 %v2649, %v2581
    %2653 = vrot.lane.b32.xlu0 %v2650, 64
    %v2654 = vpop.permute.xlu0 %2653
    %v2656 = vmul.f32 %v2649, %v2654
    %2658 = vrot.lane.b32.xlu0 %v2656, 32
    %v2659 = vpop.permute.xlu0 %2658
    %v2661 = vadd.f32 %v2651, %v2659
    %v2662 = vtanh.pop %v2661
    %2664 = vrot.lane.b32.xlu0 %v2662, 64
    %v2665 = vpop.permute.xlu0 %2664
    %v2667 = vmul.f32 %v2649, %v2665
    %2669 = vrot.lane.b32.xlu0 %v2667, 32
    %v2670 = vpop.permute.xlu0 %2669
    %vm2672 = vcmask 254976
    %2673 = vst.msk [vmem:[#allocation2] sm:$0x3] %vm2672, %v2670
    // Predicated region
    $region26: #{encoder_forward.1} parent=1 // pred_check
      _
    $region27: #{encoder_forward.1} parent=1 // pred_check_branch
      %2675 = sbr.rel (0) target = $region29
    $region28: #{encoder_forward.1} parent=1 // pred_region
      %s2677 = ssub.s32 32, 32
      %2678 = vsyncadd [#allocation3], %s2677
      %s2680 = sshll.u32 [#allocation2], 4
      %s2681 = int_to_ptr.vmem [resolvable:$true] %s2680
      %2683 = dma.vmem_to_hbm [thread:$0]  %s2681, 32, %s6, [#allocation3]
    $region29: #{encoder_forward.1} parent=1 // pred_fallthru
      _
    // Predicated region
    $region30: #{encoder_forward.1} parent=1 // pred_check
      _
    $region31: #{encoder_forward.1} parent=1 // pred_check_branch
      %2685 = sbr.rel (0) target = $region33
    $region32: #{encoder_forward.1} parent=1 // pred_region
      %2686 = dma.done [#allocation3], 32
    $region33: #{encoder_forward.1} parent=1 // pred_fallthru
      _
    %2687 = vsyncpa [#allocation3], 1

</llo_original>
